<compile_context>
chip_gen: v6e
topology: v6e:2x2x1
jax: 0.10.0
libtpu: 0.0.40
codegen_flags: <defaults>
</compile_context>

<pallas_src>
import functools

import jax
import jax.numpy as jnp
from jax.experimental import pallas as pl
from jax.experimental.pallas import tpu as pltpu

_LANE = 128


def _round_up(x, m):
    return ((x + m - 1) // m) * m


def _pick_tile(n_pad, pref):
    """Largest multiple of 128 <= pref that divides n_pad (n_pad is a 128-multiple)."""
    t = min(pref, n_pad)
    while n_pad % t:
        t -= _LANE
    return t


def _vmem_cap_bytes():
    # Generation-aware cap (v7x has only 64 MiB per TensorCore).
    try:
        cap = int(pltpu.get_tpu_info().vmem_capacity_bytes)
    except Exception:
        cap = 64 * 2 ** 20
    return int(0.75 * cap)


# ---------------------------------------------------------------------------
# Pallas kernels
# ---------------------------------------------------------------------------
def _temporal_encoder_kernel(ts_ref, w_ref, b_ref, out_ref):
    # ts: [TM, T], w: [T, Td], b: [1, Td] -> out: [TM, Td] (bf16)
    y = jnp.dot(ts_ref[...], w_ref[...], preferred_element_type=jnp.float32)
    out_ref[...] = jnp.maximum(y + b_ref[...], 0.0).astype(out_ref.dtype)


def _layer_kernel(a_ref, zk_ref, zi_ref, dinv_ref, tf_ref,
                  w1_ref, b1_ref, w2_ref, b2_ref,
                  out_f32_ref, out_bf16_ref,
                  acc_ref, zcat_ref,
                  *, tk, c_pad, td_pad, zk_resident):
    # grid = (rows "parallel", K reduction "arbitrary")
    k = pl.program_id(1)

    @pl.when(k == 0)
    def _init():
        acc_ref[...] = jnp.zeros_like(acc_ref)

    # message passing partial sum: A[i, k-tile] @ z[k-tile]  (bf16 in, f32 acc)
    if zk_resident:
        off = pl.multiple_of(k * tk, _LANE)
        zk = zk_ref[pl.ds(off, tk), :]          # slice of the VMEM-resident z
    else:
        zk = zk_ref[...]                        # streamed (tk, c_pad) block
    acc_ref[...] += jnp.dot(a_ref[...], zk, preferred_element_type=jnp.float32)

    @pl.when(k == pl.num_programs(1) - 1)
    def _finalize():
        z = zi_ref[...]                         # f32 row tile of z
        agg = acc_ref[...] * dinv_ref[...]      # degree normalization (VPU)

        # assemble [z | agg | tf] in bf16 (single fused W1 matmul follows)
        zcat_ref[:, 0:c_pad] = z.astype(jnp.bfloat16)
        zcat_ref[:, c_pad:2 * c_pad] = agg.astype(jnp.bfloat16)
        zcat_ref[:, 2 * c_pad:2 * c_pad + td_pad] = tf_ref[...]

        h = (jnp.dot(zcat_ref[...], w1_ref[...],
                     preferred_element_type=jnp.float32) + b1_ref[...])
        h = jnp.maximum(h, 0.0)
        z_new = (z
                 + jnp.dot(h.astype(jnp.bfloat16), w2_ref[...],
                           preferred_element_type=jnp.float32)
                 + b2_ref[...])
        out_f32_ref[...] = z_new
        out_bf16_ref[...] = z_new.astype(jnp.bfloat16)


# ---------------------------------------------------------------------------
# pallas_call wrappers
# ---------------------------------------------------------------------------
def _encode_temporal(ts_pad, enc_w, enc_b, tm):
    n_pad, t_pad = ts_pad.shape
    td_pad = enc_w.shape[1]
    return pl.pallas_call(
        _temporal_encoder_kernel,
        out_shape=jax.ShapeDtypeStruct((n_pad, td_pad), jnp.bfloat16),
        grid_spec=pltpu.PrefetchScalarGridSpec(
            num_scalar_prefetch=0,
            grid=(n_pad // tm,),
            in_specs=[pl.BlockSpec((tm, t_pad), lambda i: (i, 0)),
                      pl.BlockSpec((t_pad, td_pad), lambda i: (0, 0)),
                      pl.BlockSpec((1, td_pad), lambda i: (0, 0))],
            out_specs=pl.BlockSpec((tm, td_pad), lambda i: (i, 0)),
        ),
        compiler_params=pltpu.CompilerParams(
            dimension_semantics=("parallel",)),
    )(ts_pad, enc_w, enc_b)


def _vmem_limit_bytes(tm, tk, n_pad, c_pad, td_pad, h_pad, cat_pad, zk_resident):
    a_b = 2 * tm * tk * 2                                  # A bf16, double buffered
    zk_b = (2 * n_pad * c_pad * 2) if zk_resident else (2 * tk * c_pad * 2)
    zi_b = 2 * tm * c_pad * 4                              # z f32 (row side)
    misc_b = 2 * (tm * 4 + tm * td_pad * 2)                # deg^-1 f32 + tf bf16
    w_b = 2 * (cat_pad * h_pad * 2 + h_pad * 4 + h_pad * c_pad * 2 + c_pad * 4)
    out_b = 2 * tm * c_pad * (4 + 2)                       # f32 + bf16 outputs
    scratch_b = tm * c_pad * 4 + tm * cat_pad * 2          # acc + zcat
    est = a_b + zk_b + zi_b + misc_b + w_b + out_b + scratch_b
    cap = _vmem_cap_bytes()
    return int(min(max(2 * est, 32 * 2 ** 20), cap))


def _layer_forward(a_bf16, deg_inv, z_f32, z_bf16, tf_bf16, lp,
                   tm, tk, zk_resident, vmem_limit):
    n_pad, c_pad = z_f32.shape
    td_pad = tf_bf16.shape[1]
    cat_pad, h_pad = lp["w1"].shape

    if zk_resident:
        zk_spec = pl.BlockSpec((n_pad, c_pad), lambda i, k: (0, 0))   # VMEM-resident
    else:
        zk_spec = pl.BlockSpec((tk, c_pad), lambda i, k: (k, 0))      # streamed

    kernel = functools.partial(_layer_kernel, tk=tk, c_pad=c_pad,
                               td_pad=td_pad, zk_resident=zk_resident)

    return pl.pallas_call(
        kernel,
        out_shape=(jax.ShapeDtypeStruct((n_pad, c_pad), jnp.float32),
                   jax.ShapeDtypeStruct((n_pad, c_pad), jnp.bfloat16)),
        grid_spec=pltpu.PrefetchScalarGridSpec(
            num_scalar_prefetch=0,
            grid=(n_pad // tm, n_pad // tk),
            in_specs=[
                pl.BlockSpec((tm, tk), lambda i, k: (i, k)),          # A tile (bf16)
                zk_spec,                                              # z bf16 (K side)
                pl.BlockSpec((tm, c_pad), lambda i, k: (i, 0)),       # z f32 (row side)
                pl.BlockSpec((tm, 1), lambda i, k: (i, 0)),           # deg^-1
                pl.BlockSpec((tm, td_pad), lambda i, k: (i, 0)),      # temporal feats bf16
                pl.BlockSpec((cat_pad, h_pad), lambda i, k: (0, 0)),  # fused W1 (bf16)
                pl.BlockSpec((1, h_pad), lambda i, k: (0, 0)),        # b1
                pl.BlockSpec((h_pad, c_pad), lambda i, k: (0, 0)),    # W2 (bf16)
                pl.BlockSpec((1, c_pad), lambda i, k: (0, 0)),        # b2
            ],
            out_specs=[pl.BlockSpec((tm, c_pad), lambda i, k: (i, 0)),
                       pl.BlockSpec((tm, c_pad), lambda i, k: (i, 0))],
            scratch_shapes=[pltpu.VMEM((tm, c_pad), jnp.float32),
                            pltpu.VMEM((tm, cat_pad), jnp.bfloat16)],
        ),
        compiler_params=pltpu.CompilerParams(
            dimension_semantics=("parallel", "arbitrary"),
            vmem_limit_bytes=vmem_limit),
        input_output_aliases={2: 0},   # residual update reuses the f32 z buffer
    )(a_bf16, z_bf16, z_f32, deg_inv, tf_bf16,
      lp["w1"], lp["b1"], lp["w2"], lp["b2"])


# ---------------------------------------------------------------------------
# Model wrapper (glue in plain JAX, hot paths in Pallas)
# ---------------------------------------------------------------------------
def init_params(key, in_channels, hidden_channels, temporal_features_dim,
                num_layers, num_timestamps):
    keys = jax.random.split(key, 2 + 5 * num_layers)
    s = 0.1
    params = {
        "enc_w": s * jax.random.normal(
            keys[0], (num_timestamps, temporal_features_dim), jnp.float32),
        "enc_b": s * jax.random.normal(
            keys[1], (1, temporal_features_dim), jnp.float32),
        "layers": [],
    }
    for l in range(num_layers):
        k = keys[2 + 5 * l: 2 + 5 * (l + 1)]
        params["layers"].append({
            "w1z": s * jax.random.normal(k[0], (in_channels, hidden_channels), jnp.float32),
            "w1a": s * jax.random.normal(k[1], (in_channels, hidden_channels), jnp.float32),
            "w1t": s * jax.random.normal(k[2], (temporal_features_dim, hidden_channels), jnp.float32),
            "b1": jnp.zeros((1, hidden_channels), jnp.float32),
            "w2": s * jax.random.normal(k[3], (hidden_channels, in_channels), jnp.float32),
            "b2": jnp.zeros((1, in_channels), jnp.float32),
        })
    return params


def _build_time_gated_adjacency(edge_index, time_diffs, n_pad):
    # Gate each edge by recency, scatter into the (un-normalized) dense adjacency.
    # deg^-1 comes straight from the edge list (no N^2 read); normalization is
    # applied inside the layer kernel. Isolated nodes aggregate to zero (true mean).
    src, dst = edge_index[0], edge_index[1]
    gate = jnp.exp(-jnp.abs(time_diffs)).astype(jnp.float32)
    a = jnp.zeros((n_pad, n_pad), jnp.float32).at[dst, src].add(gate)
    deg = jnp.zeros((n_pad, 1), jnp.float32).at[dst, 0].add(gate)
    deg_inv = jnp.where(deg > 0.0, 1.0 / jnp.maximum(deg, 1e-12), 0.0)
    return a.astype(jnp.bfloat16), deg_inv


def _pad2(a, rows, cols):
    return jnp.pad(a, ((0, rows - a.shape[0]), (0, cols - a.shape[1])))


@jax.jit
def temporal_gnn_forward(params, x, edge_index, timestamps, time_diffs,
                         unique_edges, timestamp_lists):
    del timestamps, unique_edges  # unused (see TODO above)
    n, c = x.shape
    t = timestamp_lists.shape[1]
    td = params["enc_w"].shape[1]
    h = params["layers"][0]["w1z"].shape[1]

    # pad every lane-axis dim to a multiple of 128; the tiny timestamp contraction
    # dim only to a multiple of 8 (it maps to sublanes of the weight tile)
    n_pad = _round_up(max(n, _LANE), _LANE)
    c_pad = _round_up(max(c, _LANE), _LANE)
    td_pad = _round_up(max(td, _LANE), _LANE)
    h_pad = _round_up(max(h, _LANE), _LANE)
    t_pad = _round_up(max(t, 8), 8)
    cat_pad = 2 * c_pad + td_pad

    # row / contraction tile prefs; shrink to fit n_pad
    tm = _pick_tile(n_pad, 512)
    tk = _pick_tile(n_pad, 2048)
    # keep the K-side z VMEM-resident when it is small (<= 8 MiB, i.e. <= 16 MiB
    # even if the pipeline double-buffers it)
    zk_resident = (n_pad * c_pad * 2) <= (8 * 2 ** 20)
    vmem_limit = _vmem_limit_bytes(tm, tk, n_pad, c_pad, td_pad, h_pad,
                                   cat_pad, zk_resident)

    x_pad = _pad2(x.astype(jnp.float32), n_pad, c_pad)
    ts_pad = _pad2(timestamp_lists.astype(jnp.float32), n_pad, t_pad)
    enc_w = _pad2(params["enc_w"], t_pad, td_pad)
    enc_b = _pad2(params["enc_b"], 1, td_pad)

    # temporal encoder (Pallas, row-tiled), bf16 output feeds the fused epilogue
    temporal_features = _encode_temporal(ts_pad, enc_w, enc_b, tm)

    a_bf16, deg_inv = _build_time_gated_adjacency(edge_index, time_diffs, n_pad)

    z_f32 = x_pad
    z_bf16 = x_pad.astype(jnp.bfloat16)
    for lp in params["layers"]:
        w1_cat = jnp.concatenate(
            [_pad2(lp["w1z"], c_pad, h_pad),
             _pad2(lp["w1a"], c_pad, h_pad),
             _pad2(lp["w1t"], td_pad, h_pad)], axis=0).astype(jnp.bfloat16)
        lpp = {
            "w1": w1_cat,
            "b1": _pad2(lp["b1"], 1, h_pad),
            "w2": _pad2(lp["w2"], h_pad, c_pad).astype(jnp.bfloat16),
            "b2": _pad2(lp["b2"], 1, c_pad),
        }
        z_f32, z_bf16 = _layer_forward(a_bf16, deg_inv, z_f32, z_bf16,
                                       temporal_features, lpp,
                                       tm, tk, zk_resident, vmem_limit)
    return z_f32[:n, :c]


# ---------------------------------------------------------------------------
if __name__ == "__main__":
    # small deterministic problem
    N = 16                     # nodes
    IN_CHANNELS = 8
    HIDDEN = 32
    TD = 8                     # temporal_features_dim
    T = 4                      # timestamps per node
    E = 40                     # edges
    NUM_LAYERS = 2

    key = jax.random.PRNGKey(0)
    k_param, k_x, k_ei, k_ts, k_dt, k_tl = jax.random.split(key, 6)

    params = init_params(k_param, IN_CHANNELS, HIDDEN, TD, NUM_LAYERS, T)

    x = jax.random.normal(k_x, (N, IN_CHANNELS), jnp.float32)
    edge_index = jax.random.randint(k_ei, (2, E), 0, N, dtype=jnp.int32)
    timestamps = jax.random.uniform(k_ts, (E,), jnp.float32, 0.0, 10.0)
    time_diffs = jax.random.uniform(k_dt, (E,), jnp.float32, 0.0, 5.0)
    unique_edges = edge_index  # placeholder with matching shape
    timestamp_lists = jax.random.uniform(k_tl, (N, T), jnp.float32, 0.0, 10.0)

    out = temporal_gnn_forward(params, x, edge_index, timestamps, time_diffs,
                               unique_edges, timestamp_lists)
    jax.block_until_ready(out)
    assert out.shape == (N, IN_CHANNELS) and out.dtype == jnp.float32
    print("KERNEL_OK")
</pallas_src>

<mosaic_0001>
module attributes {stable_mosaic.version = 11 : i64} {
  func.func private @main(%arg0: i32) attributes {dimension_semantics = [#tpu.dimension_semantics<core_parallel>], iteration_bounds = array<i64: 2>, tpu.core_type = #tpu.core_type<sc_scalar_subcore>, window_params = []} {
    return
  }
}

module attributes {stable_mosaic.version = 11 : i64} {
  func.func private @main(%arg0: i32) attributes {dimension_semantics = [#tpu.dimension_semantics<core_parallel>], iteration_bounds = array<i64: 2>, tpu.core_type = #tpu.core_type<sc_scalar_subcore>, window_params = []} {
    return
  }
}

module attributes {stable_mosaic.version = 11 : i64} {
  func.func @_temporal_encoder_kernel(%arg0: i32, %arg1: memref<128x8xf32, #tpu.memory_space<vmem>>, %arg2: memref<8x128xf32, #tpu.memory_space<vmem>>, %arg3: memref<1x128xf32, #tpu.memory_space<vmem>>, %arg4: memref<128x128xbf16, #tpu.memory_space<vmem>>) attributes {dimension_semantics = [#tpu.dimension_semantics<parallel>], iteration_bounds = array<i64: 1>, scalar_prefetch = 0 : i64, scratch_operands = 0 : i64, tpu.core_type = #tpu.core_type<tc>, window_params = [{transform_indices = @transform_0, window_bounds = array<i64: 128, 8>}, {pipeline_mode = #tpu.pipeline_mode<synchronous>, transform_indices = @transform_1, window_bounds = array<i64: 8, 128>}, {pipeline_mode = #tpu.pipeline_mode<synchronous>, transform_indices = @transform_2, window_bounds = array<i64: 1, 128>}, {transform_indices = @transform_3, window_bounds = array<i64: 128, 128>}]} {
    %c0 = arith.constant 0 : index
    %c0_0 = arith.constant 0 : index
    %0 = vector.load %arg1[%c0, %c0_0] : memref<128x8xf32, #tpu.memory_space<vmem>>, vector<128x8xf32>
    %c0_1 = arith.constant 0 : index
    %c0_2 = arith.constant 0 : index
    %1 = vector.load %arg2[%c0_1, %c0_2] : memref<8x128xf32, #tpu.memory_space<vmem>>, vector<8x128xf32>
    %cst = arith.constant dense<0.000000e+00> : vector<128x128xf32>
    %2 = tpu.matmul %0, %1, %cst {dimension_numbers = #tpu.dot_dimension_numbers<[1], [0], [0], [1], [0, 0, 1, 1], [], []>} : vector<128x8xf32>, vector<8x128xf32>, vector<128x128xf32> -> vector<128x128xf32>
    %c0_3 = arith.constant 0 : index
    %c0_4 = arith.constant 0 : index
    %3 = vector.load %arg3[%c0_3, %c0_4] : memref<1x128xf32, #tpu.memory_space<vmem>>, vector<1x128xf32>
    %4 = vector.broadcast %3 : vector<1x128xf32> to vector<128x128xf32>
    %5 = arith.addf %2, %4 : vector<128x128xf32>
    %cst_5 = arith.constant 0.000000e+00 : f32
    %6 = vector.broadcast %cst_5 : f32 to vector<128x128xf32>
    %7 = arith.maximumf %5, %6 : vector<128x128xf32>
    %8 = arith.truncf %7 : vector<128x128xf32> to vector<128x128xbf16>
    %c0_6 = arith.constant 0 : index
    %c0_7 = arith.constant 0 : index
    %9 = vector.load %arg4[%c0_6, %c0_7] : memref<128x128xbf16, #tpu.memory_space<vmem>>, vector<128x128xbf16>
    tpu.vector_store %arg4[%c0_6, %c0_7], %8 {strides = array<i32>} : memref<128x128xbf16, #tpu.memory_space<vmem>>, vector<128x128xbf16>,
    return
  }
  func.func @transform_0(%arg0: i32) -> (i32, i32) {
    %c0_i32 = arith.constant 0 : i32
    %c0_i32_0 = arith.constant 0 : i32
    return %arg0, %c0_i32 : i32, i32
  }
  func.func @transform_1(%arg0: i32) -> (i32, i32) {
    %c0_i32 = arith.constant 0 : i32
    %c0_i32_0 = arith.constant 0 : i32
    %c0_i32_1 = arith.constant 0 : i32
    return %c0_i32, %c0_i32_0 : i32, i32
  }
  func.func @transform_2(%arg0: i32) -> (i32, i32) {
    %c0_i32 = arith.constant 0 : i32
    %c0_i32_0 = arith.constant 0 : i32
    %c0_i32_1 = arith.constant 0 : i32
    return %c0_i32, %c0_i32_0 : i32, i32
  }
  func.func @transform_3(%arg0: i32) -> (i32, i32) {
    %c0_i32 = arith.constant 0 : i32
    %c0_i32_0 = arith.constant 0 : i32
    return %arg0, %c0_i32 : i32, i32
  }
}

module attributes {stable_mosaic.version = 11 : i64} {
  func.func @_layer_kernel(%arg0: i32, %arg1: i32, %arg2: memref<128x128xbf16, #tpu.memory_space<vmem>>, %arg3: memref<128x128xbf16, #tpu.memory_space<vmem>>, %arg4: memref<128x128xf32, #tpu.memory_space<vmem>>, %arg5: memref<128x1xf32, #tpu.memory_space<vmem>>, %arg6: memref<128x128xbf16, #tpu.memory_space<vmem>>, %arg7: memref<384x128xbf16, #tpu.memory_space<vmem>>, %arg8: memref<1x128xf32, #tpu.memory_space<vmem>>, %arg9: memref<128x128xbf16, #tpu.memory_space<vmem>>, %arg10: memref<1x128xf32, #tpu.memory_space<vmem>>, %arg11: memref<128x128xf32, #tpu.memory_space<vmem>>, %arg12: memref<128x128xbf16, #tpu.memory_space<vmem>>, %arg13: memref<128x128xf32, #tpu.memory_space<vmem>>, %arg14: memref<128x384xbf16, #tpu.memory_space<vmem>>) attributes {dimension_semantics = [#tpu.dimension_semantics<parallel>, #tpu.dimension_semantics<arbitrary>], iteration_bounds = array<i64: 1, 1>, scalar_prefetch = 0 : i64, scratch_operands = 2 : i64, tpu.core_type = #tpu.core_type<tc>, window_params = [{transform_indices = @transform_0, window_bounds = array<i64: 128, 128>}, {pipeline_mode = #tpu.pipeline_mode<synchronous>, transform_indices = @transform_1, window_bounds = array<i64: 128, 128>}, {transform_indices = @transform_2, window_bounds = array<i64: 128, 128>}, {transform_indices = @transform_3, window_bounds = array<i64: 128, 1>}, {transform_indices = @transform_4, window_bounds = array<i64: 128, 128>}, {pipeline_mode = #tpu.pipeline_mode<synchronous>, transform_indices = @transform_5, window_bounds = array<i64: 384, 128>}, {pipeline_mode = #tpu.pipeline_mode<synchronous>, transform_indices = @transform_6, window_bounds = array<i64: 1, 128>}, {pipeline_mode = #tpu.pipeline_mode<synchronous>, transform_indices = @transform_7, window_bounds = array<i64: 128, 128>}, {pipeline_mode = #tpu.pipeline_mode<synchronous>, transform_indices = @transform_8, window_bounds = array<i64: 1, 128>}, {transform_indices = @transform_9, window_bounds = array<i64: 128, 128>}, {transform_indices = @transform_10, window_bounds = array<i64: 128, 128>}]} {
    %c0_i32 = arith.constant 0 : i32
    %0 = arith.cmpi eq, %arg1, %c0_i32 : i32
    %1 = arith.extui %0 : i1 to i32
    %c0_i32_0 = arith.constant 0 : i32
    %2 = arith.cmpi ne, %1, %c0_i32_0 : i32
    scf.if %2 {
      %cst_9 = arith.constant 0.000000e+00 : f32
      %15 = vector.broadcast %cst_9 : f32 to vector<128x128xf32>
      %c0_10 = arith.constant 0 : index
      %c0_11 = arith.constant 0 : index
      %16 = vector.load %arg13[%c0_10, %c0_11] : memref<128x128xf32, #tpu.memory_space<vmem>>, vector<128x128xf32>
      tpu.vector_store %arg13[%c0_10, %c0_11], %15 {strides = array<i32>} : memref<128x128xf32, #tpu.memory_space<vmem>>, vector<128x128xf32>,
    } else {
    }
    %c128_i32 = arith.constant 128 : i32
    %3 = arith.muli %arg1, %c128_i32 : i32
    %4 = tpu.assume_multiple %3, 128 : i32
    %5 = arith.index_cast %4 : i32 to index
    %c0 = arith.constant 0 : index
    %6 = vector.load %arg3[%5, %c0] : memref<128x128xbf16, #tpu.memory_space<vmem>>, vector<128x128xbf16>
    %c0_1 = arith.constant 0 : index
    %c0_2 = arith.constant 0 : index
    %7 = vector.load %arg13[%c0_1, %c0_2] : memref<128x128xf32, #tpu.memory_space<vmem>>, vector<128x128xf32>
    %c0_3 = arith.constant 0 : index
    %c0_4 = arith.constant 0 : index
    %8 = vector.load %arg2[%c0_3, %c0_4] : memref<128x128xbf16, #tpu.memory_space<vmem>>, vector<128x128xbf16>
    %cst = arith.constant dense<0.000000e+00> : vector<128x128xf32>
    %9 = tpu.matmul %8, %6, %cst {dimension_numbers = #tpu.dot_dimension_numbers<[1], [0], [0], [1], [0, 0, 1, 1], [], []>} : vector<128x128xbf16>, vector<128x128xbf16>, vector<128x128xf32> -> vector<128x128xf32>
    %10 = arith.addf %7, %9 : vector<128x128xf32>
    %c0_5 = arith.constant 0 : index
    %c0_6 = arith.constant 0 : index
    %11 = vector.load %arg13[%c0_5, %c0_6] : memref<128x128xf32, #tpu.memory_space<vmem>>, vector<128x128xf32>
    tpu.vector_store %arg13[%c0_5, %c0_6], %10 {strides = array<i32>} : memref<128x128xf32, #tpu.memory_space<vmem>>, vector<128x128xf32>,
    %c0_i32_7 = arith.constant 0 : i32
    %12 = arith.cmpi eq, %arg1, %c0_i32_7 : i32
    %13 = arith.extui %12 : i1 to i32
    %c0_i32_8 = arith.constant 0 : i32
    %14 = arith.cmpi ne, %13, %c0_i32_8 : i32
    scf.if %14 {
      %c0_9 = arith.constant 0 : index
      %c0_10 = arith.constant 0 : index
      %15 = vector.load %arg4[%c0_9, %c0_10] : memref<128x128xf32, #tpu.memory_space<vmem>>, vector<128x128xf32>
      %c0_11 = arith.constant 0 : index
      %c0_12 = arith.constant 0 : index
      %16 = vector.load %arg13[%c0_11, %c0_12] : memref<128x128xf32, #tpu.memory_space<vmem>>, vector<128x128xf32>
      %c0_13 = arith.constant 0 : index
      %c0_14 = arith.constant 0 : index
      %17 = vector.load %arg5[%c0_13, %c0_14] : memref<128x1xf32, #tpu.memory_space<vmem>>, vector<128x1xf32>
      %18 = vector.broadcast %17 : vector<128x1xf32> to vector<128x128xf32>
      %19 = arith.mulf %16, %18 : vector<128x128xf32>
      %20 = arith.truncf %15 : vector<128x128xf32> to vector<128x128xbf16>
      %c0_15 = arith.constant 0 : index
      %c0_16 = arith.constant 0 : index
      %21 = vector.load %arg14[%c0_15, %c0_16] : memref<128x384xbf16, #tpu.memory_space<vmem>>, vector<128x128xbf16>
      tpu.vector_store %arg14[%c0_15, %c0_16], %20 {strides = array<i32>} : memref<128x384xbf16, #tpu.memory_space<vmem>>, vector<128x128xbf16>,
      %22 = arith.truncf %19 : vector<128x128xf32> to vector<128x128xbf16>
      %c0_17 = arith.constant 0 : index
      %c128 = arith.constant 128 : index
      %23 = vector.load %arg14[%c0_17, %c128] : memref<128x384xbf16, #tpu.memory_space<vmem>>, vector<128x128xbf16>
      tpu.vector_store %arg14[%c0_17, %c128], %22 {strides = array<i32>} : memref<128x384xbf16, #tpu.memory_space<vmem>>, vector<128x128xbf16>,
      %c0_18 = arith.constant 0 : index
      %c0_19 = arith.constant 0 : index
      %24 = vector.load %arg6[%c0_18, %c0_19] : memref<128x128xbf16, #tpu.memory_space<vmem>>, vector<128x128xbf16>
      %c0_20 = arith.constant 0 : index
      %c256 = arith.constant 256 : index
      %25 = vector.load %arg14[%c0_20, %c256] : memref<128x384xbf16, #tpu.memory_space<vmem>>, vector<128x128xbf16>
      tpu.vector_store %arg14[%c0_20, %c256], %24 {strides = array<i32>} : memref<128x384xbf16, #tpu.memory_space<vmem>>, vector<128x128xbf16>,
      %c0_21 = arith.constant 0 : index
      %c0_22 = arith.constant 0 : index
      %26 = vector.load %arg14[%c0_21, %c0_22] : memref<128x384xbf16, #tpu.memory_space<vmem>>, vector<128x384xbf16>
      %c0_23 = arith.constant 0 : index
      %c0_24 = arith.constant 0 : index
      %27 = vector.load %arg7[%c0_23, %c0_24] : memref<384x128xbf16, #tpu.memory_space<vmem>>, vector<384x128xbf16>
      %cst_25 = arith.constant dense<0.000000e+00> : vector<128x128xf32>
      %28 = tpu.matmul %26, %27, %cst_25 {dimension_numbers = #tpu.dot_dimension_numbers<[1], [0], [0], [1], [0, 0, 1, 1], [], []>} : vector<128x384xbf16>, vector<384x128xbf16>, vector<128x128xf32> -> vector<128x128xf32>
      %c0_26 = arith.constant 0 : index
      %c0_27 = arith.constant 0 : index
      %29 = vector.load %arg8[%c0_26, %c0_27] : memref<1x128xf32, #tpu.memory_space<vmem>>, vector<1x128xf32>
      %30 = vector.broadcast %29 : vector<1x128xf32> to vector<128x128xf32>
      %31 = arith.addf %28, %30 : vector<128x128xf32>
      %cst_28 = arith.constant 0.000000e+00 : f32
      %32 = vector.broadcast %cst_28 : f32 to vector<128x128xf32>
      %33 = arith.maximumf %31, %32 : vector<128x128xf32>
      %34 = arith.truncf %33 : vector<128x128xf32> to vector<128x128xbf16>
      %c0_29 = arith.constant 0 : index
      %c0_30 = arith.constant 0 : index
      %35 = vector.load %arg9[%c0_29, %c0_30] : memref<128x128xbf16, #tpu.memory_space<vmem>>, vector<128x128xbf16>
      %cst_31 = arith.constant dense<0.000000e+00> : vector<128x128xf32>
      %36 = tpu.matmul %34, %35, %cst_31 {dimension_numbers = #tpu.dot_dimension_numbers<[1], [0], [0], [1], [0, 0, 1, 1], [], []>} : vector<128x128xbf16>, vector<128x128xbf16>, vector<128x128xf32> -> vector<128x128xf32>
      %37 = arith.addf %15, %36 : vector<128x128xf32>
      %c0_32 = arith.constant 0 : index
      %c0_33 = arith.constant 0 : index
      %38 = vector.load %arg10[%c0_32, %c0_33] : memref<1x128xf32, #tpu.memory_space<vmem>>, vector<1x128xf32>
      %39 = vector.broadcast %38 : vector<1x128xf32> to vector<128x128xf32>
      %40 = arith.addf %37, %39 : vector<128x128xf32>
      %c0_34 = arith.constant 0 : index
      %c0_35 = arith.constant 0 : index
      %41 = vector.load %arg11[%c0_34, %c0_35] : memref<128x128xf32, #tpu.memory_space<vmem>>, vector<128x128xf32>
      tpu.vector_store %arg11[%c0_34, %c0_35], %40 {strides = array<i32>} : memref<128x128xf32, #tpu.memory_space<vmem>>, vector<128x128xf32>,
      %42 = arith.truncf %40 : vector<128x128xf32> to vector<128x128xbf16>
      %c0_36 = arith.constant 0 : index
      %c0_37 = arith.constant 0 : index
      %43 = vector.load %arg12[%c0_36, %c0_37] : memref<128x128xbf16, #tpu.memory_space<vmem>>, vector<128x128xbf16>
      tpu.vector_store %arg12[%c0_36, %c0_37], %42 {strides = array<i32>} : memref<128x128xbf16, #tpu.memory_space<vmem>>, vector<128x128xbf16>,
    } else {
    }
    return
  }
  func.func @transform_0(%arg0: i32, %arg1: i32) -> (i32, i32) {
    %c0_i32 = arith.constant 0 : i32
    return %arg0, %arg1 : i32, i32
  }
  func.func @transform_1(%arg0: i32, %arg1: i32) -> (i32, i32) {
    %c0_i32 = arith.constant 0 : i32
    %c0_i32_0 = arith.constant 0 : i32
    %c0_i32_1 = arith.constant 0 : i32
    return %c0_i32, %c0_i32_0 : i32, i32
  }
  func.func @transform_2(%arg0: i32, %arg1: i32) -> (i32, i32) {
    %c0_i32 = arith.constant 0 : i32
    %c0_i32_0 = arith.constant 0 : i32
    return %arg0, %c0_i32 : i32, i32
  }
  func.func @transform_3(%arg0: i32, %arg1: i32) -> (i32, i32) {
    %c0_i32 = arith.constant 0 : i32
    %c0_i32_0 = arith.constant 0 : i32
    return %arg0, %c0_i32 : i32, i32
  }
  func.func @transform_4(%arg0: i32, %arg1: i32) -> (i32, i32) {
    %c0_i32 = arith.constant 0 : i32
    %c0_i32_0 = arith.constant 0 : i32
    return %arg0, %c0_i32 : i32, i32
  }
  func.func @transform_5(%arg0: i32, %arg1: i32) -> (i32, i32) {
    %c0_i32 = arith.constant 0 : i32
    %c0_i32_0 = arith.constant 0 : i32
    %c0_i32_1 = arith.constant 0 : i32
    return %c0_i32, %c0_i32_0 : i32, i32
  }
  func.func @transform_6(%arg0: i32, %arg1: i32) -> (i32, i32) {
    %c0_i32 = arith.constant 0 : i32
    %c0_i32_0 = arith.constant 0 : i32
    %c0_i32_1 = arith.constant 0 : i32
    return %c0_i32, %c0_i32_0 : i32, i32
  }
  func.func @transform_7(%arg0: i32, %arg1: i32) -> (i32, i32) {
    %c0_i32 = arith.constant 0 : i32
    %c0_i32_0 = arith.constant 0 : i32
    %c0_i32_1 = arith.constant 0 : i32
    return %c0_i32, %c0_i32_0 : i32, i32
  }
  func.func @transform_8(%arg0: i32, %arg1: i32) -> (i32, i32) {
    %c0_i32 = arith.constant 0 : i32
    %c0_i32_0 = arith.constant 0 : i32
    %c0_i32_1 = arith.constant 0 : i32
    return %c0_i32, %c0_i32_0 : i32, i32
  }
  func.func @transform_9(%arg0: i32, %arg1: i32) -> (i32, i32) {
    %c0_i32 = arith.constant 0 : i32
    %c0_i32_0 = arith.constant 0 : i32
    return %arg0, %c0_i32 : i32, i32
  }
  func.func @transform_10(%arg0: i32, %arg1: i32) -> (i32, i32) {
    %c0_i32 = arith.constant 0 : i32
    %c0_i32_0 = arith.constant 0 : i32
    return %arg0, %c0_i32 : i32, i32
  }
}

module attributes {stable_mosaic.version = 11 : i64} {
  func.func @_layer_kernel(%arg0: i32, %arg1: i32, %arg2: memref<128x128xbf16, #tpu.memory_space<vmem>>, %arg3: memref<128x128xbf16, #tpu.memory_space<vmem>>, %arg4: memref<128x128xf32, #tpu.memory_space<vmem>>, %arg5: memref<128x1xf32, #tpu.memory_space<vmem>>, %arg6: memref<128x128xbf16, #tpu.memory_space<vmem>>, %arg7: memref<384x128xbf16, #tpu.memory_space<vmem>>, %arg8: memref<1x128xf32, #tpu.memory_space<vmem>>, %arg9: memref<128x128xbf16, #tpu.memory_space<vmem>>, %arg10: memref<1x128xf32, #tpu.memory_space<vmem>>, %arg11: memref<128x128xf32, #tpu.memory_space<vmem>>, %arg12: memref<128x128xbf16, #tpu.memory_space<vmem>>, %arg13: memref<128x128xf32, #tpu.memory_space<vmem>>, %arg14: memref<128x384xbf16, #tpu.memory_space<vmem>>) attributes {dimension_semantics = [#tpu.dimension_semantics<parallel>, #tpu.dimension_semantics<arbitrary>], iteration_bounds = array<i64: 1, 1>, scalar_prefetch = 0 : i64, scratch_operands = 2 : i64, tpu.core_type = #tpu.core_type<tc>, window_params = [{transform_indices = @transform_0, window_bounds = array<i64: 128, 128>}, {pipeline_mode = #tpu.pipeline_mode<synchronous>, transform_indices = @transform_1, window_bounds = array<i64: 128, 128>}, {transform_indices = @transform_2, window_bounds = array<i64: 128, 128>}, {transform_indices = @transform_3, window_bounds = array<i64: 128, 1>}, {transform_indices = @transform_4, window_bounds = array<i64: 128, 128>}, {pipeline_mode = #tpu.pipeline_mode<synchronous>, transform_indices = @transform_5, window_bounds = array<i64: 384, 128>}, {pipeline_mode = #tpu.pipeline_mode<synchronous>, transform_indices = @transform_6, window_bounds = array<i64: 1, 128>}, {pipeline_mode = #tpu.pipeline_mode<synchronous>, transform_indices = @transform_7, window_bounds = array<i64: 128, 128>}, {pipeline_mode = #tpu.pipeline_mode<synchronous>, transform_indices = @transform_8, window_bounds = array<i64: 1, 128>}, {transform_indices = @transform_9, window_bounds = array<i64: 128, 128>}, {transform_indices = @transform_10, window_bounds = array<i64: 128, 128>}]} {
    %c0_i32 = arith.constant 0 : i32
    %0 = arith.cmpi eq, %arg1, %c0_i32 : i32
    %1 = arith.extui %0 : i1 to i32
    %c0_i32_0 = arith.constant 0 : i32
    %2 = arith.cmpi ne, %1, %c0_i32_0 : i32
    scf.if %2 {
      %cst_9 = arith.constant 0.000000e+00 : f32
      %15 = vector.broadcast %cst_9 : f32 to vector<128x128xf32>
      %c0_10 = arith.constant 0 : index
      %c0_11 = arith.constant 0 : index
      %16 = vector.load %arg13[%c0_10, %c0_11] : memref<128x128xf32, #tpu.memory_space<vmem>>, vector<128x128xf32>
      tpu.vector_store %arg13[%c0_10, %c0_11], %15 {strides = array<i32>} : memref<128x128xf32, #tpu.memory_space<vmem>>, vector<128x128xf32>,
    } else {
    }
    %c128_i32 = arith.constant 128 : i32
    %3 = arith.muli %arg1, %c128_i32 : i32
    %4 = tpu.assume_multiple %3, 128 : i32
    %5 = arith.index_cast %4 : i32 to index
    %c0 = arith.constant 0 : index
    %6 = vector.load %arg3[%5, %c0] : memref<128x128xbf16, #tpu.memory_space<vmem>>, vector<128x128xbf16>
    %c0_1 = arith.constant 0 : index
    %c0_2 = arith.constant 0 : index
    %7 = vector.load %arg13[%c0_1, %c0_2] : memref<128x128xf32, #tpu.memory_space<vmem>>, vector<128x128xf32>
    %c0_3 = arith.constant 0 : index
    %c0_4 = arith.constant 0 : index
    %8 = vector.load %arg2[%c0_3, %c0_4] : memref<128x128xbf16, #tpu.memory_space<vmem>>, vector<128x128xbf16>
    %cst = arith.constant dense<0.000000e+00> : vector<128x128xf32>
    %9 = tpu.matmul %8, %6, %cst {dimension_numbers = #tpu.dot_dimension_numbers<[1], [0], [0], [1], [0, 0, 1, 1], [], []>} : vector<128x128xbf16>, vector<128x128xbf16>, vector<128x128xf32> -> vector<128x128xf32>
    %10 = arith.addf %7, %9 : vector<128x128xf32>
    %c0_5 = arith.constant 0 : index
    %c0_6 = arith.constant 0 : index
    %11 = vector.load %arg13[%c0_5, %c0_6] : memref<128x128xf32, #tpu.memory_space<vmem>>, vector<128x128xf32>
    tpu.vector_store %arg13[%c0_5, %c0_6], %10 {strides = array<i32>} : memref<128x128xf32, #tpu.memory_space<vmem>>, vector<128x128xf32>,
    %c0_i32_7 = arith.constant 0 : i32
    %12 = arith.cmpi eq, %arg1, %c0_i32_7 : i32
    %13 = arith.extui %12 : i1 to i32
    %c0_i32_8 = arith.constant 0 : i32
    %14 = arith.cmpi ne, %13, %c0_i32_8 : i32
    scf.if %14 {
      %c0_9 = arith.constant 0 : index
      %c0_10 = arith.constant 0 : index
      %15 = vector.load %arg4[%c0_9, %c0_10] : memref<128x128xf32, #tpu.memory_space<vmem>>, vector<128x128xf32>
      %c0_11 = arith.constant 0 : index
      %c0_12 = arith.constant 0 : index
      %16 = vector.load %arg13[%c0_11, %c0_12] : memref<128x128xf32, #tpu.memory_space<vmem>>, vector<128x128xf32>
      %c0_13 = arith.constant 0 : index
      %c0_14 = arith.constant 0 : index
      %17 = vector.load %arg5[%c0_13, %c0_14] : memref<128x1xf32, #tpu.memory_space<vmem>>, vector<128x1xf32>
      %18 = vector.broadcast %17 : vector<128x1xf32> to vector<128x128xf32>
      %19 = arith.mulf %16, %18 : vector<128x128xf32>
      %20 = arith.truncf %15 : vector<128x128xf32> to vector<128x128xbf16>
      %c0_15 = arith.constant 0 : index
      %c0_16 = arith.constant 0 : index
      %21 = vector.load %arg14[%c0_15, %c0_16] : memref<128x384xbf16, #tpu.memory_space<vmem>>, vector<128x128xbf16>
      tpu.vector_store %arg14[%c0_15, %c0_16], %20 {strides = array<i32>} : memref<128x384xbf16, #tpu.memory_space<vmem>>, vector<128x128xbf16>,
      %22 = arith.truncf %19 : vector<128x128xf32> to vector<128x128xbf16>
      %c0_17 = arith.constant 0 : index
      %c128 = arith.constant 128 : index
      %23 = vector.load %arg14[%c0_17, %c128] : memref<128x384xbf16, #tpu.memory_space<vmem>>, vector<128x128xbf16>
      tpu.vector_store %arg14[%c0_17, %c128], %22 {strides = array<i32>} : memref<128x384xbf16, #tpu.memory_space<vmem>>, vector<128x128xbf16>,
      %c0_18 = arith.constant 0 : index
      %c0_19 = arith.constant 0 : index
      %24 = vector.load %arg6[%c0_18, %c0_19] : memref<128x128xbf16, #tpu.memory_space<vmem>>, vector<128x128xbf16>
      %c0_20 = arith.constant 0 : index
      %c256 = arith.constant 256 : index
      %25 = vector.load %arg14[%c0_20, %c256] : memref<128x384xbf16, #tpu.memory_space<vmem>>, vector<128x128xbf16>
      tpu.vector_store %arg14[%c0_20, %c256], %24 {strides = array<i32>} : memref<128x384xbf16, #tpu.memory_space<vmem>>, vector<128x128xbf16>,
      %c0_21 = arith.constant 0 : index
      %c0_22 = arith.constant 0 : index
      %26 = vector.load %arg14[%c0_21, %c0_22] : memref<128x384xbf16, #tpu.memory_space<vmem>>, vector<128x384xbf16>
      %c0_23 = arith.constant 0 : index
      %c0_24 = arith.constant 0 : index
      %27 = vector.load %arg7[%c0_23, %c0_24] : memref<384x128xbf16, #tpu.memory_space<vmem>>, vector<384x128xbf16>
      %cst_25 = arith.constant dense<0.000000e+00> : vector<128x128xf32>
      %28 = tpu.matmul %26, %27, %cst_25 {dimension_numbers = #tpu.dot_dimension_numbers<[1], [0], [0], [1], [0, 0, 1, 1], [], []>} : vector<128x384xbf16>, vector<384x128xbf16>, vector<128x128xf32> -> vector<128x128xf32>
      %c0_26 = arith.constant 0 : index
      %c0_27 = arith.constant 0 : index
      %29 = vector.load %arg8[%c0_26, %c0_27] : memref<1x128xf32, #tpu.memory_space<vmem>>, vector<1x128xf32>
      %30 = vector.broadcast %29 : vector<1x128xf32> to vector<128x128xf32>
      %31 = arith.addf %28, %30 : vector<128x128xf32>
      %cst_28 = arith.constant 0.000000e+00 : f32
      %32 = vector.broadcast %cst_28 : f32 to vector<128x128xf32>
      %33 = arith.maximumf %31, %32 : vector<128x128xf32>
      %34 = arith.truncf %33 : vector<128x128xf32> to vector<128x128xbf16>
      %c0_29 = arith.constant 0 : index
      %c0_30 = arith.constant 0 : index
      %35 = vector.load %arg9[%c0_29, %c0_30] : memref<128x128xbf16, #tpu.memory_space<vmem>>, vector<128x128xbf16>
      %cst_31 = arith.constant dense<0.000000e+00> : vector<128x128xf32>
      %36 = tpu.matmul %34, %35, %cst_31 {dimension_numbers = #tpu.dot_dimension_numbers<[1], [0], [0], [1], [0, 0, 1, 1], [], []>} : vector<128x128xbf16>, vector<128x128xbf16>, vector<128x128xf32> -> vector<128x128xf32>
      %37 = arith.addf %15, %36 : vector<128x128xf32>
      %c0_32 = arith.constant 0 : index
      %c0_33 = arith.constant 0 : index
      %38 = vector.load %arg10[%c0_32, %c0_33] : memref<1x128xf32, #tpu.memory_space<vmem>>, vector<1x128xf32>
      %39 = vector.broadcast %38 : vector<1x128xf32> to vector<128x128xf32>
      %40 = arith.addf %37, %39 : vector<128x128xf32>
      %c0_34 = arith.constant 0 : index
      %c0_35 = arith.constant 0 : index
      %41 = vector.load %arg11[%c0_34, %c0_35] : memref<128x128xf32, #tpu.memory_space<vmem>>, vector<128x128xf32>
      tpu.vector_store %arg11[%c0_34, %c0_35], %40 {strides = array<i32>} : memref<128x128xf32, #tpu.memory_space<vmem>>, vector<128x128xf32>,
      %42 = arith.truncf %40 : vector<128x128xf32> to vector<128x128xbf16>
      %c0_36 = arith.constant 0 : index
      %c0_37 = arith.constant 0 : index
      %43 = vector.load %arg12[%c0_36, %c0_37] : memref<128x128xbf16, #tpu.memory_space<vmem>>, vector<128x128xbf16>
      tpu.vector_store %arg12[%c0_36, %c0_37], %42 {strides = array<i32>} : memref<128x128xbf16, #tpu.memory_space<vmem>>, vector<128x128xbf16>,
    } else {
    }
    return
  }
  func.func @transform_0(%arg0: i32, %arg1: i32) -> (i32, i32) {
    %c0_i32 = arith.constant 0 : i32
    return %arg0, %arg1 : i32, i32
  }
  func.func @transform_1(%arg0: i32, %arg1: i32) -> (i32, i32) {
    %c0_i32 = arith.constant 0 : i32
    %c0_i32_0 = arith.constant 0 : i32
    %c0_i32_1 = arith.constant 0 : i32
    return %c0_i32, %c0_i32_0 : i32, i32
  }
  func.func @transform_2(%arg0: i32, %arg1: i32) -> (i32, i32) {
    %c0_i32 = arith.constant 0 : i32
    %c0_i32_0 = arith.constant 0 : i32
    return %arg0, %c0_i32 : i32, i32
  }
  func.func @transform_3(%arg0: i32, %arg1: i32) -> (i32, i32) {
    %c0_i32 = arith.constant 0 : i32
    %c0_i32_0 = arith.constant 0 : i32
    return %arg0, %c0_i32 : i32, i32
  }
  func.func @transform_4(%arg0: i32, %arg1: i32) -> (i32, i32) {
    %c0_i32 = arith.constant 0 : i32
    %c0_i32_0 = arith.constant 0 : i32
    return %arg0, %c0_i32 : i32, i32
  }
  func.func @transform_5(%arg0: i32, %arg1: i32) -> (i32, i32) {
    %c0_i32 = arith.constant 0 : i32
    %c0_i32_0 = arith.constant 0 : i32
    %c0_i32_1 = arith.constant 0 : i32
    return %c0_i32, %c0_i32_0 : i32, i32
  }
  func.func @transform_6(%arg0: i32, %arg1: i32) -> (i32, i32) {
    %c0_i32 = arith.constant 0 : i32
    %c0_i32_0 = arith.constant 0 : i32
    %c0_i32_1 = arith.constant 0 : i32
    return %c0_i32, %c0_i32_0 : i32, i32
  }
  func.func @transform_7(%arg0: i32, %arg1: i32) -> (i32, i32) {
    %c0_i32 = arith.constant 0 : i32
    %c0_i32_0 = arith.constant 0 : i32
    %c0_i32_1 = arith.constant 0 : i32
    return %c0_i32, %c0_i32_0 : i32, i32
  }
  func.func @transform_8(%arg0: i32, %arg1: i32) -> (i32, i32) {
    %c0_i32 = arith.constant 0 : i32
    %c0_i32_0 = arith.constant 0 : i32
    %c0_i32_1 = arith.constant 0 : i32
    return %c0_i32, %c0_i32_0 : i32, i32
  }
  func.func @transform_9(%arg0: i32, %arg1: i32) -> (i32, i32) {
    %c0_i32 = arith.constant 0 : i32
    %c0_i32_0 = arith.constant 0 : i32
    return %arg0, %c0_i32 : i32, i32
  }
  func.func @transform_10(%arg0: i32, %arg1: i32) -> (i32, i32) {
    %c0_i32 = arith.constant 0 : i32
    %c0_i32_0 = arith.constant 0 : i32
    return %arg0, %c0_i32 : i32, i32
  }
}

</mosaic_0001>

<llo_original>
// kernel: temporal_gnn_forward.3
$region0: #{temporal_gnn_forward.3}
  #allocation0 [shape = 'u32[]', space=smem, size = 0x4, offset = 0x4, fixed_abs, tag = 'smem constant byte address 0x4 - core index']
  #allocation1 [shape = 'u32[144,128]{1,0:T(1,128)}', space=vmem, size = 0x12000, scoped, tag = 'internal scratch']
  %s0 = inlined_call_operand.vmem [shape: f32[128,8], index: 0, kind: input, shape index: {}]
  %s1 = inlined_call_operand.vmem [shape: f32[8,128], index: 1, kind: input, shape index: {}]
  %s2 = inlined_call_operand.vmem [shape: f32[1,128], index: 2, kind: input, shape index: {}]
  %s3 = inlined_call_operand.vmem [shape: bf16[128,128], index: 3, kind: output, shape index: {}]
  %s4 = sld [smem:[#allocation0]]
  $region22: #{temporal_gnn_forward.3} parent=0
    _
  %s6 = ssub.s32 1, %s4
  %s7 = scalar_select 0, %s6, %s4
  // Predicated region
  $region2: #{temporal_gnn_forward.3} parent=0 // pred_check
    _
  $region3: #{temporal_gnn_forward.3} parent=0 // pred_check_branch
    %9 = sbr.rel (0) target = $region5
  $region4: #{temporal_gnn_forward.3} parent=0 // pred_region
    _
  $region5: #{temporal_gnn_forward.3} parent=0 // pred_fallthru
    _
  // Predicated region
  $region6: #{temporal_gnn_forward.3} parent=0 // pred_check
    _
  $region7: #{temporal_gnn_forward.3} parent=0 // pred_check_branch
    %11 = sbr.rel (0) target = $region9
  $region8: #{temporal_gnn_forward.3} parent=0 // pred_region
    _
  $region9: #{temporal_gnn_forward.3} parent=0 // pred_fallthru
    _
  // Predicated region
  $region10: #{temporal_gnn_forward.3} parent=0 // pred_check
    _
  $region11: #{temporal_gnn_forward.3} parent=0 // pred_check_branch
    %13 = sbr.rel (0) target = $region13
  $region12: #{temporal_gnn_forward.3} parent=0 // pred_region
    _
  $region13: #{temporal_gnn_forward.3} parent=0 // pred_fallthru
    _
  %v14 = vld [vmem:[%s0] sm:$0xff]
  %v15 = vld [vmem:[%s0 + $0x8] sm:$0xff]
  %v16 = vld [vmem:[%s0 + $0x10] sm:$0xff]
  %v17 = vld [vmem:[%s0 + $0x18] sm:$0xff]
  %v18 = vld [vmem:[%s0 + $0x20] sm:$0xff]
  %v19 = vld [vmem:[%s0 + $0x28] sm:$0xff]
  %v20 = vld [vmem:[%s0 + $0x30] sm:$0xff]
  %v21 = vld [vmem:[%s0 + $0x38] sm:$0xff]
  %v22 = vld [vmem:[%s0 + $0x40] sm:$0xff]
  %v23 = vld [vmem:[%s0 + $0x48] sm:$0xff]
  %v24 = vld [vmem:[%s0 + $0x50] sm:$0xff]
  %v25 = vld [vmem:[%s0 + $0x58] sm:$0xff]
  %v26 = vld [vmem:[%s0 + $0x60] sm:$0xff]
  %v27 = vld [vmem:[%s0 + $0x68] sm:$0xff]
  %v28 = vld [vmem:[%s0 + $0x70] sm:$0xff]
  %v29 = vld [vmem:[%s0 + $0x78] sm:$0xff]
  %v30 = vld [vmem:[%s1] sm:$0xff]
  %v31 = vld [vmem:[%s2] sm:$0x1]
  %v33 = vlaneseq
  %v34 = vshrl.u32 %v33, 7
  %v35 = vsub.s32 0, %v34
  %v36 = vrot.slane %v31, %v35
  %vm38 = vcmask 64512
  %v40 = vsel %vm38, %v14, 0
  %v43 = vsel %vm38, %v15, 0
  %v46 = vsel %vm38, %v16, 0
  %v49 = vsel %vm38, %v17, 0
  %v52 = vsel %vm38, %v18, 0
  %v55 = vsel %vm38, %v19, 0
  %v58 = vsel %vm38, %v20, 0
  %v61 = vsel %vm38, %v21, 0
  %v64 = vsel %vm38, %v22, 0
  %v67 = vsel %vm38, %v23, 0
  %v70 = vsel %vm38, %v24, 0
  %v73 = vsel %vm38, %v25, 0
  %v76 = vsel %vm38, %v26, 0
  %v79 = vsel %vm38, %v27, 0
  %v82 = vsel %vm38, %v28, 0
  %v85 = vsel %vm38, %v29, 0
  %87 = vmatprep.subr.mxu0 0.0
  %88 = vmatpush1.msra.mxu0 0.0
  %89 = vmatprep.subr.mxu0 0.0
  %90 = vmatpush1.msra.mxu0 0.0
  %91 = vmatprep.subr.mxu0 0.0
  %92 = vmatpush1.msra.mxu0 0.0
  %93 = vmatprep.subr.mxu0 0.0
  %94 = vmatpush1.msra.mxu0 0.0
  %95 = vmatprep.subr.mxu0 0.0
  %96 = vmatpush1.msra.mxu0 0.0
  %97 = vmatprep.subr.mxu0 0.0
  %98 = vmatpush1.msra.mxu0 0.0
  %99 = vmatprep.subr.mxu0 0.0
  %100 = vmatpush1.msra.mxu0 0.0
  %101 = vmatprep.subr.mxu0 0.0
  %102 = vmatpush1.msra.mxu0 0.0
  %103 = vmatprep.subr.mxu0 0.0
  %104 = vmatpush1.msra.mxu0 0.0
  %105 = vmatprep.subr.mxu0 0.0
  %106 = vmatpush1.msra.mxu0 0.0
  %107 = vmatprep.subr.mxu0 0.0
  %108 = vmatpush1.msra.mxu0 0.0
  %109 = vmatprep.subr.mxu0 0.0
  %110 = vmatpush1.msra.mxu0 0.0
  %111 = vmatprep.subr.mxu0 0.0
  %112 = vmatpush1.msra.mxu0 0.0
  %113 = vmatprep.subr.mxu0 0.0
  %114 = vmatpush1.msra.mxu0 0.0
  %115 = vmatprep.subr.mxu0 0.0
  %116 = vmatpush1.msra.mxu0 0.0
  %117 = vmatprep.subr.mxu0 0.0
  %118 = vmatpush1.msra.mxu0 %v30
  %119 = vmatprep.subr.mxu0 0.0
  %120 = vmatpush2.msra.mxu0 0.0
  %121 = vmatprep.subr.mxu0 0.0
  %122 = vmatpush2.msra.mxu0 0.0
  %123 = vmatprep.subr.mxu0 0.0
  %124 = vmatpush2.msra.mxu0 0.0
  %125 = vmatprep.subr.mxu0 0.0
  %126 = vmatpush2.msra.mxu0 0.0
  %127 = vmatprep.subr.mxu0 0.0
  %128 = vmatpush2.msra.mxu0 0.0
  %129 = vmatprep.subr.mxu0 0.0
  %130 = vmatpush2.msra.mxu0 0.0
  %131 = vmatprep.subr.mxu0 0.0
  %132 = vmatpush2.msra.mxu0 0.0
  %133 = vmatprep.subr.mxu0 0.0
  %134 = vmatpush2.msra.mxu0 0.0
  %135 = vmatprep.subr.mxu0 0.0
  %136 = vmatpush2.msra.mxu0 0.0
  %137 = vmatprep.subr.mxu0 0.0
  %138 = vmatpush2.msra.mxu0 0.0
  %139 = vmatprep.subr.mxu0 0.0
  %140 = vmatpush2.msra.mxu0 0.0
  %141 = vmatprep.subr.mxu0 0.0
  %142 = vmatpush2.msra.mxu0 0.0
  %143 = vmatprep.subr.mxu0 0.0
  %144 = vmatpush2.msra.mxu0 0.0
  %145 = vmatprep.subr.mxu0 0.0
  %146 = vmatpush2.msra.mxu0 0.0
  %147 = vmatprep.subr.mxu0 0.0
  %148 = vmatpush2.msra.mxu0 0.0
  %149 = vmatprep.subr.mxu0 0.0
  %150 = vmatpush2.msra.mxu0 0.0
  %151 = vmatprep.mubr.f32.mxu0 0.0
  %152 = vmatmul.mubr.f32.gmra.mxu0 %v40
  %v153 = vpop.f32.mrf.mxu0
  %v154 = vadd.f32 %v36, %v153
  %v155 = vpop.f32.mrf.mxu0
  %156 = vmatprep.mubr.f32.mxu0 0.0
  %157 = vmatmul.mubr.f32.gmra.mxu0 %v43
  %v158 = vpop.f32.mrf.mxu0
  %v159 = vadd.f32 %v36, %v158
  %v160 = vpop.f32.mrf.mxu0
  %161 = vmatprep.mubr.f32.mxu0 0.0
  %162 = vmatmul.mubr.f32.gmra.mxu0 %v46
  %v163 = vpop.f32.mrf.mxu0
  %v164 = vadd.f32 %v36, %v163
  %v165 = vpop.f32.mrf.mxu0
  %166 = vmatprep.mubr.f32.mxu0 0.0
  %167 = vmatmul.mubr.f32.gmra.mxu0 %v49
  %v168 = vpop.f32.mrf.mxu0
  %v169 = vadd.f32 %v36, %v168
  %v170 = vpop.f32.mrf.mxu0
  %171 = vmatprep.mubr.f32.mxu0 0.0
  %172 = vmatmul.mubr.f32.gmra.mxu0 %v52
  %v173 = vpop.f32.mrf.mxu0
  %v174 = vadd.f32 %v36, %v173
  %v175 = vpop.f32.mrf.mxu0
  %176 = vmatprep.mubr.f32.mxu0 0.0
  %177 = vmatmul.mubr.f32.gmra.mxu0 %v55
  %v178 = vpop.f32.mrf.mxu0
  %v179 = vadd.f32 %v36, %v178
  %v180 = vpop.f32.mrf.mxu0
  %181 = vmatprep.mubr.f32.mxu0 0.0
  %182 = vmatmul.mubr.f32.gmra.mxu0 %v58
  %v183 = vpop.f32.mrf.mxu0
  %v184 = vadd.f32 %v36, %v183
  %v185 = vpop.f32.mrf.mxu0
  %186 = vmatprep.mubr.f32.mxu0 0.0
  %187 = vmatmul.mubr.f32.gmra.mxu0 %v61
  %v188 = vpop.f32.mrf.mxu0
  %v189 = vadd.f32 %v36, %v188
  %v190 = vpop.f32.mrf.mxu0
  %191 = vmatprep.mubr.f32.mxu0 0.0
  %192 = vmatmul.mubr.f32.gmra.mxu0 %v64
  %v193 = vpop.f32.mrf.mxu0
  %v194 = vadd.f32 %v36, %v193
  %v195 = vpop.f32.mrf.mxu0
  %196 = vmatprep.mubr.f32.mxu0 0.0
  %197 = vmatmul.mubr.f32.gmra.mxu0 %v67
  %v198 = vpop.f32.mrf.mxu0
  %v199 = vadd.f32 %v36, %v198
  %v200 = vpop.f32.mrf.mxu0
  %201 = vmatprep.mubr.f32.mxu0 0.0
  %202 = vmatmul.mubr.f32.gmra.mxu0 %v70
  %v203 = vpop.f32.mrf.mxu0
  %v204 = vadd.f32 %v36, %v203
  %v205 = vpop.f32.mrf.mxu0
  %206 = vmatprep.mubr.f32.mxu0 0.0
  %207 = vmatmul.mubr.f32.gmra.mxu0 %v73
  %v208 = vpop.f32.mrf.mxu0
  %v209 = vadd.f32 %v36, %v208
  %v210 = vpop.f32.mrf.mxu0
  %211 = vmatprep.mubr.f32.mxu0 0.0
  %212 = vmatmul.mubr.f32.gmra.mxu0 %v76
  %v213 = vpop.f32.mrf.mxu0
  %v214 = vadd.f32 %v36, %v213
  %v215 = vpop.f32.mrf.mxu0
  %216 = vmatprep.mubr.f32.mxu0 0.0
  %217 = vmatmul.mubr.f32.gmra.mxu0 %v79
  %v218 = vpop.f32.mrf.mxu0
  %v219 = vadd.f32 %v36, %v218
  %v220 = vpop.f32.mrf.mxu0
  %221 = vmatprep.mubr.f32.mxu0 0.0
  %222 = vmatmul.mubr.f32.gmra.mxu0 %v82
  %v223 = vpop.f32.mrf.mxu0
  %v224 = vadd.f32 %v36, %v223
  %v225 = vpop.f32.mrf.mxu0
  %226 = vmatprep.mubr.f32.mxu0 0.0
  %227 = vmatmul.mubr.f32.gmra.mxu0 %v85
  %v228 = vpop.f32.mrf.mxu0
  %v229 = vadd.f32 %v36, %v228
  %v230 = vpop.f32.mrf.mxu0
  %231 = vdwg.mxu0
  %v232 = vmax.f32 %v154, 0.0
  %v233 = vmax.f32 %v159, 0.0
  %v234 = vmax.f32 %v164, 0.0
  %v235 = vmax.f32 %v169, 0.0
  %v236 = vmax.f32 %v174, 0.0
  %v237 = vmax.f32 %v179, 0.0
  %v238 = vmax.f32 %v184, 0.0
  %v239 = vmax.f32 %v189, 0.0
  %v240 = vmax.f32 %v194, 0.0
  %v241 = vmax.f32 %v199, 0.0
  %v242 = vmax.f32 %v204, 0.0
  %v243 = vmax.f32 %v209, 0.0
  %v244 = vmax.f32 %v214, 0.0
  %v245 = vmax.f32 %v219, 0.0
  %v246 = vmax.f32 %v224, 0.0
  %v247 = vmax.f32 %v229, 0.0
  %v248 = vpack.c.bf16 %v233, %v232
  %v249 = vpack.c.bf16 %v235, %v234
  %v250 = vpack.c.bf16 %v237, %v236
  %v251 = vpack.c.bf16 %v239, %v238
  %v252 = vpack.c.bf16 %v241, %v240
  %v253 = vpack.c.bf16 %v243, %v242
  %v254 = vpack.c.bf16 %v245, %v244
  %v255 = vpack.c.bf16 %v247, %v246
  %v264 = vunpack.c.l.b16 %v248
  %v265 = vunpack.c.h.b16 %v248
  %v266 = vunpack.c.l.b16 %v249
  %v267 = vunpack.c.h.b16 %v249
  %v268 = vunpack.c.l.b16 %v250
  %v269 = vunpack.c.h.b16 %v250
  %v270 = vunpack.c.l.b16 %v251
  %v271 = vunpack.c.h.b16 %v251
  %v272 = vunpack.c.l.b16 %v252
  %v273 = vunpack.c.h.b16 %v252
  %v274 = vunpack.c.l.b16 %v253
  %v275 = vunpack.c.h.b16 %v253
  %v276 = vunpack.c.l.b16 %v254
  %v277 = vunpack.c.h.b16 %v254
  %v278 = vunpack.c.l.b16 %v255
  %v279 = vunpack.c.h.b16 %v255
  %v280 = vpack.c.b16 %v264, %v264
  %v281 = vpack.c.b16 %v265, %v265
  %v282 = vpack.c.b16 %v266, %v266
  %v283 = vpack.c.b16 %v267, %v267
  %v284 = vpack.c.b16 %v268, %v268
  %v285 = vpack.c.b16 %v269, %v269
  %v286 = vpack.c.b16 %v270, %v270
  %v287 = vpack.c.b16 %v271, %v271
  %v288 = vpack.c.b16 %v272, %v272
  %v289 = vpack.c.b16 %v273, %v273
  %v290 = vpack.c.b16 %v274, %v274
  %v291 = vpack.c.b16 %v275, %v275
  %v292 = vpack.c.b16 %v276, %v276
  %v293 = vpack.c.b16 %v277, %v277
  %v294 = vpack.c.b16 %v278, %v278
  %v295 = vpack.c.b16 %v279, %v279
  %312 = vst [vmem:[%s3] sm:$0xf] %v280
  %313 = vst [vmem:[%s3 + $0x4] sm:$0xf] %v281
  %314 = vst [vmem:[%s3 + $0x8] sm:$0xf] %v282
  %315 = vst [vmem:[%s3 + $0xc] sm:$0xf] %v283
  %316 = vst [vmem:[%s3 + $0x10] sm:$0xf] %v284
  %317 = vst [vmem:[%s3 + $0x14] sm:$0xf] %v285
  %318 = vst [vmem:[%s3 + $0x18] sm:$0xf] %v286
  %319 = vst [vmem:[%s3 + $0x1c] sm:$0xf] %v287
  %320 = vst [vmem:[%s3 + $0x20] sm:$0xf] %v288
  %321 = vst [vmem:[%s3 + $0x24] sm:$0xf] %v289
  %322 = vst [vmem:[%s3 + $0x28] sm:$0xf] %v290
  %323 = vst [vmem:[%s3 + $0x2c] sm:$0xf] %v291
  %324 = vst [vmem:[%s3 + $0x30] sm:$0xf] %v292
  %325 = vst [vmem:[%s3 + $0x34] sm:$0xf] %v293
  %326 = vst [vmem:[%s3 + $0x38] sm:$0xf] %v294
  %327 = vst [vmem:[%s3 + $0x3c] sm:$0xf] %v295
  // Predicated region
  $region14: #{temporal_gnn_forward.3} parent=0 // pred_check
    _
  $region15: #{temporal_gnn_forward.3} parent=0 // pred_check_branch
    %329 = sbr.rel (0) target = $region17
  $region16: #{temporal_gnn_forward.3} parent=0 // pred_region
    _
  $region17: #{temporal_gnn_forward.3} parent=0 // pred_fallthru
    _
  // Predicated region
  $region18: #{temporal_gnn_forward.3} parent=0 // pred_check
    _
  $region19: #{temporal_gnn_forward.3} parent=0 // pred_check_branch
    %331 = sbr.rel (0) target = $region21
  $region20: #{temporal_gnn_forward.3} parent=0 // pred_region
    _
  $region21: #{temporal_gnn_forward.3} parent=0 // pred_fallthru
    _

// kernel: temporal_gnn_forward.4
$region0: #{temporal_gnn_forward.4}
  #allocation0 [shape = 'u32[]', space=smem, size = 0x4, offset = 0x4, fixed_abs, tag = 'smem constant byte address 0x4 - core index']
  #allocation1 [shape = 'u32[144,128]{1,0:T(1,128)}', space=vmem, size = 0x12000, scoped, tag = 'internal scratch']
  #allocation2 [shape = 'f32[128,128]{1,0:T(8,128)}', space=vmem, size = 0x10000, scoped, tag = 'scratch operand']
  #allocation3 [shape = 'bf16[128,384]{1,0:T(8,128)(2,1)}', space=vmem, size = 0x18000, scoped, tag = 'scratch operand']
  %s0 = inlined_call_operand.vmem [shape: bf16[128,128], index: 0, kind: input, shape index: {}]
  %s1 = inlined_call_operand.vmem [shape: bf16[128,128], index: 1, kind: input, shape index: {}]
  %s2 = inlined_call_operand.vmem [shape: f32[128,128], index: 2, kind: input, shape index: {}, may-alias: {2,9}]
  %s3 = inlined_call_operand.vmem [shape: f32[128,1], index: 3, kind: input, shape index: {}]
  %s4 = inlined_call_operand.vmem [shape: bf16[128,128], index: 4, kind: input, shape index: {}]
  %s5 = inlined_call_operand.vmem [shape: bf16[384,128], index: 5, kind: input, shape index: {}]
  %s6 = inlined_call_operand.vmem [shape: f32[1,128], index: 6, kind: input, shape index: {}]
  %s7 = inlined_call_operand.vmem [shape: bf16[128,128], index: 7, kind: input, shape index: {}]
  %s8 = inlined_call_operand.vmem [shape: f32[1,128], index: 8, kind: input, shape index: {}]
  %s9 = inlined_call_operand.vmem [shape: f32[128,128], index: 9, kind: output, shape index: {0}, may-alias: {2,9}]
  %s10 = inlined_call_operand.vmem [shape: bf16[128,128], index: 10, kind: output, shape index: {1}]
  %11 = xla_tuple %s9, %s10
  %s12 = sld [smem:[#allocation0]]
  $region62: #{temporal_gnn_forward.4} parent=0
    _
  %s14 = ssub.s32 1, %s12
  %s15 = scalar_select 0, %s14, %s12
  // Predicated region
  $region2: #{temporal_gnn_forward.4} parent=0 // pred_check
    _
  $region3: #{temporal_gnn_forward.4} parent=0 // pred_check_branch
    %17 = sbr.rel (0) target = $region5
  $region4: #{temporal_gnn_forward.4} parent=0 // pred_region
    _
  $region5: #{temporal_gnn_forward.4} parent=0 // pred_fallthru
    _
  // Predicated region
  $region6: #{temporal_gnn_forward.4} parent=0 // pred_check
    _
  $region7: #{temporal_gnn_forward.4} parent=0 // pred_check_branch
    %19 = sbr.rel (0) target = $region9
  $region8: #{temporal_gnn_forward.4} parent=0 // pred_region
    _
  $region9: #{temporal_gnn_forward.4} parent=0 // pred_fallthru
    _
  // Predicated region
  $region10: #{temporal_gnn_forward.4} parent=0 // pred_check
    _
  $region11: #{temporal_gnn_forward.4} parent=0 // pred_check_branch
    %21 = sbr.rel (0) target = $region13
  $region12: #{temporal_gnn_forward.4} parent=0 // pred_region
    _
  $region13: #{temporal_gnn_forward.4} parent=0 // pred_fallthru
    _
  // Predicated region
  $region14: #{temporal_gnn_forward.4} parent=0 // pred_check
    _
  $region15: #{temporal_gnn_forward.4} parent=0 // pred_check_branch
    %23 = sbr.rel (0) target = $region17
  $region16: #{temporal_gnn_forward.4} parent=0 // pred_region
    _
  $region17: #{temporal_gnn_forward.4} parent=0 // pred_fallthru
    _
  // Predicated region
  $region18: #{temporal_gnn_forward.4} parent=0 // pred_check
    _
  $region19: #{temporal_gnn_forward.4} parent=0 // pred_check_branch
    %25 = sbr.rel (0) target = $region21
  $region20: #{temporal_gnn_forward.4} parent=0 // pred_region
    _
  $region21: #{temporal_gnn_forward.4} parent=0 // pred_fallthru
    _
  // Predicated region
  $region22: #{temporal_gnn_forward.4} parent=0 // pred_check
    _
  $region23: #{temporal_gnn_forward.4} parent=0 // pred_check_branch
    %27 = sbr.rel (0) target = $region25
  $region24: #{temporal_gnn_forward.4} parent=0 // pred_region
    _
  $region25: #{temporal_gnn_forward.4} parent=0 // pred_fallthru
    _
  // Predicated region
  $region26: #{temporal_gnn_forward.4} parent=0 // pred_check
    _
  $region27: #{temporal_gnn_forward.4} parent=0 // pred_check_branch
    %29 = sbr.rel (0) target = $region29
  $region28: #{temporal_gnn_forward.4} parent=0 // pred_region
    _
  $region29: #{temporal_gnn_forward.4} parent=0 // pred_fallthru
    _
  // Predicated region
  $region30: #{temporal_gnn_forward.4} parent=0 // pred_check
    _
  $region31: #{temporal_gnn_forward.4} parent=0 // pred_check_branch
    %31 = sbr.rel (0) target = $region33
  $region32: #{temporal_gnn_forward.4} parent=0 // pred_region
    _
  $region33: #{temporal_gnn_forward.4} parent=0 // pred_fallthru
    _
  // Predicated region
  $region34: #{temporal_gnn_forward.4} parent=0 // pred_check
    _
  $region35: #{temporal_gnn_forward.4} parent=0 // pred_check_branch
    %33 = sbr.rel (0) target = $region37
  $region36: #{temporal_gnn_forward.4} parent=0 // pred_region
    _
  $region37: #{temporal_gnn_forward.4} parent=0 // pred_fallthru
    _
  %p35 = scmp.eq.s32.totalorder 0, 0
  // Predicated region
  $region38: #{temporal_gnn_forward.4} parent=0 // pred_check
    %p36 = pneg %p35
  $region39: #{temporal_gnn_forward.4} parent=0 // pred_check_branch
    %38 = sbr.rel (%p36) target = $region41
  $region40: #{temporal_gnn_forward.4} parent=0 // pred_region
    %39 = vst [vmem:[#allocation2] sm:$0xff] 0.0
    %40 = vst [vmem:[#allocation2 + $0x8] sm:$0xff] 0.0
    %41 = vst [vmem:[#allocation2 + $0x10] sm:$0xff] 0.0
    %42 = vst [vmem:[#allocation2 + $0x18] sm:$0xff] 0.0
    %43 = vst [vmem:[#allocation2 + $0x20] sm:$0xff] 0.0
    %44 = vst [vmem:[#allocation2 + $0x28] sm:$0xff] 0.0
    %45 = vst [vmem:[#allocation2 + $0x30] sm:$0xff] 0.0
    %46 = vst [vmem:[#allocation2 + $0x38] sm:$0xff] 0.0
    %47 = vst [vmem:[#allocation2 + $0x40] sm:$0xff] 0.0
    %48 = vst [vmem:[#allocation2 + $0x48] sm:$0xff] 0.0
    %49 = vst [vmem:[#allocation2 + $0x50] sm:$0xff] 0.0
    %50 = vst [vmem:[#allocation2 + $0x58] sm:$0xff] 0.0
    %51 = vst [vmem:[#allocation2 + $0x60] sm:$0xff] 0.0
    %52 = vst [vmem:[#allocation2 + $0x68] sm:$0xff] 0.0
    %53 = vst [vmem:[#allocation2 + $0x70] sm:$0xff] 0.0
    %54 = vst [vmem:[#allocation2 + $0x78] sm:$0xff] 0.0
  $region41: #{temporal_gnn_forward.4} parent=0 // pred_fallthru
    _
  %s55 = smul.u32 0, 128
  %s56 = sshra.s32 %s55, 3
  %s57 = sand.u32 %s55, 7
  %s58 = smul.addr %s56, 4
  %s59 = scalar_lea.vmem %s1, %s58
  %v60 = vld [vmem:[%s59] sm:$0xf]
  %v61 = vld [vmem:[%s59 + $0x4] sm:$0xf]
  %v62 = vld [vmem:[%s59 + $0x8] sm:$0xf]
  %v63 = vld [vmem:[%s59 + $0xc] sm:$0xf]
  %v64 = vld [vmem:[%s59 + $0x10] sm:$0xf]
  %v65 = vld [vmem:[%s59 + $0x14] sm:$0xf]
  %v66 = vld [vmem:[%s59 + $0x18] sm:$0xf]
  %v67 = vld [vmem:[%s59 + $0x1c] sm:$0xf]
  %v68 = vld [vmem:[%s59 + $0x20] sm:$0xf]
  %v69 = vld [vmem:[%s59 + $0x24] sm:$0xf]
  %v70 = vld [vmem:[%s59 + $0x28] sm:$0xf]
  %v71 = vld [vmem:[%s59 + $0x2c] sm:$0xf]
  %v72 = vld [vmem:[%s59 + $0x30] sm:$0xf]
  %v73 = vld [vmem:[%s59 + $0x34] sm:$0xf]
  %v74 = vld [vmem:[%s59 + $0x38] sm:$0xf]
  %v75 = vld [vmem:[%s59 + $0x3c] sm:$0xf]
  %v76 = vld [vmem:[#allocation2] sm:$0xff]
  %v77 = vld [vmem:[#allocation2 + $0x8] sm:$0xff]
  %v78 = vld [vmem:[#allocation2 + $0x10] sm:$0xff]
  %v79 = vld [vmem:[#allocation2 + $0x18] sm:$0xff]
  %v80 = vld [vmem:[#allocation2 + $0x20] sm:$0xff]
  %v81 = vld [vmem:[#allocation2 + $0x28] sm:$0xff]
  %v82 = vld [vmem:[#allocation2 + $0x30] sm:$0xff]
  %v83 = vld [vmem:[#allocation2 + $0x38] sm:$0xff]
  %v84 = vld [vmem:[#allocation2 + $0x40] sm:$0xff]
  %v85 = vld [vmem:[#allocation2 + $0x48] sm:$0xff]
  %v86 = vld [vmem:[#allocation2 + $0x50] sm:$0xff]
  %v87 = vld [vmem:[#allocation2 + $0x58] sm:$0xff]
  %v88 = vld [vmem:[#allocation2 + $0x60] sm:$0xff]
  %v89 = vld [vmem:[#allocation2 + $0x68] sm:$0xff]
  %v90 = vld [vmem:[#allocation2 + $0x70] sm:$0xff]
  %v91 = vld [vmem:[#allocation2 + $0x78] sm:$0xff]
  %v92 = vld [vmem:[%s0] sm:$0xf]
  %v93 = vld [vmem:[%s0 + $0x4] sm:$0xf]
  %v94 = vld [vmem:[%s0 + $0x8] sm:$0xf]
  %v95 = vld [vmem:[%s0 + $0xc] sm:$0xf]
  %v96 = vld [vmem:[%s0 + $0x10] sm:$0xf]
  %v97 = vld [vmem:[%s0 + $0x14] sm:$0xf]
  %v98 = vld [vmem:[%s0 + $0x18] sm:$0xf]
  %v99 = vld [vmem:[%s0 + $0x1c] sm:$0xf]
  %v100 = vld [vmem:[%s0 + $0x20] sm:$0xf]
  %v101 = vld [vmem:[%s0 + $0x24] sm:$0xf]
  %v102 = vld [vmem:[%s0 + $0x28] sm:$0xf]
  %v103 = vld [vmem:[%s0 + $0x2c] sm:$0xf]
  %v104 = vld [vmem:[%s0 + $0x30] sm:$0xf]
  %v105 = vld [vmem:[%s0 + $0x34] sm:$0xf]
  %v106 = vld [vmem:[%s0 + $0x38] sm:$0xf]
  %v107 = vld [vmem:[%s0 + $0x3c] sm:$0xf]
  %v124 = vunpack.c.l.b16 %v92
  %v125 = vunpack.c.l.b16 %v93
  %v126 = vunpack.c.l.b16 %v94
  %v127 = vunpack.c.l.b16 %v95
  %v128 = vunpack.c.l.b16 %v96
  %v129 = vunpack.c.l.b16 %v97
  %v130 = vunpack.c.l.b16 %v98
  %v131 = vunpack.c.l.b16 %v99
  %v132 = vunpack.c.l.b16 %v100
  %v133 = vunpack.c.l.b16 %v101
  %v134 = vunpack.c.l.b16 %v102
  %v135 = vunpack.c.l.b16 %v103
  %v136 = vunpack.c.l.b16 %v104
  %v137 = vunpack.c.l.b16 %v105
  %v138 = vunpack.c.l.b16 %v106
  %v139 = vunpack.c.l.b16 %v107
  %v140 = vpack.c.b16 %v125, %v124
  %v141 = vpack.c.b16 %v127, %v126
  %v142 = vpack.c.b16 %v129, %v128
  %v143 = vpack.c.b16 %v131, %v130
  %v144 = vpack.c.b16 %v133, %v132
  %v145 = vpack.c.b16 %v135, %v134
  %v146 = vpack.c.b16 %v137, %v136
  %v147 = vpack.c.b16 %v139, %v138
  %v172 = vunpack.c.l.b16 %v60
  %v173 = vunpack.c.l.b16 %v61
  %v174 = vunpack.c.l.b16 %v62
  %v175 = vunpack.c.l.b16 %v63
  %v176 = vunpack.c.l.b16 %v64
  %v177 = vunpack.c.l.b16 %v65
  %v178 = vunpack.c.l.b16 %v66
  %v179 = vunpack.c.l.b16 %v67
  %v180 = vunpack.c.l.b16 %v68
  %v181 = vunpack.c.l.b16 %v69
  %v182 = vunpack.c.l.b16 %v70
  %v183 = vunpack.c.l.b16 %v71
  %v184 = vunpack.c.l.b16 %v72
  %v185 = vunpack.c.l.b16 %v73
  %v186 = vunpack.c.l.b16 %v74
  %v187 = vunpack.c.l.b16 %v75
  %v188 = vpack.c.b16 %v173, %v172
  %v189 = vpack.c.b16 %v175, %v174
  %v190 = vpack.c.b16 %v177, %v176
  %v191 = vpack.c.b16 %v179, %v178
  %v192 = vpack.c.b16 %v181, %v180
  %v193 = vpack.c.b16 %v183, %v182
  %v194 = vpack.c.b16 %v185, %v184
  %v195 = vpack.c.b16 %v187, %v186
  %204 = vmatprep.subr.bf16.mxu0 0
  %205 = vmatpush1.bf16.msra.mxu0 %v195
  %206 = vmatprep.subr.bf16.mxu0 0
  %207 = vmatpush1.bf16.msra.mxu0 %v194
  %208 = vmatprep.subr.bf16.mxu0 0
  %209 = vmatpush1.bf16.msra.mxu0 %v193
  %210 = vmatprep.subr.bf16.mxu0 0
  %211 = vmatpush1.bf16.msra.mxu0 %v192
  %212 = vmatprep.subr.bf16.mxu0 0
  %213 = vmatpush1.bf16.msra.mxu0 %v191
  %214 = vmatprep.subr.bf16.mxu0 0
  %215 = vmatpush1.bf16.msra.mxu0 %v190
  %216 = vmatprep.subr.bf16.mxu0 0
  %217 = vmatpush1.bf16.msra.mxu0 %v189
  %218 = vmatprep.subr.bf16.mxu0 0
  %219 = vmatpush1.bf16.msra.mxu0 %v188
  %220 = vmatprep.subr.bf16.mxu0 0
  %221 = vmatpush2.bf16.msra.mxu0 0
  %222 = vmatprep.subr.bf16.mxu0 0
  %223 = vmatpush2.bf16.msra.mxu0 0
  %224 = vmatprep.subr.bf16.mxu0 0
  %225 = vmatpush2.bf16.msra.mxu0 0
  %226 = vmatprep.subr.bf16.mxu0 0
  %227 = vmatpush2.bf16.msra.mxu0 0
  %228 = vmatprep.subr.bf16.mxu0 0
  %229 = vmatpush2.bf16.msra.mxu0 0
  %230 = vmatprep.subr.bf16.mxu0 0
  %231 = vmatpush2.bf16.msra.mxu0 0
  %232 = vmatprep.subr.bf16.mxu0 0
  %233 = vmatpush2.bf16.msra.mxu0 0
  %234 = vmatprep.subr.bf16.mxu0 0
  %235 = vmatpush2.bf16.msra.mxu0 0
  %236 = vmatprep.mubr.bf16.mxu0 0
  %237 = vmatmul.mubr.bf16.gmra.mxu0 %v140
  %v238 = vpop.f32.mrf.mxu0
  %v239 = vadd.f32 0.0, %v238
  %v240 = vpop.f32.mrf.mxu0
  %v241 = vpop.f32.mrf.mxu0
  %v242 = vadd.f32 0.0, %v241
  %v243 = vpop.f32.mrf.mxu0
  %244 = vmatprep.mubr.bf16.mxu0 0
  %245 = vmatmul.mubr.bf16.gmra.mxu0 %v141
  %v246 = vpop.f32.mrf.mxu0
  %v247 = vadd.f32 0.0, %v246
  %v248 = vpop.f32.mrf.mxu0
  %v249 = vpop.f32.mrf.mxu0
  %v250 = vadd.f32 0.0, %v249
  %v251 = vpop.f32.mrf.mxu0
  %252 = vmatprep.mubr.bf16.mxu0 0
  %253 = vmatmul.mubr.bf16.gmra.mxu0 %v142
  %v254 = vpop.f32.mrf.mxu0
  %v255 = vadd.f32 0.0, %v254
  %v256 = vpop.f32.mrf.mxu0
  %v257 = vpop.f32.mrf.mxu0
  %v258 = vadd.f32 0.0, %v257
  %v259 = vpop.f32.mrf.mxu0
  %260 = vmatprep.mubr.bf16.mxu0 0
  %261 = vmatmul.mubr.bf16.gmra.mxu0 %v143
  %v262 = vpop.f32.mrf.mxu0
  %v263 = vadd.f32 0.0, %v262
  %v264 = vpop.f32.mrf.mxu0
  %v265 = vpop.f32.mrf.mxu0
  %v266 = vadd.f32 0.0, %v265
  %v267 = vpop.f32.mrf.mxu0
  %268 = vmatprep.mubr.bf16.mxu0 0
  %269 = vmatmul.mubr.bf16.gmra.mxu0 %v144
  %v270 = vpop.f32.mrf.mxu0
  %v271 = vadd.f32 0.0, %v270
  %v272 = vpop.f32.mrf.mxu0
  %v273 = vpop.f32.mrf.mxu0
  %v274 = vadd.f32 0.0, %v273
  %v275 = vpop.f32.mrf.mxu0
  %276 = vmatprep.mubr.bf16.mxu0 0
  %277 = vmatmul.mubr.bf16.gmra.mxu0 %v145
  %v278 = vpop.f32.mrf.mxu0
  %v279 = vadd.f32 0.0, %v278
  %v280 = vpop.f32.mrf.mxu0
  %v281 = vpop.f32.mrf.mxu0
  %v282 = vadd.f32 0.0, %v281
  %v283 = vpop.f32.mrf.mxu0
  %284 = vmatprep.mubr.bf16.mxu0 0
  %285 = vmatmul.mubr.bf16.gmra.mxu0 %v146
  %v286 = vpop.f32.mrf.mxu0
  %v287 = vadd.f32 0.0, %v286
  %v288 = vpop.f32.mrf.mxu0
  %v289 = vpop.f32.mrf.mxu0
  %v290 = vadd.f32 0.0, %v289
  %v291 = vpop.f32.mrf.mxu0
  %292 = vmatprep.mubr.bf16.mxu0 0
  %293 = vmatmul.mubr.bf16.gmra.mxu0 %v147
  %v294 = vpop.f32.mrf.mxu0
  %v295 = vadd.f32 0.0, %v294
  %v296 = vpop.f32.mrf.mxu0
  %v297 = vpop.f32.mrf.mxu0
  %v298 = vadd.f32 0.0, %v297
  %v299 = vpop.f32.mrf.mxu0
  %300 = vdwg.mxu0
  %v301 = vadd.f32 %v76, %v239
  %v302 = vadd.f32 %v77, %v242
  %v303 = vadd.f32 %v78, %v247
  %v304 = vadd.f32 %v79, %v250
  %v305 = vadd.f32 %v80, %v255
  %v306 = vadd.f32 %v81, %v258
  %v307 = vadd.f32 %v82, %v263
  %v308 = vadd.f32 %v83, %v266
  %v309 = vadd.f32 %v84, %v271
  %v310 = vadd.f32 %v85, %v274
  %v311 = vadd.f32 %v86, %v279
  %v312 = vadd.f32 %v87, %v282
  %v313 = vadd.f32 %v88, %v287
  %v314 = vadd.f32 %v89, %v290
  %v315 = vadd.f32 %v90, %v295
  %v316 = vadd.f32 %v91, %v298
  %317 = vst [vmem:[#allocation2] sm:$0xff] %v301
  %318 = vst [vmem:[#allocation2 + $0x8] sm:$0xff] %v302
  %319 = vst [vmem:[#allocation2 + $0x10] sm:$0xff] %v303
  %320 = vst [vmem:[#allocation2 + $0x18] sm:$0xff] %v304
  %321 = vst [vmem:[#allocation2 + $0x20] sm:$0xff] %v305
  %322 = vst [vmem:[#allocation2 + $0x28] sm:$0xff] %v306
  %323 = vst [vmem:[#allocation2 + $0x30] sm:$0xff] %v307
  %324 = vst [vmem:[#allocation2 + $0x38] sm:$0xff] %v308
  %325 = vst [vmem:[#allocation2 + $0x40] sm:$0xff] %v309
  %326 = vst [vmem:[#allocation2 + $0x48] sm:$0xff] %v310
  %327 = vst [vmem:[#allocation2 + $0x50] sm:$0xff] %v311
  %328 = vst [vmem:[#allocation2 + $0x58] sm:$0xff] %v312
  %329 = vst [vmem:[#allocation2 + $0x60] sm:$0xff] %v313
  %330 = vst [vmem:[#allocation2 + $0x68] sm:$0xff] %v314
  %331 = vst [vmem:[#allocation2 + $0x70] sm:$0xff] %v315
  %332 = vst [vmem:[#allocation2 + $0x78] sm:$0xff] %v316
  // Predicated region
  $region42: #{temporal_gnn_forward.4} parent=0 // pred_check
    %p333 = pneg %p35
  $region43: #{temporal_gnn_forward.4} parent=0 // pred_check_branch
    %335 = sbr.rel (%p333) target = $region45
  $region44: #{temporal_gnn_forward.4} parent=0 // pred_region
    %v336 = vld [vmem:[%s2] sm:$0xff]
    %v337 = vld [vmem:[%s2 + $0x8] sm:$0xff]
    %v338 = vld [vmem:[%s2 + $0x10] sm:$0xff]
    %v339 = vld [vmem:[%s2 + $0x18] sm:$0xff]
    %v340 = vld [vmem:[%s2 + $0x20] sm:$0xff]
    %v341 = vld [vmem:[%s2 + $0x28] sm:$0xff]
    %v342 = vld [vmem:[%s2 + $0x30] sm:$0xff]
    %v343 = vld [vmem:[%s2 + $0x38] sm:$0xff]
    %v344 = vld [vmem:[%s2 + $0x40] sm:$0xff]
    %v345 = vld [vmem:[%s2 + $0x48] sm:$0xff]
    %v346 = vld [vmem:[%s2 + $0x50] sm:$0xff]
    %v347 = vld [vmem:[%s2 + $0x58] sm:$0xff]
    %v348 = vld [vmem:[%s2 + $0x60] sm:$0xff]
    %v349 = vld [vmem:[%s2 + $0x68] sm:$0xff]
    %v350 = vld [vmem:[%s2 + $0x70] sm:$0xff]
    %v351 = vld [vmem:[%s2 + $0x78] sm:$0xff]
    %v352 = vld [vmem:[#allocation2] sm:$0xff]
    %v353 = vld [vmem:[#allocation2 + $0x8] sm:$0xff]
    %v354 = vld [vmem:[#allocation2 + $0x10] sm:$0xff]
    %v355 = vld [vmem:[#allocation2 + $0x18] sm:$0xff]
    %v356 = vld [vmem:[#allocation2 + $0x20] sm:$0xff]
    %v357 = vld [vmem:[#allocation2 + $0x28] sm:$0xff]
    %v358 = vld [vmem:[#allocation2 + $0x30] sm:$0xff]
    %v359 = vld [vmem:[#allocation2 + $0x38] sm:$0xff]
    %v360 = vld [vmem:[#allocation2 + $0x40] sm:$0xff]
    %v361 = vld [vmem:[#allocation2 + $0x48] sm:$0xff]
    %v362 = vld [vmem:[#allocation2 + $0x50] sm:$0xff]
    %v363 = vld [vmem:[#allocation2 + $0x58] sm:$0xff]
    %v364 = vld [vmem:[#allocation2 + $0x60] sm:$0xff]
    %v365 = vld [vmem:[#allocation2 + $0x68] sm:$0xff]
    %v366 = vld [vmem:[#allocation2 + $0x70] sm:$0xff]
    %v367 = vld [vmem:[#allocation2 + $0x78] sm:$0xff]
    %v368 = vld [vmem:[%s3] sm:$0xff]
    %v369 = vld [vmem:[%s3 + $0x8] sm:$0xff]
    %v370 = vld [vmem:[%s3 + $0x10] sm:$0xff]
    %v371 = vld [vmem:[%s3 + $0x18] sm:$0xff]
    %v372 = vld [vmem:[%s3 + $0x20] sm:$0xff]
    %v373 = vld [vmem:[%s3 + $0x28] sm:$0xff]
    %v374 = vld [vmem:[%s3 + $0x30] sm:$0xff]
    %v375 = vld [vmem:[%s3 + $0x38] sm:$0xff]
    %v376 = vld [vmem:[%s3 + $0x40] sm:$0xff]
    %v377 = vld [vmem:[%s3 + $0x48] sm:$0xff]
    %v378 = vld [vmem:[%s3 + $0x50] sm:$0xff]
    %v379 = vld [vmem:[%s3 + $0x58] sm:$0xff]
    %v380 = vld [vmem:[%s3 + $0x60] sm:$0xff]
    %v381 = vld [vmem:[%s3 + $0x68] sm:$0xff]
    %v382 = vld [vmem:[%s3 + $0x70] sm:$0xff]
    %v383 = vld [vmem:[%s3 + $0x78] sm:$0xff]
    %385 = vset.pattern.permute.xlu0 0
    %386 = vperm.xlu0 %385, %v368
    %v387 = vpop.permute.xlu0 %386
    %390 = vset.pattern.permute.xlu0 0
    %391 = vperm.xlu0 %390, %v369
    %v392 = vpop.permute.xlu0 %391
    %395 = vset.pattern.permute.xlu0 0
    %396 = vperm.xlu0 %395, %v370
    %v397 = vpop.permute.xlu0 %396
    %400 = vset.pattern.permute.xlu0 0
    %401 = vperm.xlu0 %400, %v371
    %v402 = vpop.permute.xlu0 %401
    %405 = vset.pattern.permute.xlu0 0
    %406 = vperm.xlu0 %405, %v372
    %v407 = vpop.permute.xlu0 %406
    %410 = vset.pattern.permute.xlu0 0
    %411 = vperm.xlu0 %410, %v373
    %v412 = vpop.permute.xlu0 %411
    %415 = vset.pattern.permute.xlu0 0
    %416 = vperm.xlu0 %415, %v374
    %v417 = vpop.permute.xlu0 %416
    %420 = vset.pattern.permute.xlu0 0
    %421 = vperm.xlu0 %420, %v375
    %v422 = vpop.permute.xlu0 %421
    %425 = vset.pattern.permute.xlu0 0
    %426 = vperm.xlu0 %425, %v376
    %v427 = vpop.permute.xlu0 %426
    %430 = vset.pattern.permute.xlu0 0
    %431 = vperm.xlu0 %430, %v377
    %v432 = vpop.permute.xlu0 %431
    %435 = vset.pattern.permute.xlu0 0
    %436 = vperm.xlu0 %435, %v378
    %v437 = vpop.permute.xlu0 %436
    %440 = vset.pattern.permute.xlu0 0
    %441 = vperm.xlu0 %440, %v379
    %v442 = vpop.permute.xlu0 %441
    %445 = vset.pattern.permute.xlu0 0
    %446 = vperm.xlu0 %445, %v380
    %v447 = vpop.permute.xlu0 %446
    %450 = vset.pattern.permute.xlu0 0
    %451 = vperm.xlu0 %450, %v381
    %v452 = vpop.permute.xlu0 %451
    %455 = vset.pattern.permute.xlu0 0
    %456 = vperm.xlu0 %455, %v382
    %v457 = vpop.permute.xlu0 %456
    %460 = vset.pattern.permute.xlu0 0
    %461 = vperm.xlu0 %460, %v383
    %v462 = vpop.permute.xlu0 %461
    %v464 = vmul.f32 %v352, %v387
    %v465 = vmul.f32 %v353, %v392
    %v466 = vmul.f32 %v354, %v397
    %v467 = vmul.f32 %v355, %v402
    %v468 = vmul.f32 %v356, %v407
    %v469 = vmul.f32 %v357, %v412
    %v470 = vmul.f32 %v358, %v417
    %v471 = vmul.f32 %v359, %v422
    %v472 = vmul.f32 %v360, %v427
    %v473 = vmul.f32 %v361, %v432
    %v474 = vmul.f32 %v362, %v437
    %v475 = vmul.f32 %v363, %v442
    %v476 = vmul.f32 %v364, %v447
    %v477 = vmul.f32 %v365, %v452
    %v478 = vmul.f32 %v366, %v457
    %v479 = vmul.f32 %v367, %v462
    %v480 = vpack.c.bf16 %v337, %v336
    %v481 = vpack.c.bf16 %v339, %v338
    %v482 = vpack.c.bf16 %v341, %v340
    %v483 = vpack.c.bf16 %v343, %v342
    %v484 = vpack.c.bf16 %v345, %v344
    %v485 = vpack.c.bf16 %v347, %v346
    %v486 = vpack.c.bf16 %v349, %v348
    %v487 = vpack.c.bf16 %v351, %v350
    %v496 = vunpack.c.l.b16 %v480
    %v497 = vunpack.c.h.b16 %v480
    %v498 = vunpack.c.l.b16 %v481
    %v499 = vunpack.c.h.b16 %v481
    %v500 = vunpack.c.l.b16 %v482
    %v501 = vunpack.c.h.b16 %v482
    %v502 = vunpack.c.l.b16 %v483
    %v503 = vunpack.c.h.b16 %v483
    %v504 = vunpack.c.l.b16 %v484
    %v505 = vunpack.c.h.b16 %v484
    %v506 = vunpack.c.l.b16 %v485
    %v507 = vunpack.c.h.b16 %v485
    %v508 = vunpack.c.l.b16 %v486
    %v509 = vunpack.c.h.b16 %v486
    %v510 = vunpack.c.l.b16 %v487
    %v511 = vunpack.c.h.b16 %v487
    %v512 = vpack.c.b16 %v496, %v496
    %v513 = vpack.c.b16 %v497, %v497
    %v514 = vpack.c.b16 %v498, %v498
    %v515 = vpack.c.b16 %v499, %v499
    %v516 = vpack.c.b16 %v500, %v500
    %v517 = vpack.c.b16 %v501, %v501
    %v518 = vpack.c.b16 %v502, %v502
    %v519 = vpack.c.b16 %v503, %v503
    %v520 = vpack.c.b16 %v504, %v504
    %v521 = vpack.c.b16 %v505, %v505
    %v522 = vpack.c.b16 %v506, %v506
    %v523 = vpack.c.b16 %v507, %v507
    %v524 = vpack.c.b16 %v508, %v508
    %v525 = vpack.c.b16 %v509, %v509
    %v526 = vpack.c.b16 %v510, %v510
    %v527 = vpack.c.b16 %v511, %v511
    %544 = vst [vmem:[#allocation3] sm:$0xf] %v512
    %545 = vst [vmem:[#allocation3 + $0xc] sm:$0xf] %v513
    %546 = vst [vmem:[#allocation3 + $0x18] sm:$0xf] %v514
    %547 = vst [vmem:[#allocation3 + $0x24] sm:$0xf] %v515
    %548 = vst [vmem:[#allocation3 + $0x30] sm:$0xf] %v516
    %549 = vst [vmem:[#allocation3 + $0x3c] sm:$0xf] %v517
    %550 = vst [vmem:[#allocation3 + $0x48] sm:$0xf] %v518
    %551 = vst [vmem:[#allocation3 + $0x54] sm:$0xf] %v519
    %552 = vst [vmem:[#allocation3 + $0x60] sm:$0xf] %v520
    %553 = vst [vmem:[#allocation3 + $0x6c] sm:$0xf] %v521
    %554 = vst [vmem:[#allocation3 + $0x78] sm:$0xf] %v522
    %555 = vst [vmem:[#allocation3 + $0x84] sm:$0xf] %v523
    %556 = vst [vmem:[#allocation3 + $0x90] sm:$0xf] %v524
    %557 = vst [vmem:[#allocation3 + $0x9c] sm:$0xf] %v525
    %558 = vst [vmem:[#allocation3 + $0xa8] sm:$0xf] %v526
    %559 = vst [vmem:[#allocation3 + $0xb4] sm:$0xf] %v527
    %v560 = vpack.c.bf16 %v465, %v464
    %v561 = vpack.c.bf16 %v467, %v466
    %v562 = vpack.c.bf16 %v469, %v468
    %v563 = vpack.c.bf16 %v471, %v470
    %v564 = vpack.c.bf16 %v473, %v472
    %v565 = vpack.c.bf16 %v475, %v474
    %v566 = vpack.c.bf16 %v477, %v476
    %v567 = vpack.c.bf16 %v479, %v478
    %v576 = vunpack.c.l.b16 %v560
    %v577 = vunpack.c.h.b16 %v560
    %v578 = vunpack.c.l.b16 %v561
    %v579 = vunpack.c.h.b16 %v561
    %v580 = vunpack.c.l.b16 %v562
    %v581 = vunpack.c.h.b16 %v562
    %v582 = vunpack.c.l.b16 %v563
    %v583 = vunpack.c.h.b16 %v563
    %v584 = vunpack.c.l.b16 %v564
    %v585 = vunpack.c.h.b16 %v564
    %v586 = vunpack.c.l.b16 %v565
    %v587 = vunpack.c.h.b16 %v565
    %v588 = vunpack.c.l.b16 %v566
    %v589 = vunpack.c.h.b16 %v566
    %v590 = vunpack.c.l.b16 %v567
    %v591 = vunpack.c.h.b16 %v567
    %v592 = vpack.c.b16 %v576, %v576
    %v593 = vpack.c.b16 %v577, %v577
    %v594 = vpack.c.b16 %v578, %v578
    %v595 = vpack.c.b16 %v579, %v579
    %v596 = vpack.c.b16 %v580, %v580
    %v597 = vpack.c.b16 %v581, %v581
    %v598 = vpack.c.b16 %v582, %v582
    %v599 = vpack.c.b16 %v583, %v583
    %v600 = vpack.c.b16 %v584, %v584
    %v601 = vpack.c.b16 %v585, %v585
    %v602 = vpack.c.b16 %v586, %v586
    %v603 = vpack.c.b16 %v587, %v587
    %v604 = vpack.c.b16 %v588, %v588
    %v605 = vpack.c.b16 %v589, %v589
    %v606 = vpack.c.b16 %v590, %v590
    %v607 = vpack.c.b16 %v591, %v591
    %624 = vst [vmem:[#allocation3 + $0x4] sm:$0xf] %v592
    %625 = vst [vmem:[#allocation3 + $0x10] sm:$0xf] %v593
    %626 = vst [vmem:[#allocation3 + $0x1c] sm:$0xf] %v594
    %627 = vst [vmem:[#allocation3 + $0x28] sm:$0xf] %v595
    %628 = vst [vmem:[#allocation3 + $0x34] sm:$0xf] %v596
    %629 = vst [vmem:[#allocation3 + $0x40] sm:$0xf] %v597
    %630 = vst [vmem:[#allocation3 + $0x4c] sm:$0xf] %v598
    %631 = vst [vmem:[#allocation3 + $0x58] sm:$0xf] %v599
    %632 = vst [vmem:[#allocation3 + $0x64] sm:$0xf] %v600
    %633 = vst [vmem:[#allocation3 + $0x70] sm:$0xf] %v601
    %634 = vst [vmem:[#allocation3 + $0x7c] sm:$0xf] %v602
    %635 = vst [vmem:[#allocation3 + $0x88] sm:$0xf] %v603
    %636 = vst [vmem:[#allocation3 + $0x94] sm:$0xf] %v604
    %637 = vst [vmem:[#allocation3 + $0xa0] sm:$0xf] %v605
    %638 = vst [vmem:[#allocation3 + $0xac] sm:$0xf] %v606
    %639 = vst [vmem:[#allocation3 + $0xb8] sm:$0xf] %v607
    %v640 = vld [vmem:[%s4] sm:$0xf]
    %v641 = vld [vmem:[%s4 + $0x4] sm:$0xf]
    %v642 = vld [vmem:[%s4 + $0x8] sm:$0xf]
    %v643 = vld [vmem:[%s4 + $0xc] sm:$0xf]
    %v644 = vld [vmem:[%s4 + $0x10] sm:$0xf]
    %v645 = vld [vmem:[%s4 + $0x14] sm:$0xf]
    %v646 = vld [vmem:[%s4 + $0x18] sm:$0xf]
    %v647 = vld [vmem:[%s4 + $0x1c] sm:$0xf]
    %v648 = vld [vmem:[%s4 + $0x20] sm:$0xf]
    %v649 = vld [vmem:[%s4 + $0x24] sm:$0xf]
    %v650 = vld [vmem:[%s4 + $0x28] sm:$0xf]
    %v651 = vld [vmem:[%s4 + $0x2c] sm:$0xf]
    %v652 = vld [vmem:[%s4 + $0x30] sm:$0xf]
    %v653 = vld [vmem:[%s4 + $0x34] sm:$0xf]
    %v654 = vld [vmem:[%s4 + $0x38] sm:$0xf]
    %v655 = vld [vmem:[%s4 + $0x3c] sm:$0xf]
    %656 = vst [vmem:[#allocation3 + $0x8] sm:$0xf] %v640
    %657 = vst [vmem:[#allocation3 + $0x14] sm:$0xf] %v641
    %658 = vst [vmem:[#allocation3 + $0x20] sm:$0xf] %v642
    %659 = vst [vmem:[#allocation3 + $0x2c] sm:$0xf] %v643
    %660 = vst [vmem:[#allocation3 + $0x38] sm:$0xf] %v644
    %661 = vst [vmem:[#allocation3 + $0x44] sm:$0xf] %v645
    %662 = vst [vmem:[#allocation3 + $0x50] sm:$0xf] %v646
    %663 = vst [vmem:[#allocation3 + $0x5c] sm:$0xf] %v647
    %664 = vst [vmem:[#allocation3 + $0x68] sm:$0xf] %v648
    %665 = vst [vmem:[#allocation3 + $0x74] sm:$0xf] %v649
    %666 = vst [vmem:[#allocation3 + $0x80] sm:$0xf] %v650
    %667 = vst [vmem:[#allocation3 + $0x8c] sm:$0xf] %v651
    %668 = vst [vmem:[#allocation3 + $0x98] sm:$0xf] %v652
    %669 = vst [vmem:[#allocation3 + $0xa4] sm:$0xf] %v653
    %670 = vst [vmem:[#allocation3 + $0xb0] sm:$0xf] %v654
    %671 = vst [vmem:[#allocation3 + $0xbc] sm:$0xf] %v655
    %v672 = vld [vmem:[#allocation3] sm:$0xff]
    %v673 = vld [vmem:[#allocation3 + $0x8] sm:$0xf]
    %v674 = vld [vmem:[#allocation3 + $0xc] sm:$0xff]
    %v675 = vld [vmem:[#allocation3 + $0x14] sm:$0xf]
    %v676 = vld [vmem:[#allocation3 + $0x18] sm:$0xff]
    %v677 = vld [vmem:[#allocation3 + $0x20] sm:$0xf]
    %v678 = vld [vmem:[#allocation3 + $0x24] sm:$0xff]
    %v679 = vld [vmem:[#allocation3 + $0x2c] sm:$0xf]
    %v680 = vld [vmem:[#allocation3 + $0x30] sm:$0xff]
    %v681 = vld [vmem:[#allocation3 + $0x38] sm:$0xf]
    %v682 = vld [vmem:[#allocation3 + $0x3c] sm:$0xff]
    %v683 = vld [vmem:[#allocation3 + $0x44] sm:$0xf]
    %v684 = vld [vmem:[#allocation3 + $0x48] sm:$0xff]
    %v685 = vld [vmem:[#allocation3 + $0x50] sm:$0xf]
    %v686 = vld [vmem:[#allocation3 + $0x54] sm:$0xff]
    %v687 = vld [vmem:[#allocation3 + $0x5c] sm:$0xf]
    %v688 = vld [vmem:[#allocation3 + $0x60] sm:$0xff]
    %v689 = vld [vmem:[#allocation3 + $0x68] sm:$0xf]
    %v690 = vld [vmem:[#allocation3 + $0x6c] sm:$0xff]
    %v691 = vld [vmem:[#allocation3 + $0x74] sm:$0xf]
    %v692 = vld [vmem:[#allocation3 + $0x78] sm:$0xff]
    %v693 = vld [vmem:[#allocation3 + $0x80] sm:$0xf]
    %v694 = vld [vmem:[#allocation3 + $0x84] sm:$0xff]
    %v695 = vld [vmem:[#allocation3 + $0x8c] sm:$0xf]
    %v696 = vld [vmem:[#allocation3 + $0x90] sm:$0xff]
    %v697 = vld [vmem:[#allocation3 + $0x98] sm:$0xf]
    %v698 = vld [vmem:[#allocation3 + $0x9c] sm:$0xff]
    %v699 = vld [vmem:[#allocation3 + $0xa4] sm:$0xf]
    %v700 = vld [vmem:[#allocation3 + $0xa8] sm:$0xff]
    %v701 = vld [vmem:[#allocation3 + $0xb0] sm:$0xf]
    %v702 = vld [vmem:[#allocation3 + $0xb4] sm:$0xff]
    %v703 = vld [vmem:[#allocation3 + $0xbc] sm:$0xf]
    %v704 = vld [vmem:[%s5] sm:$0xf]
    %v705 = vld [vmem:[%s5 + $0x4] sm:$0xf]
    %v706 = vld [vmem:[%s5 + $0x8] sm:$0xf]
    %v707 = vld [vmem:[%s5 + $0xc] sm:$0xf]
    %v708 = vld [vmem:[%s5 + $0x10] sm:$0xf]
    %v709 = vld [vmem:[%s5 + $0x14] sm:$0xf]
    %v710 = vld [vmem:[%s5 + $0x18] sm:$0xf]
    %v711 = vld [vmem:[%s5 + $0x1c] sm:$0xf]
    %v712 = vld [vmem:[%s5 + $0x20] sm:$0xf]
    %v713 = vld [vmem:[%s5 + $0x24] sm:$0xf]
    %v714 = vld [vmem:[%s5 + $0x28] sm:$0xf]
    %v715 = vld [vmem:[%s5 + $0x2c] sm:$0xf]
    %v716 = vld [vmem:[%s5 + $0x30] sm:$0xf]
    %v717 = vld [vmem:[%s5 + $0x34] sm:$0xf]
    %v718 = vld [vmem:[%s5 + $0x38] sm:$0xf]
    %v719 = vld [vmem:[%s5 + $0x3c] sm:$0xf]
    %v720 = vld [vmem:[%s5 + $0x40] sm:$0xf]
    %v721 = vld [vmem:[%s5 + $0x44] sm:$0xf]
    %v722 = vld [vmem:[%s5 + $0x48] sm:$0xf]
    %v723 = vld [vmem:[%s5 + $0x4c] sm:$0xf]
    %v724 = vld [vmem:[%s5 + $0x50] sm:$0xf]
    %v725 = vld [vmem:[%s5 + $0x54] sm:$0xf]
    %v726 = vld [vmem:[%s5 + $0x58] sm:$0xf]
    %v727 = vld [vmem:[%s5 + $0x5c] sm:$0xf]
    %v728 = vld [vmem:[%s5 + $0x60] sm:$0xf]
    %v729 = vld [vmem:[%s5 + $0x64] sm:$0xf]
    %v730 = vld [vmem:[%s5 + $0x68] sm:$0xf]
    %v731 = vld [vmem:[%s5 + $0x6c] sm:$0xf]
    %v732 = vld [vmem:[%s5 + $0x70] sm:$0xf]
    %v733 = vld [vmem:[%s5 + $0x74] sm:$0xf]
    %v734 = vld [vmem:[%s5 + $0x78] sm:$0xf]
    %v735 = vld [vmem:[%s5 + $0x7c] sm:$0xf]
    %v736 = vld [vmem:[%s5 + $0x80] sm:$0xf]
    %v737 = vld [vmem:[%s5 + $0x84] sm:$0xf]
    %v738 = vld [vmem:[%s5 + $0x88] sm:$0xf]
    %v739 = vld [vmem:[%s5 + $0x8c] sm:$0xf]
    %v740 = vld [vmem:[%s5 + $0x90] sm:$0xf]
    %v741 = vld [vmem:[%s5 + $0x94] sm:$0xf]
    %v742 = vld [vmem:[%s5 + $0x98] sm:$0xf]
    %v743 = vld [vmem:[%s5 + $0x9c] sm:$0xf]
    %v744 = vld [vmem:[%s5 + $0xa0] sm:$0xf]
    %v745 = vld [vmem:[%s5 + $0xa4] sm:$0xf]
    %v746 = vld [vmem:[%s5 + $0xa8] sm:$0xf]
    %v747 = vld [vmem:[%s5 + $0xac] sm:$0xf]
    %v748 = vld [vmem:[%s5 + $0xb0] sm:$0xf]
    %v749 = vld [vmem:[%s5 + $0xb4] sm:$0xf]
    %v750 = vld [vmem:[%s5 + $0xb8] sm:$0xf]
    %v751 = vld [vmem:[%s5 + $0xbc] sm:$0xf]
    %v752 = vld [vmem:[%s6] sm:$0x1]
    %v754 = vlaneseq
    %v755 = vshrl.u32 %v754, 7
    %v756 = vsub.s32 0, %v755
    %v757 = vrot.slane %v752, %v756
    %v791 = vunpack.c.l.b16 %v672
    %v792 = vunpack.c.h.b16 %v672
    %v793 = vunpack.c.l.b16 %v673
    %v794 = vunpack.c.l.b16 %v674
    %v795 = vunpack.c.h.b16 %v674
    %v796 = vunpack.c.l.b16 %v675
    %v797 = vunpack.c.l.b16 %v676
    %v798 = vunpack.c.h.b16 %v676
    %v799 = vunpack.c.l.b16 %v677
    %v800 = vunpack.c.l.b16 %v678
    %v801 = vunpack.c.h.b16 %v678
    %v802 = vunpack.c.l.b16 %v679
    %v803 = vunpack.c.l.b16 %v680
    %v804 = vunpack.c.h.b16 %v680
    %v805 = vunpack.c.l.b16 %v681
    %v806 = vunpack.c.l.b16 %v682
    %v807 = vunpack.c.h.b16 %v682
    %v808 = vunpack.c.l.b16 %v683
    %v809 = vunpack.c.l.b16 %v684
    %v810 = vunpack.c.h.b16 %v684
    %v811 = vunpack.c.l.b16 %v685
    %v812 = vunpack.c.l.b16 %v686
    %v813 = vunpack.c.h.b16 %v686
    %v814 = vunpack.c.l.b16 %v687
    %v815 = vunpack.c.l.b16 %v688
    %v816 = vunpack.c.h.b16 %v688
    %v817 = vunpack.c.l.b16 %v689
    %v818 = vunpack.c.l.b16 %v690
    %v819 = vunpack.c.h.b16 %v690
    %v820 = vunpack.c.l.b16 %v691
    %v821 = vunpack.c.l.b16 %v692
    %v822 = vunpack.c.h.b16 %v692
    %v823 = vunpack.c.l.b16 %v693
    %v824 = vunpack.c.l.b16 %v694
    %v825 = vunpack.c.h.b16 %v694
    %v826 = vunpack.c.l.b16 %v695
    %v827 = vunpack.c.l.b16 %v696
    %v828 = vunpack.c.h.b16 %v696
    %v829 = vunpack.c.l.b16 %v697
    %v830 = vunpack.c.l.b16 %v698
    %v831 = vunpack.c.h.b16 %v698
    %v832 = vunpack.c.l.b16 %v699
    %v833 = vunpack.c.l.b16 %v700
    %v834 = vunpack.c.h.b16 %v700
    %v835 = vunpack.c.l.b16 %v701
    %v836 = vunpack.c.l.b16 %v702
    %v837 = vunpack.c.h.b16 %v702
    %v838 = vunpack.c.l.b16 %v703
    %v839 = vpack.c.b16 %v794, %v791
    %v840 = vpack.c.b16 %v795, %v792
    %v841 = vpack.c.b16 %v796, %v793
    %v842 = vpack.c.b16 %v800, %v797
    %v843 = vpack.c.b16 %v801, %v798
    %v844 = vpack.c.b16 %v802, %v799
    %v845 = vpack.c.b16 %v806, %v803
    %v846 = vpack.c.b16 %v807, %v804
    %v847 = vpack.c.b16 %v808, %v805
    %v848 = vpack.c.b16 %v812, %v809
    %v849 = vpack.c.b16 %v813, %v810
    %v850 = vpack.c.b16 %v814, %v811
    %v851 = vpack.c.b16 %v818, %v815
    %v852 = vpack.c.b16 %v819, %v816
    %v853 = vpack.c.b16 %v820, %v817
    %v854 = vpack.c.b16 %v824, %v821
    %v855 = vpack.c.b16 %v825, %v822
    %v856 = vpack.c.b16 %v826, %v823
    %v857 = vpack.c.b16 %v830, %v827
    %v858 = vpack.c.b16 %v831, %v828
    %v859 = vpack.c.b16 %v832, %v829
    %v860 = vpack.c.b16 %v836, %v833
    %v861 = vpack.c.b16 %v837, %v834
    %v862 = vpack.c.b16 %v838, %v835
    %v935 = vunpack.c.l.b16 %v704
    %v936 = vunpack.c.l.b16 %v705
    %v937 = vunpack.c.l.b16 %v706
    %v938 = vunpack.c.l.b16 %v707
    %v939 = vunpack.c.l.b16 %v708
    %v940 = vunpack.c.l.b16 %v709
    %v941 = vunpack.c.l.b16 %v710
    %v942 = vunpack.c.l.b16 %v711
    %v943 = vunpack.c.l.b16 %v712
    %v944 = vunpack.c.l.b16 %v713
    %v945 = vunpack.c.l.b16 %v714
    %v946 = vunpack.c.l.b16 %v715
    %v947 = vunpack.c.l.b16 %v716
    %v948 = vunpack.c.l.b16 %v717
    %v949 = vunpack.c.l.b16 %v718
    %v950 = vunpack.c.l.b16 %v719
    %v951 = vunpack.c.l.b16 %v720
    %v952 = vunpack.c.l.b16 %v721
    %v953 = vunpack.c.l.b16 %v722
    %v954 = vunpack.c.l.b16 %v723
    %v955 = vunpack.c.l.b16 %v724
    %v956 = vunpack.c.l.b16 %v725
    %v957 = vunpack.c.l.b16 %v726
    %v958 = vunpack.c.l.b16 %v727
    %v959 = vunpack.c.l.b16 %v728
    %v960 = vunpack.c.l.b16 %v729
    %v961 = vunpack.c.l.b16 %v730
    %v962 = vunpack.c.l.b16 %v731
    %v963 = vunpack.c.l.b16 %v732
    %v964 = vunpack.c.l.b16 %v733
    %v965 = vunpack.c.l.b16 %v734
    %v966 = vunpack.c.l.b16 %v735
    %v967 = vunpack.c.l.b16 %v736
    %v968 = vunpack.c.l.b16 %v737
    %v969 = vunpack.c.l.b16 %v738
    %v970 = vunpack.c.l.b16 %v739
    %v971 = vunpack.c.l.b16 %v740
    %v972 = vunpack.c.l.b16 %v741
    %v973 = vunpack.c.l.b16 %v742
    %v974 = vunpack.c.l.b16 %v743
    %v975 = vunpack.c.l.b16 %v744
    %v976 = vunpack.c.l.b16 %v745
    %v977 = vunpack.c.l.b16 %v746
    %v978 = vunpack.c.l.b16 %v747
    %v979 = vunpack.c.l.b16 %v748
    %v980 = vunpack.c.l.b16 %v749
    %v981 = vunpack.c.l.b16 %v750
    %v982 = vunpack.c.l.b16 %v751
    %v983 = vpack.c.b16 %v936, %v935
    %v984 = vpack.c.b16 %v938, %v937
    %v985 = vpack.c.b16 %v940, %v939
    %v986 = vpack.c.b16 %v942, %v941
    %v987 = vpack.c.b16 %v944, %v943
    %v988 = vpack.c.b16 %v946, %v945
    %v989 = vpack.c.b16 %v948, %v947
    %v990 = vpack.c.b16 %v950, %v949
    %v991 = vpack.c.b16 %v952, %v951
    %v992 = vpack.c.b16 %v954, %v953
    %v993 = vpack.c.b16 %v956, %v955
    %v994 = vpack.c.b16 %v958, %v957
    %v995 = vpack.c.b16 %v960, %v959
    %v996 = vpack.c.b16 %v962, %v961
    %v997 = vpack.c.b16 %v964, %v963
    %v998 = vpack.c.b16 %v966, %v965
    %v999 = vpack.c.b16 %v968, %v967
    %v1000 = vpack.c.b16 %v970, %v969
    %v1001 = vpack.c.b16 %v972, %v971
    %v1002 = vpack.c.b16 %v974, %v973
    %v1003 = vpack.c.b16 %v976, %v975
    %v1004 = vpack.c.b16 %v978, %v977
    %v1005 = vpack.c.b16 %v980, %v979
    %v1006 = vpack.c.b16 %v982, %v981
    %1031 = vmatprep.subr.bf16.mxu0 0
    %1032 = vmatpush1.bf16.msra.mxu0 %v990
    %1033 = vmatprep.subr.bf16.mxu0 0
    %1034 = vmatpush1.bf16.msra.mxu0 %v989
    %1035 = vmatprep.subr.bf16.mxu0 0
    %1036 = vmatpush1.bf16.msra.mxu0 %v988
    %1037 = vmatprep.subr.bf16.mxu0 0
    %1038 = vmatpush1.bf16.msra.mxu0 %v987
    %1039 = vmatprep.subr.bf16.mxu0 0
    %1040 = vmatpush1.bf16.msra.mxu0 %v986
    %1041 = vmatprep.subr.bf16.mxu0 0
    %1042 = vmatpush1.bf16.msra.mxu0 %v985
    %1043 = vmatprep.subr.bf16.mxu0 0
    %1044 = vmatpush1.bf16.msra.mxu0 %v984
    %1045 = vmatprep.subr.bf16.mxu0 0
    %1046 = vmatpush1.bf16.msra.mxu0 %v983
    %1047 = vmatprep.subr.bf16.mxu0 0
    %1048 = vmatpush2.bf16.msra.mxu0 %v998
    %1049 = vmatprep.subr.bf16.mxu0 0
    %1050 = vmatpush2.bf16.msra.mxu0 %v997
    %1051 = vmatprep.subr.bf16.mxu0 0
    %1052 = vmatpush2.bf16.msra.mxu0 %v996
    %1053 = vmatprep.subr.bf16.mxu0 0
    %1054 = vmatpush2.bf16.msra.mxu0 %v995
    %1055 = vmatprep.subr.bf16.mxu0 0
    %1056 = vmatpush2.bf16.msra.mxu0 %v994
    %1057 = vmatprep.subr.bf16.mxu0 0
    %1058 = vmatpush2.bf16.msra.mxu0 %v993
    %1059 = vmatprep.subr.bf16.mxu0 0
    %1060 = vmatpush2.bf16.msra.mxu0 %v992
    %1061 = vmatprep.subr.bf16.mxu0 0
    %1062 = vmatpush2.bf16.msra.mxu0 %v991
    %1063 = vmatprep.mubr.bf16.mxu0 %v840
    %1064 = vmatmul.mubr.bf16.gmra.mxu0 %v839
    %v1065 = vpop.f32.mrf.mxu0
    %v1066 = vadd.f32 %v757, %v1065
    %v1067 = vpop.f32.mrf.mxu0
    %v1068 = vpop.f32.mrf.mxu0
    %v1069 = vadd.f32 %v757, %v1068
    %v1070 = vpop.f32.mrf.mxu0
    %1071 = vmatprep.mubr.bf16.mxu0 %v843
    %1072 = vmatmul.mubr.bf16.gmra.mxu0 %v842
    %v1073 = vpop.f32.mrf.mxu0
    %v1074 = vadd.f32 %v757, %v1073
    %v1075 = vpop.f32.mrf.mxu0
    %v1076 = vpop.f32.mrf.mxu0
    %v1077 = vadd.f32 %v757, %v1076
    %v1078 = vpop.f32.mrf.mxu0
    %1079 = vmatprep.mubr.bf16.mxu0 %v846
    %1080 = vmatmul.mubr.bf16.gmra.mxu0 %v845
    %v1081 = vpop.f32.mrf.mxu0
    %v1082 = vadd.f32 %v757, %v1081
    %v1083 = vpop.f32.mrf.mxu0
    %v1084 = vpop.f32.mrf.mxu0
    %v1085 = vadd.f32 %v757, %v1084
    %v1086 = vpop.f32.mrf.mxu0
    %1087 = vmatprep.mubr.bf16.mxu0 %v849
    %1088 = vmatmul.mubr.bf16.gmra.mxu0 %v848
    %v1089 = vpop.f32.mrf.mxu0
    %v1090 = vadd.f32 %v757, %v1089
    %v1091 = vpop.f32.mrf.mxu0
    %v1092 = vpop.f32.mrf.mxu0
    %v1093 = vadd.f32 %v757, %v1092
    %v1094 = vpop.f32.mrf.mxu0
    %1095 = vmatprep.mubr.bf16.mxu0 %v852
    %1096 = vmatmul.mubr.bf16.gmra.mxu0 %v851
    %v1097 = vpop.f32.mrf.mxu0
    %v1098 = vadd.f32 %v757, %v1097
    %v1099 = vpop.f32.mrf.mxu0
    %v1100 = vpop.f32.mrf.mxu0
    %v1101 = vadd.f32 %v757, %v1100
    %v1102 = vpop.f32.mrf.mxu0
    %1103 = vmatprep.mubr.bf16.mxu0 %v855
    %1104 = vmatmul.mubr.bf16.gmra.mxu0 %v854
    %v1105 = vpop.f32.mrf.mxu0
    %v1106 = vadd.f32 %v757, %v1105
    %v1107 = vpop.f32.mrf.mxu0
    %v1108 = vpop.f32.mrf.mxu0
    %v1109 = vadd.f32 %v757, %v1108
    %v1110 = vpop.f32.mrf.mxu0
    %1111 = vmatprep.mubr.bf16.mxu0 %v858
    %1112 = vmatmul.mubr.bf16.gmra.mxu0 %v857
    %v1113 = vpop.f32.mrf.mxu0
    %v1114 = vadd.f32 %v757, %v1113
    %v1115 = vpop.f32.mrf.mxu0
    %v1116 = vpop.f32.mrf.mxu0
    %v1117 = vadd.f32 %v757, %v1116
    %v1118 = vpop.f32.mrf.mxu0
    %1119 = vmatprep.mubr.bf16.mxu0 %v861
    %1120 = vmatmul.mubr.bf16.gmra.mxu0 %v860
    %v1121 = vpop.f32.mrf.mxu0
    %v1122 = vadd.f32 %v757, %v1121
    %v1123 = vpop.f32.mrf.mxu0
    %v1124 = vpop.f32.mrf.mxu0
    %v1125 = vadd.f32 %v757, %v1124
    %v1126 = vpop.f32.mrf.mxu0
    %1127 = vdwg.mxu0
    %1128 = vmatprep.subr.bf16.mxu0 0
    %1129 = vmatpush1.bf16.msra.mxu0 %v1006
    %1130 = vmatprep.subr.bf16.mxu0 0
    %1131 = vmatpush1.bf16.msra.mxu0 %v1005
    %1132 = vmatprep.subr.bf16.mxu0 0
    %1133 = vmatpush1.bf16.msra.mxu0 %v1004
    %1134 = vmatprep.subr.bf16.mxu0 0
    %1135 = vmatpush1.bf16.msra.mxu0 %v1003
    %1136 = vmatprep.subr.bf16.mxu0 0
    %1137 = vmatpush1.bf16.msra.mxu0 %v1002
    %1138 = vmatprep.subr.bf16.mxu0 0
    %1139 = vmatpush1.bf16.msra.mxu0 %v1001
    %1140 = vmatprep.subr.bf16.mxu0 0
    %1141 = vmatpush1.bf16.msra.mxu0 %v1000
    %1142 = vmatprep.subr.bf16.mxu0 0
    %1143 = vmatpush1.bf16.msra.mxu0 %v999
    %1144 = vmatprep.subr.bf16.mxu0 0
    %1145 = vmatpush2.bf16.msra.mxu0 0
    %1146 = vmatprep.subr.bf16.mxu0 0
    %1147 = vmatpush2.bf16.msra.mxu0 0
    %1148 = vmatprep.subr.bf16.mxu0 0
    %1149 = vmatpush2.bf16.msra.mxu0 0
    %1150 = vmatprep.subr.bf16.mxu0 0
    %1151 = vmatpush2.bf16.msra.mxu0 0
    %1152 = vmatprep.subr.bf16.mxu0 0
    %1153 = vmatpush2.bf16.msra.mxu0 0
    %1154 = vmatprep.subr.bf16.mxu0 0
    %1155 = vmatpush2.bf16.msra.mxu0 0
    %1156 = vmatprep.subr.bf16.mxu0 0
    %1157 = vmatpush2.bf16.msra.mxu0 0
    %1158 = vmatprep.subr.bf16.mxu0 0
    %1159 = vmatpush2.bf16.msra.mxu0 0
    %1160 = vmatprep.mubr.bf16.mxu0 0
    %1161 = vmatmul.mubr.bf16.gmra.mxu0 %v841
    %v1162 = vpop.f32.mrf.mxu0
    %v1163 = vadd.f32 %v1066, %v1162
    %v1164 = vpop.f32.mrf.mxu0
    %v1165 = vpop.f32.mrf.mxu0
    %v1166 = vadd.f32 %v1069, %v1165
    %v1167 = vpop.f32.mrf.mxu0
    %1168 = vmatprep.mubr.bf16.mxu0 0
    %1169 = vmatmul.mubr.bf16.gmra.mxu0 %v844
    %v1170 = vpop.f32.mrf.mxu0
    %v1171 = vadd.f32 %v1074, %v1170
    %v1172 = vpop.f32.mrf.mxu0
    %v1173 = vpop.f32.mrf.mxu0
    %v1174 = vadd.f32 %v1077, %v1173
    %v1175 = vpop.f32.mrf.mxu0
    %1176 = vmatprep.mubr.bf16.mxu0 0
    %1177 = vmatmul.mubr.bf16.gmra.mxu0 %v847
    %v1178 = vpop.f32.mrf.mxu0
    %v1179 = vadd.f32 %v1082, %v1178
    %v1180 = vpop.f32.mrf.mxu0
    %v1181 = vpop.f32.mrf.mxu0
    %v1182 = vadd.f32 %v1085, %v1181
    %v1183 = vpop.f32.mrf.mxu0
    %1184 = vmatprep.mubr.bf16.mxu0 0
    %1185 = vmatmul.mubr.bf16.gmra.mxu0 %v850
    %v1186 = vpop.f32.mrf.mxu0
    %v1187 = vadd.f32 %v1090, %v1186
    %v1188 = vpop.f32.mrf.mxu0
    %v1189 = vpop.f32.mrf.mxu0
    %v1190 = vadd.f32 %v1093, %v1189
    %v1191 = vpop.f32.mrf.mxu0
    %1192 = vmatprep.mubr.bf16.mxu0 0
    %1193 = vmatmul.mubr.bf16.gmra.mxu0 %v853
    %v1194 = vpop.f32.mrf.mxu0
    %v1195 = vadd.f32 %v1098, %v1194
    %v1196 = vpop.f32.mrf.mxu0
    %v1197 = vpop.f32.mrf.mxu0
    %v1198 = vadd.f32 %v1101, %v1197
    %v1199 = vpop.f32.mrf.mxu0
    %1200 = vmatprep.mubr.bf16.mxu0 0
    %1201 = vmatmul.mubr.bf16.gmra.mxu0 %v856
    %v1202 = vpop.f32.mrf.mxu0
    %v1203 = vadd.f32 %v1106, %v1202
    %v1204 = vpop.f32.mrf.mxu0
    %v1205 = vpop.f32.mrf.mxu0
    %v1206 = vadd.f32 %v1109, %v1205
    %v1207 = vpop.f32.mrf.mxu0
    %1208 = vmatprep.mubr.bf16.mxu0 0
    %1209 = vmatmul.mubr.bf16.gmra.mxu0 %v859
    %v1210 = vpop.f32.mrf.mxu0
    %v1211 = vadd.f32 %v1114, %v1210
    %v1212 = vpop.f32.mrf.mxu0
    %v1213 = vpop.f32.mrf.mxu0
    %v1214 = vadd.f32 %v1117, %v1213
    %v1215 = vpop.f32.mrf.mxu0
    %1216 = vmatprep.mubr.bf16.mxu0 0
    %1217 = vmatmul.mubr.bf16.gmra.mxu0 %v862
    %v1218 = vpop.f32.mrf.mxu0
    %v1219 = vadd.f32 %v1122, %v1218
    %v1220 = vpop.f32.mrf.mxu0
    %v1221 = vpop.f32.mrf.mxu0
    %v1222 = vadd.f32 %v1125, %v1221
    %v1223 = vpop.f32.mrf.mxu0
    %1224 = vdwg.mxu0
    %v1225 = vmax.f32 %v1163, 0.0
    %v1226 = vmax.f32 %v1166, 0.0
    %v1227 = vmax.f32 %v1171, 0.0
    %v1228 = vmax.f32 %v1174, 0.0
    %v1229 = vmax.f32 %v1179, 0.0
    %v1230 = vmax.f32 %v1182, 0.0
    %v1231 = vmax.f32 %v1187, 0.0
    %v1232 = vmax.f32 %v1190, 0.0
    %v1233 = vmax.f32 %v1195, 0.0
    %v1234 = vmax.f32 %v1198, 0.0
    %v1235 = vmax.f32 %v1203, 0.0
    %v1236 = vmax.f32 %v1206, 0.0
    %v1237 = vmax.f32 %v1211, 0.0
    %v1238 = vmax.f32 %v1214, 0.0
    %v1239 = vmax.f32 %v1219, 0.0
    %v1240 = vmax.f32 %v1222, 0.0
    %v1241 = vpack.c.bf16 %v1226, %v1225
    %v1242 = vpack.c.bf16 %v1228, %v1227
    %v1243 = vpack.c.bf16 %v1230, %v1229
    %v1244 = vpack.c.bf16 %v1232, %v1231
    %v1245 = vpack.c.bf16 %v1234, %v1233
    %v1246 = vpack.c.bf16 %v1236, %v1235
    %v1247 = vpack.c.bf16 %v1238, %v1237
    %v1248 = vpack.c.bf16 %v1240, %v1239
    %v1249 = vld [vmem:[%s7] sm:$0xf]
    %v1250 = vld [vmem:[%s7 + $0x4] sm:$0xf]
    %v1251 = vld [vmem:[%s7 + $0x8] sm:$0xf]
    %v1252 = vld [vmem:[%s7 + $0xc] sm:$0xf]
    %v1253 = vld [vmem:[%s7 + $0x10] sm:$0xf]
    %v1254 = vld [vmem:[%s7 + $0x14] sm:$0xf]
    %v1255 = vld [vmem:[%s7 + $0x18] sm:$0xf]
    %v1256 = vld [vmem:[%s7 + $0x1c] sm:$0xf]
    %v1257 = vld [vmem:[%s7 + $0x20] sm:$0xf]
    %v1258 = vld [vmem:[%s7 + $0x24] sm:$0xf]
    %v1259 = vld [vmem:[%s7 + $0x28] sm:$0xf]
    %v1260 = vld [vmem:[%s7 + $0x2c] sm:$0xf]
    %v1261 = vld [vmem:[%s7 + $0x30] sm:$0xf]
    %v1262 = vld [vmem:[%s7 + $0x34] sm:$0xf]
    %v1263 = vld [vmem:[%s7 + $0x38] sm:$0xf]
    %v1264 = vld [vmem:[%s7 + $0x3c] sm:$0xf]
    %v1281 = vunpack.c.l.b16 %v1249
    %v1282 = vunpack.c.l.b16 %v1250
    %v1283 = vunpack.c.l.b16 %v1251
    %v1284 = vunpack.c.l.b16 %v1252
    %v1285 = vunpack.c.l.b16 %v1253
    %v1286 = vunpack.c.l.b16 %v1254
    %v1287 = vunpack.c.l.b16 %v1255
    %v1288 = vunpack.c.l.b16 %v1256
    %v1289 = vunpack.c.l.b16 %v1257
    %v1290 = vunpack.c.l.b16 %v1258
    %v1291 = vunpack.c.l.b16 %v1259
    %v1292 = vunpack.c.l.b16 %v1260
    %v1293 = vunpack.c.l.b16 %v1261
    %v1294 = vunpack.c.l.b16 %v1262
    %v1295 = vunpack.c.l.b16 %v1263
    %v1296 = vunpack.c.l.b16 %v1264
    %v1297 = vpack.c.b16 %v1282, %v1281
    %v1298 = vpack.c.b16 %v1284, %v1283
    %v1299 = vpack.c.b16 %v1286, %v1285
    %v1300 = vpack.c.b16 %v1288, %v1287
    %v1301 = vpack.c.b16 %v1290, %v1289
    %v1302 = vpack.c.b16 %v1292, %v1291
    %v1303 = vpack.c.b16 %v1294, %v1293
    %v1304 = vpack.c.b16 %v1296, %v1295
    %1313 = vmatprep.subr.bf16.mxu0 0
    %1314 = vmatpush1.bf16.msra.mxu0 %v1304
    %1315 = vmatprep.subr.bf16.mxu0 0
    %1316 = vmatpush1.bf16.msra.mxu0 %v1303
    %1317 = vmatprep.subr.bf16.mxu0 0
    %1318 = vmatpush1.bf16.msra.mxu0 %v1302
    %1319 = vmatprep.subr.bf16.mxu0 0
    %1320 = vmatpush1.bf16.msra.mxu0 %v1301
    %1321 = vmatprep.subr.bf16.mxu0 0
    %1322 = vmatpush1.bf16.msra.mxu0 %v1300
    %1323 = vmatprep.subr.bf16.mxu0 0
    %1324 = vmatpush1.bf16.msra.mxu0 %v1299
    %1325 = vmatprep.subr.bf16.mxu0 0
    %1326 = vmatpush1.bf16.msra.mxu0 %v1298
    %1327 = vmatprep.subr.bf16.mxu0 0
    %1328 = vmatpush1.bf16.msra.mxu0 %v1297
    %1329 = vmatprep.subr.bf16.mxu0 0
    %1330 = vmatpush2.bf16.msra.mxu0 0
    %1331 = vmatprep.subr.bf16.mxu0 0
    %1332 = vmatpush2.bf16.msra.mxu0 0
    %1333 = vmatprep.subr.bf16.mxu0 0
    %1334 = vmatpush2.bf16.msra.mxu0 0
    %1335 = vmatprep.subr.bf16.mxu0 0
    %1336 = vmatpush2.bf16.msra.mxu0 0
    %1337 = vmatprep.subr.bf16.mxu0 0
    %1338 = vmatpush2.bf16.msra.mxu0 0
    %1339 = vmatprep.subr.bf16.mxu0 0
    %1340 = vmatpush2.bf16.msra.mxu0 0
    %1341 = vmatprep.subr.bf16.mxu0 0
    %1342 = vmatpush2.bf16.msra.mxu0 0
    %1343 = vmatprep.subr.bf16.mxu0 0
    %1344 = vmatpush2.bf16.msra.mxu0 0
    %1345 = vmatprep.mubr.bf16.mxu0 0
    %1346 = vmatmul.mubr.bf16.gmra.mxu0 %v1241
    %v1347 = vpop.f32.mrf.mxu0
    %v1348 = vadd.f32 0.0, %v1347
    %v1349 = vpop.f32.mrf.mxu0
    %v1350 = vpop.f32.mrf.mxu0
    %v1351 = vadd.f32 0.0, %v1350
    %v1352 = vpop.f32.mrf.mxu0
    %1353 = vmatprep.mubr.bf16.mxu0 0
    %1354 = vmatmul.mubr.bf16.gmra.mxu0 %v1242
    %v1355 = vpop.f32.mrf.mxu0
    %v1356 = vadd.f32 0.0, %v1355
    %v1357 = vpop.f32.mrf.mxu0
    %v1358 = vpop.f32.mrf.mxu0
    %v1359 = vadd.f32 0.0, %v1358
    %v1360 = vpop.f32.mrf.mxu0
    %1361 = vmatprep.mubr.bf16.mxu0 0
    %1362 = vmatmul.mubr.bf16.gmra.mxu0 %v1243
    %v1363 = vpop.f32.mrf.mxu0
    %v1364 = vadd.f32 0.0, %v1363
    %v1365 = vpop.f32.mrf.mxu0
    %v1366 = vpop.f32.mrf.mxu0
    %v1367 = vadd.f32 0.0, %v1366
    %v1368 = vpop.f32.mrf.mxu0
    %1369 = vmatprep.mubr.bf16.mxu0 0
    %1370 = vmatmul.mubr.bf16.gmra.mxu0 %v1244
    %v1371 = vpop.f32.mrf.mxu0
    %v1372 = vadd.f32 0.0, %v1371
    %v1373 = vpop.f32.mrf.mxu0
    %v1374 = vpop.f32.mrf.mxu0
    %v1375 = vadd.f32 0.0, %v1374
    %v1376 = vpop.f32.mrf.mxu0
    %1377 = vmatprep.mubr.bf16.mxu0 0
    %1378 = vmatmul.mubr.bf16.gmra.mxu0 %v1245
    %v1379 = vpop.f32.mrf.mxu0
    %v1380 = vadd.f32 0.0, %v1379
    %v1381 = vpop.f32.mrf.mxu0
    %v1382 = vpop.f32.mrf.mxu0
    %v1383 = vadd.f32 0.0, %v1382
    %v1384 = vpop.f32.mrf.mxu0
    %1385 = vmatprep.mubr.bf16.mxu0 0
    %1386 = vmatmul.mubr.bf16.gmra.mxu0 %v1246
    %v1387 = vpop.f32.mrf.mxu0
    %v1388 = vadd.f32 0.0, %v1387
    %v1389 = vpop.f32.mrf.mxu0
    %v1390 = vpop.f32.mrf.mxu0
    %v1391 = vadd.f32 0.0, %v1390
    %v1392 = vpop.f32.mrf.mxu0
    %1393 = vmatprep.mubr.bf16.mxu0 0
    %1394 = vmatmul.mubr.bf16.gmra.mxu0 %v1247
    %v1395 = vpop.f32.mrf.mxu0
    %v1396 = vadd.f32 0.0, %v1395
    %v1397 = vpop.f32.mrf.mxu0
    %v1398 = vpop.f32.mrf.mxu0
    %v1399 = vadd.f32 0.0, %v1398
    %v1400 = vpop.f32.mrf.mxu0
    %1401 = vmatprep.mubr.bf16.mxu0 0
    %1402 = vmatmul.mubr.bf16.gmra.mxu0 %v1248
    %v1403 = vpop.f32.mrf.mxu0
    %v1404 = vadd.f32 0.0, %v1403
    %v1405 = vpop.f32.mrf.mxu0
    %v1406 = vpop.f32.mrf.mxu0
    %v1407 = vadd.f32 0.0, %v1406
    %v1408 = vpop.f32.mrf.mxu0
    %1409 = vdwg.mxu0
    %v1410 = vadd.f32 %v336, %v1348
    %v1411 = vadd.f32 %v337, %v1351
    %v1412 = vadd.f32 %v338, %v1356
    %v1413 = vadd.f32 %v339, %v1359
    %v1414 = vadd.f32 %v340, %v1364
    %v1415 = vadd.f32 %v341, %v1367
    %v1416 = vadd.f32 %v342, %v1372
    %v1417 = vadd.f32 %v343, %v1375
    %v1418 = vadd.f32 %v344, %v1380
    %v1419 = vadd.f32 %v345, %v1383
    %v1420 = vadd.f32 %v346, %v1388
    %v1421 = vadd.f32 %v347, %v1391
    %v1422 = vadd.f32 %v348, %v1396
    %v1423 = vadd.f32 %v349, %v1399
    %v1424 = vadd.f32 %v350, %v1404
    %v1425 = vadd.f32 %v351, %v1407
    %v1426 = vld [vmem:[%s8] sm:$0x1]
    %v1428 = vlaneseq
    %v1429 = vshrl.u32 %v1428, 7
    %v1430 = vsub.s32 0, %v1429
    %v1431 = vrot.slane %v1426, %v1430
    %v1433 = vadd.f32 %v1410, %v1431
    %v1434 = vadd.f32 %v1411, %v1431
    %v1435 = vadd.f32 %v1412, %v1431
    %v1436 = vadd.f32 %v1413, %v1431
    %v1437 = vadd.f32 %v1414, %v1431
    %v1438 = vadd.f32 %v1415, %v1431
    %v1439 = vadd.f32 %v1416, %v1431
    %v1440 = vadd.f32 %v1417, %v1431
    %v1441 = vadd.f32 %v1418, %v1431
    %v1442 = vadd.f32 %v1419, %v1431
    %v1443 = vadd.f32 %v1420, %v1431
    %v1444 = vadd.f32 %v1421, %v1431
    %v1445 = vadd.f32 %v1422, %v1431
    %v1446 = vadd.f32 %v1423, %v1431
    %v1447 = vadd.f32 %v1424, %v1431
    %v1448 = vadd.f32 %v1425, %v1431
    %1449 = vst [vmem:[%s9] sm:$0xff] %v1433
    %1450 = vst [vmem:[%s9 + $0x8] sm:$0xff] %v1434
    %1451 = vst [vmem:[%s9 + $0x10] sm:$0xff] %v1435
    %1452 = vst [vmem:[%s9 + $0x18] sm:$0xff] %v1436
    %1453 = vst [vmem:[%s9 + $0x20] sm:$0xff] %v1437
    %1454 = vst [vmem:[%s9 + $0x28] sm:$0xff] %v1438
    %1455 = vst [vmem:[%s9 + $0x30] sm:$0xff] %v1439
    %1456 = vst [vmem:[%s9 + $0x38] sm:$0xff] %v1440
    %1457 = vst [vmem:[%s9 + $0x40] sm:$0xff] %v1441
    %1458 = vst [vmem:[%s9 + $0x48] sm:$0xff] %v1442
    %1459 = vst [vmem:[%s9 + $0x50] sm:$0xff] %v1443
    %1460 = vst [vmem:[%s9 + $0x58] sm:$0xff] %v1444
    %1461 = vst [vmem:[%s9 + $0x60] sm:$0xff] %v1445
    %1462 = vst [vmem:[%s9 + $0x68] sm:$0xff] %v1446
    %1463 = vst [vmem:[%s9 + $0x70] sm:$0xff] %v1447
    %1464 = vst [vmem:[%s9 + $0x78] sm:$0xff] %v1448
    %v1465 = vpack.c.bf16 %v1434, %v1433
    %v1466 = vpack.c.bf16 %v1436, %v1435
    %v1467 = vpack.c.bf16 %v1438, %v1437
    %v1468 = vpack.c.bf16 %v1440, %v1439
    %v1469 = vpack.c.bf16 %v1442, %v1441
    %v1470 = vpack.c.bf16 %v1444, %v1443
    %v1471 = vpack.c.bf16 %v1446, %v1445
    %v1472 = vpack.c.bf16 %v1448, %v1447
    %v1481 = vunpack.c.l.b16 %v1465
    %v1482 = vunpack.c.h.b16 %v1465
    %v1483 = vunpack.c.l.b16 %v1466
    %v1484 = vunpack.c.h.b16 %v1466
    %v1485 = vunpack.c.l.b16 %v1467
    %v1486 = vunpack.c.h.b16 %v1467
    %v1487 = vunpack.c.l.b16 %v1468
    %v1488 = vunpack.c.h.b16 %v1468
    %v1489 = vunpack.c.l.b16 %v1469
    %v1490 = vunpack.c.h.b16 %v1469
    %v1491 = vunpack.c.l.b16 %v1470
    %v1492 = vunpack.c.h.b16 %v1470
    %v1493 = vunpack.c.l.b16 %v1471
    %v1494 = vunpack.c.h.b16 %v1471
    %v1495 = vunpack.c.l.b16 %v1472
    %v1496 = vunpack.c.h.b16 %v1472
    %v1497 = vpack.c.b16 %v1481, %v1481
    %v1498 = vpack.c.b16 %v1482, %v1482
    %v1499 = vpack.c.b16 %v1483, %v1483
    %v1500 = vpack.c.b16 %v1484, %v1484
    %v1501 = vpack.c.b16 %v1485, %v1485
    %v1502 = vpack.c.b16 %v1486, %v1486
    %v1503 = vpack.c.b16 %v1487, %v1487
    %v1504 = vpack.c.b16 %v1488, %v1488
    %v1505 = vpack.c.b16 %v1489, %v1489
    %v1506 = vpack.c.b16 %v1490, %v1490
    %v1507 = vpack.c.b16 %v1491, %v1491
    %v1508 = vpack.c.b16 %v1492, %v1492
    %v1509 = vpack.c.b16 %v1493, %v1493
    %v1510 = vpack.c.b16 %v1494, %v1494
    %v1511 = vpack.c.b16 %v1495, %v1495
    %v1512 = vpack.c.b16 %v1496, %v1496
    %1529 = vst [vmem:[%s10] sm:$0xf] %v1497
    %1530 = vst [vmem:[%s10 + $0x4] sm:$0xf] %v1498
    %1531 = vst [vmem:[%s10 + $0x8] sm:$0xf] %v1499
    %1532 = vst [vmem:[%s10 + $0xc] sm:$0xf] %v1500
    %1533 = vst [vmem:[%s10 + $0x10] sm:$0xf] %v1501
    %1534 = vst [vmem:[%s10 + $0x14] sm:$0xf] %v1502
    %1535 = vst [vmem:[%s10 + $0x18] sm:$0xf] %v1503
    %1536 = vst [vmem:[%s10 + $0x1c] sm:$0xf] %v1504
    %1537 = vst [vmem:[%s10 + $0x20] sm:$0xf] %v1505
    %1538 = vst [vmem:[%s10 + $0x24] sm:$0xf] %v1506
    %1539 = vst [vmem:[%s10 + $0x28] sm:$0xf] %v1507
    %1540 = vst [vmem:[%s10 + $0x2c] sm:$0xf] %v1508
    %1541 = vst [vmem:[%s10 + $0x30] sm:$0xf] %v1509
    %1542 = vst [vmem:[%s10 + $0x34] sm:$0xf] %v1510
    %1543 = vst [vmem:[%s10 + $0x38] sm:$0xf] %v1511
    %1544 = vst [vmem:[%s10 + $0x3c] sm:$0xf] %v1512
  $region45: #{temporal_gnn_forward.4} parent=0 // pred_fallthru
    _
  // Predicated region
  $region46: #{temporal_gnn_forward.4} parent=0 // pred_check
    _
  $region47: #{temporal_gnn_forward.4} parent=0 // pred_check_branch
    %1546 = sbr.rel (0) target = $region49
  $region48: #{temporal_gnn_forward.4} parent=0 // pred_region
    _
  $region49: #{temporal_gnn_forward.4} parent=0 // pred_fallthru
    _
  // Predicated region
  $region50: #{temporal_gnn_forward.4} parent=0 // pred_check
    _
  $region51: #{temporal_gnn_forward.4} parent=0 // pred_check_branch
    %1548 = sbr.rel (0) target = $region53
  $region52: #{temporal_gnn_forward.4} parent=0 // pred_region
    _
  $region53: #{temporal_gnn_forward.4} parent=0 // pred_fallthru
    _
  // Predicated region
  $region54: #{temporal_gnn_forward.4} parent=0 // pred_check
    _
  $region55: #{temporal_gnn_forward.4} parent=0 // pred_check_branch
    %1550 = sbr.rel (0) target = $region57
  $region56: #{temporal_gnn_forward.4} parent=0 // pred_region
    _
  $region57: #{temporal_gnn_forward.4} parent=0 // pred_fallthru
    _
  // Predicated region
  $region58: #{temporal_gnn_forward.4} parent=0 // pred_check
    _
  $region59: #{temporal_gnn_forward.4} parent=0 // pred_check_branch
    %1552 = sbr.rel (0) target = $region61
  $region60: #{temporal_gnn_forward.4} parent=0 // pred_region
    _
  $region61: #{temporal_gnn_forward.4} parent=0 // pred_fallthru
    _

// kernel: temporal_gnn_forward.5
$region0: #{temporal_gnn_forward.5}
  #allocation0 [shape = 'u32[]', space=smem, size = 0x4, offset = 0x4, fixed_abs, tag = 'smem constant byte address 0x4 - core index']
  #allocation1 [shape = 'u32[144,128]{1,0:T(1,128)}', space=vmem, size = 0x12000, scoped, tag = 'internal scratch']
  #allocation2 [shape = 'f32[128,128]{1,0:T(8,128)}', space=vmem, size = 0x10000, scoped, tag = 'scratch operand']
  #allocation3 [shape = 'bf16[128,384]{1,0:T(8,128)(2,1)}', space=vmem, size = 0x18000, scoped, tag = 'scratch operand']
  %s0 = inlined_call_operand.vmem [shape: bf16[128,128], index: 0, kind: input, shape index: {}]
  %s1 = inlined_call_operand.vmem [shape: bf16[128,128], index: 1, kind: input, shape index: {}]
  %s2 = inlined_call_operand.vmem [shape: f32[128,128], index: 2, kind: input, shape index: {}, may-alias: {2,9}]
  %s3 = inlined_call_operand.vmem [shape: f32[128,1], index: 3, kind: input, shape index: {}]
  %s4 = inlined_call_operand.vmem [shape: bf16[128,128], index: 4, kind: input, shape index: {}]
  %s5 = inlined_call_operand.vmem [shape: bf16[384,128], index: 5, kind: input, shape index: {}]
  %s6 = inlined_call_operand.vmem [shape: f32[1,128], index: 6, kind: input, shape index: {}]
  %s7 = inlined_call_operand.vmem [shape: bf16[128,128], index: 7, kind: input, shape index: {}]
  %s8 = inlined_call_operand.vmem [shape: f32[1,128], index: 8, kind: input, shape index: {}]
  %s9 = inlined_call_operand.vmem [shape: f32[128,128], index: 9, kind: output, shape index: {0}, may-alias: {2,9}]
  %s10 = inlined_call_operand.hbm [shape: bf16[128,128], index: 10, kind: output, shape index: {1}]
  %11 = xla_tuple %s9, %s10
  %s12 = sld [smem:[#allocation0]]
  $region62: #{temporal_gnn_forward.5} parent=0
    _
  %s14 = ssub.s32 1, %s12
  %s15 = scalar_select 0, %s14, %s12
  $region1: #{temporal_gnn_forward.5} parent=0
    #allocation4 [shape = 'u8[32768]{0}', space=vmem, size = 0x8000, scoped, tag = 'output window, operand 1, single buffered']
    #allocation5 [shape = 's32[1]{0}', space=sflag, size = 0x4, scoped, tag = 'scoped memory for temporal_gnn_forward.5']
    %16 = vsyncpa [#allocation5], 0
    // Predicated region
    $region2: #{temporal_gnn_forward.5} parent=1 // pred_check
      _
    $region3: #{temporal_gnn_forward.5} parent=1 // pred_check_branch
      %18 = sbr.rel (0) target = $region5
    $region4: #{temporal_gnn_forward.5} parent=1 // pred_region
      _
    $region5: #{temporal_gnn_forward.5} parent=1 // pred_fallthru
      _
    // Predicated region
    $region6: #{temporal_gnn_forward.5} parent=1 // pred_check
      _
    $region7: #{temporal_gnn_forward.5} parent=1 // pred_check_branch
      %20 = sbr.rel (0) target = $region9
    $region8: #{temporal_gnn_forward.5} parent=1 // pred_region
      _
    $region9: #{temporal_gnn_forward.5} parent=1 // pred_fallthru
      _
    // Predicated region
    $region10: #{temporal_gnn_forward.5} parent=1 // pred_check
      _
    $region11: #{temporal_gnn_forward.5} parent=1 // pred_check_branch
      %22 = sbr.rel (0) target = $region13
    $region12: #{temporal_gnn_forward.5} parent=1 // pred_region
      _
    $region13: #{temporal_gnn_forward.5} parent=1 // pred_fallthru
      _
    // Predicated region
    $region14: #{temporal_gnn_forward.5} parent=1 // pred_check
      _
    $region15: #{temporal_gnn_forward.5} parent=1 // pred_check_branch
      %24 = sbr.rel (0) target = $region17
    $region16: #{temporal_gnn_forward.5} parent=1 // pred_region
      _
    $region17: #{temporal_gnn_forward.5} parent=1 // pred_fallthru
      _
    // Predicated region
    $region18: #{temporal_gnn_forward.5} parent=1 // pred_check
      _
    $region19: #{temporal_gnn_forward.5} parent=1 // pred_check_branch
      %26 = sbr.rel (0) target = $region21
    $region20: #{temporal_gnn_forward.5} parent=1 // pred_region
      _
    $region21: #{temporal_gnn_forward.5} parent=1 // pred_fallthru
      _
    // Predicated region
    $region22: #{temporal_gnn_forward.5} parent=1 // pred_check
      _
    $region23: #{temporal_gnn_forward.5} parent=1 // pred_check_branch
      %28 = sbr.rel (0) target = $region25
    $region24: #{temporal_gnn_forward.5} parent=1 // pred_region
      _
    $region25: #{temporal_gnn_forward.5} parent=1 // pred_fallthru
      _
    // Predicated region
    $region26: #{temporal_gnn_forward.5} parent=1 // pred_check
      _
    $region27: #{temporal_gnn_forward.5} parent=1 // pred_check_branch
      %30 = sbr.rel (0) target = $region29
    $region28: #{temporal_gnn_forward.5} parent=1 // pred_region
      _
    $region29: #{temporal_gnn_forward.5} parent=1 // pred_fallthru
      _
    // Predicated region
    $region30: #{temporal_gnn_forward.5} parent=1 // pred_check
      _
    $region31: #{temporal_gnn_forward.5} parent=1 // pred_check_branch
      %32 = sbr.rel (0) target = $region33
    $region32: #{temporal_gnn_forward.5} parent=1 // pred_region
      _
    $region33: #{temporal_gnn_forward.5} parent=1 // pred_fallthru
      _
    // Predicated region
    $region34: #{temporal_gnn_forward.5} parent=1 // pred_check
      _
    $region35: #{temporal_gnn_forward.5} parent=1 // pred_check_branch
      %34 = sbr.rel (0) target = $region37
    $region36: #{temporal_gnn_forward.5} parent=1 // pred_region
      _
    $region37: #{temporal_gnn_forward.5} parent=1 // pred_fallthru
      _
    %p36 = scmp.eq.s32.totalorder 0, 0
    // Predicated region
    $region38: #{temporal_gnn_forward.5} parent=1 // pred_check
      %p37 = pneg %p36
    $region39: #{temporal_gnn_forward.5} parent=1 // pred_check_branch
      %39 = sbr.rel (%p37) target = $region41
    $region40: #{temporal_gnn_forward.5} parent=1 // pred_region
      %40 = vst [vmem:[#allocation2] sm:$0xff] 0.0
      %41 = vst [vmem:[#allocation2 + $0x8] sm:$0xff] 0.0
      %42 = vst [vmem:[#allocation2 + $0x10] sm:$0xff] 0.0
      %43 = vst [vmem:[#allocation2 + $0x18] sm:$0xff] 0.0
      %44 = vst [vmem:[#allocation2 + $0x20] sm:$0xff] 0.0
      %45 = vst [vmem:[#allocation2 + $0x28] sm:$0xff] 0.0
      %46 = vst [vmem:[#allocation2 + $0x30] sm:$0xff] 0.0
      %47 = vst [vmem:[#allocation2 + $0x38] sm:$0xff] 0.0
      %48 = vst [vmem:[#allocation2 + $0x40] sm:$0xff] 0.0
      %49 = vst [vmem:[#allocation2 + $0x48] sm:$0xff] 0.0
      %50 = vst [vmem:[#allocation2 + $0x50] sm:$0xff] 0.0
      %51 = vst [vmem:[#allocation2 + $0x58] sm:$0xff] 0.0
      %52 = vst [vmem:[#allocation2 + $0x60] sm:$0xff] 0.0
      %53 = vst [vmem:[#allocation2 + $0x68] sm:$0xff] 0.0
      %54 = vst [vmem:[#allocation2 + $0x70] sm:$0xff] 0.0
      %55 = vst [vmem:[#allocation2 + $0x78] sm:$0xff] 0.0
    $region41: #{temporal_gnn_forward.5} parent=1 // pred_fallthru
      _
    %s56 = smul.u32 0, 128
    %s57 = sshra.s32 %s56, 3
    %s58 = sand.u32 %s56, 7
    %s59 = smul.addr %s57, 4
    %s60 = scalar_lea.vmem %s1, %s59
    %v61 = vld [vmem:[%s60] sm:$0xf]
    %v62 = vld [vmem:[%s60 + $0x4] sm:$0xf]
    %v63 = vld [vmem:[%s60 + $0x8] sm:$0xf]
    %v64 = vld [vmem:[%s60 + $0xc] sm:$0xf]
    %v65 = vld [vmem:[%s60 + $0x10] sm:$0xf]
    %v66 = vld [vmem:[%s60 + $0x14] sm:$0xf]
    %v67 = vld [vmem:[%s60 + $0x18] sm:$0xf]
    %v68 = vld [vmem:[%s60 + $0x1c] sm:$0xf]
    %v69 = vld [vmem:[%s60 + $0x20] sm:$0xf]
    %v70 = vld [vmem:[%s60 + $0x24] sm:$0xf]
    %v71 = vld [vmem:[%s60 + $0x28] sm:$0xf]
    %v72 = vld [vmem:[%s60 + $0x2c] sm:$0xf]
    %v73 = vld [vmem:[%s60 + $0x30] sm:$0xf]
    %v74 = vld [vmem:[%s60 + $0x34] sm:$0xf]
    %v75 = vld [vmem:[%s60 + $0x38] sm:$0xf]
    %v76 = vld [vmem:[%s60 + $0x3c] sm:$0xf]
    %v77 = vld [vmem:[#allocation2] sm:$0xff]
    %v78 = vld [vmem:[#allocation2 + $0x8] sm:$0xff]
    %v79 = vld [vmem:[#allocation2 + $0x10] sm:$0xff]
    %v80 = vld [vmem:[#allocation2 + $0x18] sm:$0xff]
    %v81 = vld [vmem:[#allocation2 + $0x20] sm:$0xff]
    %v82 = vld [vmem:[#allocation2 + $0x28] sm:$0xff]
    %v83 = vld [vmem:[#allocation2 + $0x30] sm:$0xff]
    %v84 = vld [vmem:[#allocation2 + $0x38] sm:$0xff]
    %v85 = vld [vmem:[#allocation2 + $0x40] sm:$0xff]
    %v86 = vld [vmem:[#allocation2 + $0x48] sm:$0xff]
    %v87 = vld [vmem:[#allocation2 + $0x50] sm:$0xff]
    %v88 = vld [vmem:[#allocation2 + $0x58] sm:$0xff]
    %v89 = vld [vmem:[#allocation2 + $0x60] sm:$0xff]
    %v90 = vld [vmem:[#allocation2 + $0x68] sm:$0xff]
    %v91 = vld [vmem:[#allocation2 + $0x70] sm:$0xff]
    %v92 = vld [vmem:[#allocation2 + $0x78] sm:$0xff]
    %v93 = vld [vmem:[%s0] sm:$0xf]
    %v94 = vld [vmem:[%s0 + $0x4] sm:$0xf]
    %v95 = vld [vmem:[%s0 + $0x8] sm:$0xf]
    %v96 = vld [vmem:[%s0 + $0xc] sm:$0xf]
    %v97 = vld [vmem:[%s0 + $0x10] sm:$0xf]
    %v98 = vld [vmem:[%s0 + $0x14] sm:$0xf]
    %v99 = vld [vmem:[%s0 + $0x18] sm:$0xf]
    %v100 = vld [vmem:[%s0 + $0x1c] sm:$0xf]
    %v101 = vld [vmem:[%s0 + $0x20] sm:$0xf]
    %v102 = vld [vmem:[%s0 + $0x24] sm:$0xf]
    %v103 = vld [vmem:[%s0 + $0x28] sm:$0xf]
    %v104 = vld [vmem:[%s0 + $0x2c] sm:$0xf]
    %v105 = vld [vmem:[%s0 + $0x30] sm:$0xf]
    %v106 = vld [vmem:[%s0 + $0x34] sm:$0xf]
    %v107 = vld [vmem:[%s0 + $0x38] sm:$0xf]
    %v108 = vld [vmem:[%s0 + $0x3c] sm:$0xf]
    %v125 = vunpack.c.l.b16 %v93
    %v126 = vunpack.c.l.b16 %v94
    %v127 = vunpack.c.l.b16 %v95
    %v128 = vunpack.c.l.b16 %v96
    %v129 = vunpack.c.l.b16 %v97
    %v130 = vunpack.c.l.b16 %v98
    %v131 = vunpack.c.l.b16 %v99
    %v132 = vunpack.c.l.b16 %v100
    %v133 = vunpack.c.l.b16 %v101
    %v134 = vunpack.c.l.b16 %v102
    %v135 = vunpack.c.l.b16 %v103
    %v136 = vunpack.c.l.b16 %v104
    %v137 = vunpack.c.l.b16 %v105
    %v138 = vunpack.c.l.b16 %v106
    %v139 = vunpack.c.l.b16 %v107
    %v140 = vunpack.c.l.b16 %v108
    %v141 = vpack.c.b16 %v126, %v125
    %v142 = vpack.c.b16 %v128, %v127
    %v143 = vpack.c.b16 %v130, %v129
    %v144 = vpack.c.b16 %v132, %v131
    %v145 = vpack.c.b16 %v134, %v133
    %v146 = vpack.c.b16 %v136, %v135
    %v147 = vpack.c.b16 %v138, %v137
    %v148 = vpack.c.b16 %v140, %v139
    %v173 = vunpack.c.l.b16 %v61
    %v174 = vunpack.c.l.b16 %v62
    %v175 = vunpack.c.l.b16 %v63
    %v176 = vunpack.c.l.b16 %v64
    %v177 = vunpack.c.l.b16 %v65
    %v178 = vunpack.c.l.b16 %v66
    %v179 = vunpack.c.l.b16 %v67
    %v180 = vunpack.c.l.b16 %v68
    %v181 = vunpack.c.l.b16 %v69
    %v182 = vunpack.c.l.b16 %v70
    %v183 = vunpack.c.l.b16 %v71
    %v184 = vunpack.c.l.b16 %v72
    %v185 = vunpack.c.l.b16 %v73
    %v186 = vunpack.c.l.b16 %v74
    %v187 = vunpack.c.l.b16 %v75
    %v188 = vunpack.c.l.b16 %v76
    %v189 = vpack.c.b16 %v174, %v173
    %v190 = vpack.c.b16 %v176, %v175
    %v191 = vpack.c.b16 %v178, %v177
    %v192 = vpack.c.b16 %v180, %v179
    %v193 = vpack.c.b16 %v182, %v181
    %v194 = vpack.c.b16 %v184, %v183
    %v195 = vpack.c.b16 %v186, %v185
    %v196 = vpack.c.b16 %v188, %v187
    %205 = vmatprep.subr.bf16.mxu0 0
    %206 = vmatpush1.bf16.msra.mxu0 %v196
    %207 = vmatprep.subr.bf16.mxu0 0
    %208 = vmatpush1.bf16.msra.mxu0 %v195
    %209 = vmatprep.subr.bf16.mxu0 0
    %210 = vmatpush1.bf16.msra.mxu0 %v194
    %211 = vmatprep.subr.bf16.mxu0 0
    %212 = vmatpush1.bf16.msra.mxu0 %v193
    %213 = vmatprep.subr.bf16.mxu0 0
    %214 = vmatpush1.bf16.msra.mxu0 %v192
    %215 = vmatprep.subr.bf16.mxu0 0
    %216 = vmatpush1.bf16.msra.mxu0 %v191
    %217 = vmatprep.subr.bf16.mxu0 0
    %218 = vmatpush1.bf16.msra.mxu0 %v190
    %219 = vmatprep.subr.bf16.mxu0 0
    %220 = vmatpush1.bf16.msra.mxu0 %v189
    %221 = vmatprep.subr.bf16.mxu0 0
    %222 = vmatpush2.bf16.msra.mxu0 0
    %223 = vmatprep.subr.bf16.mxu0 0
    %224 = vmatpush2.bf16.msra.mxu0 0
    %225 = vmatprep.subr.bf16.mxu0 0
    %226 = vmatpush2.bf16.msra.mxu0 0
    %227 = vmatprep.subr.bf16.mxu0 0
    %228 = vmatpush2.bf16.msra.mxu0 0
    %229 = vmatprep.subr.bf16.mxu0 0
    %230 = vmatpush2.bf16.msra.mxu0 0
    %231 = vmatprep.subr.bf16.mxu0 0
    %232 = vmatpush2.bf16.msra.mxu0 0
    %233 = vmatprep.subr.bf16.mxu0 0
    %234 = vmatpush2.bf16.msra.mxu0 0
    %235 = vmatprep.subr.bf16.mxu0 0
    %236 = vmatpush2.bf16.msra.mxu0 0
    %237 = vmatprep.mubr.bf16.mxu0 0
    %238 = vmatmul.mubr.bf16.gmra.mxu0 %v141
    %v239 = vpop.f32.mrf.mxu0
    %v240 = vadd.f32 0.0, %v239
    %v241 = vpop.f32.mrf.mxu0
    %v242 = vpop.f32.mrf.mxu0
    %v243 = vadd.f32 0.0, %v242
    %v244 = vpop.f32.mrf.mxu0
    %245 = vmatprep.mubr.bf16.mxu0 0
    %246 = vmatmul.mubr.bf16.gmra.mxu0 %v142
    %v247 = vpop.f32.mrf.mxu0
    %v248 = vadd.f32 0.0, %v247
    %v249 = vpop.f32.mrf.mxu0
    %v250 = vpop.f32.mrf.mxu0
    %v251 = vadd.f32 0.0, %v250
    %v252 = vpop.f32.mrf.mxu0
    %253 = vmatprep.mubr.bf16.mxu0 0
    %254 = vmatmul.mubr.bf16.gmra.mxu0 %v143
    %v255 = vpop.f32.mrf.mxu0
    %v256 = vadd.f32 0.0, %v255
    %v257 = vpop.f32.mrf.mxu0
    %v258 = vpop.f32.mrf.mxu0
    %v259 = vadd.f32 0.0, %v258
    %v260 = vpop.f32.mrf.mxu0
    %261 = vmatprep.mubr.bf16.mxu0 0
    %262 = vmatmul.mubr.bf16.gmra.mxu0 %v144
    %v263 = vpop.f32.mrf.mxu0
    %v264 = vadd.f32 0.0, %v263
    %v265 = vpop.f32.mrf.mxu0
    %v266 = vpop.f32.mrf.mxu0
    %v267 = vadd.f32 0.0, %v266
    %v268 = vpop.f32.mrf.mxu0
    %269 = vmatprep.mubr.bf16.mxu0 0
    %270 = vmatmul.mubr.bf16.gmra.mxu0 %v145
    %v271 = vpop.f32.mrf.mxu0
    %v272 = vadd.f32 0.0, %v271
    %v273 = vpop.f32.mrf.mxu0
    %v274 = vpop.f32.mrf.mxu0
    %v275 = vadd.f32 0.0, %v274
    %v276 = vpop.f32.mrf.mxu0
    %277 = vmatprep.mubr.bf16.mxu0 0
    %278 = vmatmul.mubr.bf16.gmra.mxu0 %v146
    %v279 = vpop.f32.mrf.mxu0
    %v280 = vadd.f32 0.0, %v279
    %v281 = vpop.f32.mrf.mxu0
    %v282 = vpop.f32.mrf.mxu0
    %v283 = vadd.f32 0.0, %v282
    %v284 = vpop.f32.mrf.mxu0
    %285 = vmatprep.mubr.bf16.mxu0 0
    %286 = vmatmul.mubr.bf16.gmra.mxu0 %v147
    %v287 = vpop.f32.mrf.mxu0
    %v288 = vadd.f32 0.0, %v287
    %v289 = vpop.f32.mrf.mxu0
    %v290 = vpop.f32.mrf.mxu0
    %v291 = vadd.f32 0.0, %v290
    %v292 = vpop.f32.mrf.mxu0
    %293 = vmatprep.mubr.bf16.mxu0 0
    %294 = vmatmul.mubr.bf16.gmra.mxu0 %v148
    %v295 = vpop.f32.mrf.mxu0
    %v296 = vadd.f32 0.0, %v295
    %v297 = vpop.f32.mrf.mxu0
    %v298 = vpop.f32.mrf.mxu0
    %v299 = vadd.f32 0.0, %v298
    %v300 = vpop.f32.mrf.mxu0
    %301 = vdwg.mxu0
    %v302 = vadd.f32 %v77, %v240
    %v303 = vadd.f32 %v78, %v243
    %v304 = vadd.f32 %v79, %v248
    %v305 = vadd.f32 %v80, %v251
    %v306 = vadd.f32 %v81, %v256
    %v307 = vadd.f32 %v82, %v259
    %v308 = vadd.f32 %v83, %v264
    %v309 = vadd.f32 %v84, %v267
    %v310 = vadd.f32 %v85, %v272
    %v311 = vadd.f32 %v86, %v275
    %v312 = vadd.f32 %v87, %v280
    %v313 = vadd.f32 %v88, %v283
    %v314 = vadd.f32 %v89, %v288
    %v315 = vadd.f32 %v90, %v291
    %v316 = vadd.f32 %v91, %v296
    %v317 = vadd.f32 %v92, %v299
    %318 = vst [vmem:[#allocation2] sm:$0xff] %v302
    %319 = vst [vmem:[#allocation2 + $0x8] sm:$0xff] %v303
    %320 = vst [vmem:[#allocation2 + $0x10] sm:$0xff] %v304
    %321 = vst [vmem:[#allocation2 + $0x18] sm:$0xff] %v305
    %322 = vst [vmem:[#allocation2 + $0x20] sm:$0xff] %v306
    %323 = vst [vmem:[#allocation2 + $0x28] sm:$0xff] %v307
    %324 = vst [vmem:[#allocation2 + $0x30] sm:$0xff] %v308
    %325 = vst [vmem:[#allocation2 + $0x38] sm:$0xff] %v309
    %326 = vst [vmem:[#allocation2 + $0x40] sm:$0xff] %v310
    %327 = vst [vmem:[#allocation2 + $0x48] sm:$0xff] %v311
    %328 = vst [vmem:[#allocation2 + $0x50] sm:$0xff] %v312
    %329 = vst [vmem:[#allocation2 + $0x58] sm:$0xff] %v313
    %330 = vst [vmem:[#allocation2 + $0x60] sm:$0xff] %v314
    %331 = vst [vmem:[#allocation2 + $0x68] sm:$0xff] %v315
    %332 = vst [vmem:[#allocation2 + $0x70] sm:$0xff] %v316
    %333 = vst [vmem:[#allocation2 + $0x78] sm:$0xff] %v317
    // Predicated region
    $region42: #{temporal_gnn_forward.5} parent=1 // pred_check
      %p334 = pneg %p36
    $region43: #{temporal_gnn_forward.5} parent=1 // pred_check_branch
      %336 = sbr.rel (%p334) target = $region45
    $region44: #{temporal_gnn_forward.5} parent=1 // pred_region
      %v337 = vld [vmem:[%s2] sm:$0xff]
      %v338 = vld [vmem:[%s2 + $0x8] sm:$0xff]
      %v339 = vld [vmem:[%s2 + $0x10] sm:$0xff]
      %v340 = vld [vmem:[%s2 + $0x18] sm:$0xff]
      %v341 = vld [vmem:[%s2 + $0x20] sm:$0xff]
      %v342 = vld [vmem:[%s2 + $0x28] sm:$0xff]
      %v343 = vld [vmem:[%s2 + $0x30] sm:$0xff]
      %v344 = vld [vmem:[%s2 + $0x38] sm:$0xff]
      %v345 = vld [vmem:[%s2 + $0x40] sm:$0xff]
      %v346 = vld [vmem:[%s2 + $0x48] sm:$0xff]
      %v347 = vld [vmem:[%s2 + $0x50] sm:$0xff]
      %v348 = vld [vmem:[%s2 + $0x58] sm:$0xff]
      %v349 = vld [vmem:[%s2 + $0x60] sm:$0xff]
      %v350 = vld [vmem:[%s2 + $0x68] sm:$0xff]
      %v351 = vld [vmem:[%s2 + $0x70] sm:$0xff]
      %v352 = vld [vmem:[%s2 + $0x78] sm:$0xff]
      %v353 = vld [vmem:[#allocation2] sm:$0xff]
      %v354 = vld [vmem:[#allocation2 + $0x8] sm:$0xff]
      %v355 = vld [vmem:[#allocation2 + $0x10] sm:$0xff]
      %v356 = vld [vmem:[#allocation2 + $0x18] sm:$0xff]
      %v357 = vld [vmem:[#allocation2 + $0x20] sm:$0xff]
      %v358 = vld [vmem:[#allocation2 + $0x28] sm:$0xff]
      %v359 = vld [vmem:[#allocation2 + $0x30] sm:$0xff]
      %v360 = vld [vmem:[#allocation2 + $0x38] sm:$0xff]
      %v361 = vld [vmem:[#allocation2 + $0x40] sm:$0xff]
      %v362 = vld [vmem:[#allocation2 + $0x48] sm:$0xff]
      %v363 = vld [vmem:[#allocation2 + $0x50] sm:$0xff]
      %v364 = vld [vmem:[#allocation2 + $0x58] sm:$0xff]
      %v365 = vld [vmem:[#allocation2 + $0x60] sm:$0xff]
      %v366 = vld [vmem:[#allocation2 + $0x68] sm:$0xff]
      %v367 = vld [vmem:[#allocation2 + $0x70] sm:$0xff]
      %v368 = vld [vmem:[#allocation2 + $0x78] sm:$0xff]
      %v369 = vld [vmem:[%s3] sm:$0xff]
      %v370 = vld [vmem:[%s3 + $0x8] sm:$0xff]
      %v371 = vld [vmem:[%s3 + $0x10] sm:$0xff]
      %v372 = vld [vmem:[%s3 + $0x18] sm:$0xff]
      %v373 = vld [vmem:[%s3 + $0x20] sm:$0xff]
      %v374 = vld [vmem:[%s3 + $0x28] sm:$0xff]
      %v375 = vld [vmem:[%s3 + $0x30] sm:$0xff]
      %v376 = vld [vmem:[%s3 + $0x38] sm:$0xff]
      %v377 = vld [vmem:[%s3 + $0x40] sm:$0xff]
      %v378 = vld [vmem:[%s3 + $0x48] sm:$0xff]
      %v379 = vld [vmem:[%s3 + $0x50] sm:$0xff]
      %v380 = vld [vmem:[%s3 + $0x58] sm:$0xff]
      %v381 = vld [vmem:[%s3 + $0x60] sm:$0xff]
      %v382 = vld [vmem:[%s3 + $0x68] sm:$0xff]
      %v383 = vld [vmem:[%s3 + $0x70] sm:$0xff]
      %v384 = vld [vmem:[%s3 + $0x78] sm:$0xff]
      %386 = vset.pattern.permute.xlu0 0
      %387 = vperm.xlu0 %386, %v369
      %v388 = vpop.permute.xlu0 %387
      %391 = vset.pattern.permute.xlu0 0
      %392 = vperm.xlu0 %391, %v370
      %v393 = vpop.permute.xlu0 %392
      %396 = vset.pattern.permute.xlu0 0
      %397 = vperm.xlu0 %396, %v371
      %v398 = vpop.permute.xlu0 %397
      %401 = vset.pattern.permute.xlu0 0
      %402 = vperm.xlu0 %401, %v372
      %v403 = vpop.permute.xlu0 %402
      %406 = vset.pattern.permute.xlu0 0
      %407 = vperm.xlu0 %406, %v373
      %v408 = vpop.permute.xlu0 %407
      %411 = vset.pattern.permute.xlu0 0
      %412 = vperm.xlu0 %411, %v374
      %v413 = vpop.permute.xlu0 %412
      %416 = vset.pattern.permute.xlu0 0
      %417 = vperm.xlu0 %416, %v375
      %v418 = vpop.permute.xlu0 %417
      %421 = vset.pattern.permute.xlu0 0
      %422 = vperm.xlu0 %421, %v376
      %v423 = vpop.permute.xlu0 %422
      %426 = vset.pattern.permute.xlu0 0
      %427 = vperm.xlu0 %426, %v377
      %v428 = vpop.permute.xlu0 %427
      %431 = vset.pattern.permute.xlu0 0
      %432 = vperm.xlu0 %431, %v378
      %v433 = vpop.permute.xlu0 %432
      %436 = vset.pattern.permute.xlu0 0
      %437 = vperm.xlu0 %436, %v379
      %v438 = vpop.permute.xlu0 %437
      %441 = vset.pattern.permute.xlu0 0
      %442 = vperm.xlu0 %441, %v380
      %v443 = vpop.permute.xlu0 %442
      %446 = vset.pattern.permute.xlu0 0
      %447 = vperm.xlu0 %446, %v381
      %v448 = vpop.permute.xlu0 %447
      %451 = vset.pattern.permute.xlu0 0
      %452 = vperm.xlu0 %451, %v382
      %v453 = vpop.permute.xlu0 %452
      %456 = vset.pattern.permute.xlu0 0
      %457 = vperm.xlu0 %456, %v383
      %v458 = vpop.permute.xlu0 %457
      %461 = vset.pattern.permute.xlu0 0
      %462 = vperm.xlu0 %461, %v384
      %v463 = vpop.permute.xlu0 %462
      %v465 = vmul.f32 %v353, %v388
      %v466 = vmul.f32 %v354, %v393
      %v467 = vmul.f32 %v355, %v398
      %v468 = vmul.f32 %v356, %v403
      %v469 = vmul.f32 %v357, %v408
      %v470 = vmul.f32 %v358, %v413
      %v471 = vmul.f32 %v359, %v418
      %v472 = vmul.f32 %v360, %v423
      %v473 = vmul.f32 %v361, %v428
      %v474 = vmul.f32 %v362, %v433
      %v475 = vmul.f32 %v363, %v438
      %v476 = vmul.f32 %v364, %v443
      %v477 = vmul.f32 %v365, %v448
      %v478 = vmul.f32 %v366, %v453
      %v479 = vmul.f32 %v367, %v458
      %v480 = vmul.f32 %v368, %v463
      %v481 = vpack.c.bf16 %v338, %v337
      %v482 = vpack.c.bf16 %v340, %v339
      %v483 = vpack.c.bf16 %v342, %v341
      %v484 = vpack.c.bf16 %v344, %v343
      %v485 = vpack.c.bf16 %v346, %v345
      %v486 = vpack.c.bf16 %v348, %v347
      %v487 = vpack.c.bf16 %v350, %v349
      %v488 = vpack.c.bf16 %v352, %v351
      %v497 = vunpack.c.l.b16 %v481
      %v498 = vunpack.c.h.b16 %v481
      %v499 = vunpack.c.l.b16 %v482
      %v500 = vunpack.c.h.b16 %v482
      %v501 = vunpack.c.l.b16 %v483
      %v502 = vunpack.c.h.b16 %v483
      %v503 = vunpack.c.l.b16 %v484
      %v504 = vunpack.c.h.b16 %v484
      %v505 = vunpack.c.l.b16 %v485
      %v506 = vunpack.c.h.b16 %v485
      %v507 = vunpack.c.l.b16 %v486
      %v508 = vunpack.c.h.b16 %v486
      %v509 = vunpack.c.l.b16 %v487
      %v510 = vunpack.c.h.b16 %v487
      %v511 = vunpack.c.l.b16 %v488
      %v512 = vunpack.c.h.b16 %v488
      %v513 = vpack.c.b16 %v497, %v497
      %v514 = vpack.c.b16 %v498, %v498
      %v515 = vpack.c.b16 %v499, %v499
      %v516 = vpack.c.b16 %v500, %v500
      %v517 = vpack.c.b16 %v501, %v501
      %v518 = vpack.c.b16 %v502, %v502
      %v519 = vpack.c.b16 %v503, %v503
      %v520 = vpack.c.b16 %v504, %v504
      %v521 = vpack.c.b16 %v505, %v505
      %v522 = vpack.c.b16 %v506, %v506
      %v523 = vpack.c.b16 %v507, %v507
      %v524 = vpack.c.b16 %v508, %v508
      %v525 = vpack.c.b16 %v509, %v509
      %v526 = vpack.c.b16 %v510, %v510
      %v527 = vpack.c.b16 %v511, %v511
      %v528 = vpack.c.b16 %v512, %v512
      %545 = vst [vmem:[#allocation3] sm:$0xf] %v513
      %546 = vst [vmem:[#allocation3 + $0xc] sm:$0xf] %v514
      %547 = vst [vmem:[#allocation3 + $0x18] sm:$0xf] %v515
      %548 = vst [vmem:[#allocation3 + $0x24] sm:$0xf] %v516
      %549 = vst [vmem:[#allocation3 + $0x30] sm:$0xf] %v517
      %550 = vst [vmem:[#allocation3 + $0x3c] sm:$0xf] %v518
      %551 = vst [vmem:[#allocation3 + $0x48] sm:$0xf] %v519
      %552 = vst [vmem:[#allocation3 + $0x54] sm:$0xf] %v520
      %553 = vst [vmem:[#allocation3 + $0x60] sm:$0xf] %v521
      %554 = vst [vmem:[#allocation3 + $0x6c] sm:$0xf] %v522
      %555 = vst [vmem:[#allocation3 + $0x78] sm:$0xf] %v523
      %556 = vst [vmem:[#allocation3 + $0x84] sm:$0xf] %v524
      %557 = vst [vmem:[#allocation3 + $0x90] sm:$0xf] %v525
      %558 = vst [vmem:[#allocation3 + $0x9c] sm:$0xf] %v526
      %559 = vst [vmem:[#allocation3 + $0xa8] sm:$0xf] %v527
      %560 = vst [vmem:[#allocation3 + $0xb4] sm:$0xf] %v528
      %v561 = vpack.c.bf16 %v466, %v465
      %v562 = vpack.c.bf16 %v468, %v467
      %v563 = vpack.c.bf16 %v470, %v469
      %v564 = vpack.c.bf16 %v472, %v471
      %v565 = vpack.c.bf16 %v474, %v473
      %v566 = vpack.c.bf16 %v476, %v475
      %v567 = vpack.c.bf16 %v478, %v477
      %v568 = vpack.c.bf16 %v480, %v479
      %v577 = vunpack.c.l.b16 %v561
      %v578 = vunpack.c.h.b16 %v561
      %v579 = vunpack.c.l.b16 %v562
      %v580 = vunpack.c.h.b16 %v562
      %v581 = vunpack.c.l.b16 %v563
      %v582 = vunpack.c.h.b16 %v563
      %v583 = vunpack.c.l.b16 %v564
      %v584 = vunpack.c.h.b16 %v564
      %v585 = vunpack.c.l.b16 %v565
      %v586 = vunpack.c.h.b16 %v565
      %v587 = vunpack.c.l.b16 %v566
      %v588 = vunpack.c.h.b16 %v566
      %v589 = vunpack.c.l.b16 %v567
      %v590 = vunpack.c.h.b16 %v567
      %v591 = vunpack.c.l.b16 %v568
      %v592 = vunpack.c.h.b16 %v568
      %v593 = vpack.c.b16 %v577, %v577
      %v594 = vpack.c.b16 %v578, %v578
      %v595 = vpack.c.b16 %v579, %v579
      %v596 = vpack.c.b16 %v580, %v580
      %v597 = vpack.c.b16 %v581, %v581
      %v598 = vpack.c.b16 %v582, %v582
      %v599 = vpack.c.b16 %v583, %v583
      %v600 = vpack.c.b16 %v584, %v584
      %v601 = vpack.c.b16 %v585, %v585
      %v602 = vpack.c.b16 %v586, %v586
      %v603 = vpack.c.b16 %v587, %v587
      %v604 = vpack.c.b16 %v588, %v588
      %v605 = vpack.c.b16 %v589, %v589
      %v606 = vpack.c.b16 %v590, %v590
      %v607 = vpack.c.b16 %v591, %v591
      %v608 = vpack.c.b16 %v592, %v592
      %625 = vst [vmem:[#allocation3 + $0x4] sm:$0xf] %v593
      %626 = vst [vmem:[#allocation3 + $0x10] sm:$0xf] %v594
      %627 = vst [vmem:[#allocation3 + $0x1c] sm:$0xf] %v595
      %628 = vst [vmem:[#allocation3 + $0x28] sm:$0xf] %v596
      %629 = vst [vmem:[#allocation3 + $0x34] sm:$0xf] %v597
      %630 = vst [vmem:[#allocation3 + $0x40] sm:$0xf] %v598
      %631 = vst [vmem:[#allocation3 + $0x4c] sm:$0xf] %v599
      %632 = vst [vmem:[#allocation3 + $0x58] sm:$0xf] %v600
      %633 = vst [vmem:[#allocation3 + $0x64] sm:$0xf] %v601
      %634 = vst [vmem:[#allocation3 + $0x70] sm:$0xf] %v602
      %635 = vst [vmem:[#allocation3 + $0x7c] sm:$0xf] %v603
      %636 = vst [vmem:[#allocation3 + $0x88] sm:$0xf] %v604
      %637 = vst [vmem:[#allocation3 + $0x94] sm:$0xf] %v605
      %638 = vst [vmem:[#allocation3 + $0xa0] sm:$0xf] %v606
      %639 = vst [vmem:[#allocation3 + $0xac] sm:$0xf] %v607
      %640 = vst [vmem:[#allocation3 + $0xb8] sm:$0xf] %v608
      %v641 = vld [vmem:[%s4] sm:$0xf]
      %v642 = vld [vmem:[%s4 + $0x4] sm:$0xf]
      %v643 = vld [vmem:[%s4 + $0x8] sm:$0xf]
      %v644 = vld [vmem:[%s4 + $0xc] sm:$0xf]
      %v645 = vld [vmem:[%s4 + $0x10] sm:$0xf]
      %v646 = vld [vmem:[%s4 + $0x14] sm:$0xf]
      %v647 = vld [vmem:[%s4 + $0x18] sm:$0xf]
      %v648 = vld [vmem:[%s4 + $0x1c] sm:$0xf]
      %v649 = vld [vmem:[%s4 + $0x20] sm:$0xf]
      %v650 = vld [vmem:[%s4 + $0x24] sm:$0xf]
      %v651 = vld [vmem:[%s4 + $0x28] sm:$0xf]
      %v652 = vld [vmem:[%s4 + $0x2c] sm:$0xf]
      %v653 = vld [vmem:[%s4 + $0x30] sm:$0xf]
      %v654 = vld [vmem:[%s4 + $0x34] sm:$0xf]
      %v655 = vld [vmem:[%s4 + $0x38] sm:$0xf]
      %v656 = vld [vmem:[%s4 + $0x3c] sm:$0xf]
      %657 = vst [vmem:[#allocation3 + $0x8] sm:$0xf] %v641
      %658 = vst [vmem:[#allocation3 + $0x14] sm:$0xf] %v642
      %659 = vst [vmem:[#allocation3 + $0x20] sm:$0xf] %v643
      %660 = vst [vmem:[#allocation3 + $0x2c] sm:$0xf] %v644
      %661 = vst [vmem:[#allocation3 + $0x38] sm:$0xf] %v645
      %662 = vst [vmem:[#allocation3 + $0x44] sm:$0xf] %v646
      %663 = vst [vmem:[#allocation3 + $0x50] sm:$0xf] %v647
      %664 = vst [vmem:[#allocation3 + $0x5c] sm:$0xf] %v648
      %665 = vst [vmem:[#allocation3 + $0x68] sm:$0xf] %v649
      %666 = vst [vmem:[#allocation3 + $0x74] sm:$0xf] %v650
      %667 = vst [vmem:[#allocation3 + $0x80] sm:$0xf] %v651
      %668 = vst [vmem:[#allocation3 + $0x8c] sm:$0xf] %v652
      %669 = vst [vmem:[#allocation3 + $0x98] sm:$0xf] %v653
      %670 = vst [vmem:[#allocation3 + $0xa4] sm:$0xf] %v654
      %671 = vst [vmem:[#allocation3 + $0xb0] sm:$0xf] %v655
      %672 = vst [vmem:[#allocation3 + $0xbc] sm:$0xf] %v656
      %v673 = vld [vmem:[#allocation3] sm:$0xff]
      %v674 = vld [vmem:[#allocation3 + $0x8] sm:$0xf]
      %v675 = vld [vmem:[#allocation3 + $0xc] sm:$0xff]
      %v676 = vld [vmem:[#allocation3 + $0x14] sm:$0xf]
      %v677 = vld [vmem:[#allocation3 + $0x18] sm:$0xff]
      %v678 = vld [vmem:[#allocation3 + $0x20] sm:$0xf]
      %v679 = vld [vmem:[#allocation3 + $0x24] sm:$0xff]
      %v680 = vld [vmem:[#allocation3 + $0x2c] sm:$0xf]
      %v681 = vld [vmem:[#allocation3 + $0x30] sm:$0xff]
      %v682 = vld [vmem:[#allocation3 + $0x38] sm:$0xf]
      %v683 = vld [vmem:[#allocation3 + $0x3c] sm:$0xff]
      %v684 = vld [vmem:[#allocation3 + $0x44] sm:$0xf]
      %v685 = vld [vmem:[#allocation3 + $0x48] sm:$0xff]
      %v686 = vld [vmem:[#allocation3 + $0x50] sm:$0xf]
      %v687 = vld [vmem:[#allocation3 + $0x54] sm:$0xff]
      %v688 = vld [vmem:[#allocation3 + $0x5c] sm:$0xf]
      %v689 = vld [vmem:[#allocation3 + $0x60] sm:$0xff]
      %v690 = vld [vmem:[#allocation3 + $0x68] sm:$0xf]
      %v691 = vld [vmem:[#allocation3 + $0x6c] sm:$0xff]
      %v692 = vld [vmem:[#allocation3 + $0x74] sm:$0xf]
      %v693 = vld [vmem:[#allocation3 + $0x78] sm:$0xff]
      %v694 = vld [vmem:[#allocation3 + $0x80] sm:$0xf]
      %v695 = vld [vmem:[#allocation3 + $0x84] sm:$0xff]
      %v696 = vld [vmem:[#allocation3 + $0x8c] sm:$0xf]
      %v697 = vld [vmem:[#allocation3 + $0x90] sm:$0xff]
      %v698 = vld [vmem:[#allocation3 + $0x98] sm:$0xf]
      %v699 = vld [vmem:[#allocation3 + $0x9c] sm:$0xff]
      %v700 = vld [vmem:[#allocation3 + $0xa4] sm:$0xf]
      %v701 = vld [vmem:[#allocation3 + $0xa8] sm:$0xff]
      %v702 = vld [vmem:[#allocation3 + $0xb0] sm:$0xf]
      %v703 = vld [vmem:[#allocation3 + $0xb4] sm:$0xff]
      %v704 = vld [vmem:[#allocation3 + $0xbc] sm:$0xf]
      %v705 = vld [vmem:[%s5] sm:$0xf]
      %v706 = vld [vmem:[%s5 + $0x4] sm:$0xf]
      %v707 = vld [vmem:[%s5 + $0x8] sm:$0xf]
      %v708 = vld [vmem:[%s5 + $0xc] sm:$0xf]
      %v709 = vld [vmem:[%s5 + $0x10] sm:$0xf]
      %v710 = vld [vmem:[%s5 + $0x14] sm:$0xf]
      %v711 = vld [vmem:[%s5 + $0x18] sm:$0xf]
      %v712 = vld [vmem:[%s5 + $0x1c] sm:$0xf]
      %v713 = vld [vmem:[%s5 + $0x20] sm:$0xf]
      %v714 = vld [vmem:[%s5 + $0x24] sm:$0xf]
      %v715 = vld [vmem:[%s5 + $0x28] sm:$0xf]
      %v716 = vld [vmem:[%s5 + $0x2c] sm:$0xf]
      %v717 = vld [vmem:[%s5 + $0x30] sm:$0xf]
      %v718 = vld [vmem:[%s5 + $0x34] sm:$0xf]
      %v719 = vld [vmem:[%s5 + $0x38] sm:$0xf]
      %v720 = vld [vmem:[%s5 + $0x3c] sm:$0xf]
      %v721 = vld [vmem:[%s5 + $0x40] sm:$0xf]
      %v722 = vld [vmem:[%s5 + $0x44] sm:$0xf]
      %v723 = vld [vmem:[%s5 + $0x48] sm:$0xf]
      %v724 = vld [vmem:[%s5 + $0x4c] sm:$0xf]
      %v725 = vld [vmem:[%s5 + $0x50] sm:$0xf]
      %v726 = vld [vmem:[%s5 + $0x54] sm:$0xf]
      %v727 = vld [vmem:[%s5 + $0x58] sm:$0xf]
      %v728 = vld [vmem:[%s5 + $0x5c] sm:$0xf]
      %v729 = vld [vmem:[%s5 + $0x60] sm:$0xf]
      %v730 = vld [vmem:[%s5 + $0x64] sm:$0xf]
      %v731 = vld [vmem:[%s5 + $0x68] sm:$0xf]
      %v732 = vld [vmem:[%s5 + $0x6c] sm:$0xf]
      %v733 = vld [vmem:[%s5 + $0x70] sm:$0xf]
      %v734 = vld [vmem:[%s5 + $0x74] sm:$0xf]
      %v735 = vld [vmem:[%s5 + $0x78] sm:$0xf]
      %v736 = vld [vmem:[%s5 + $0x7c] sm:$0xf]
      %v737 = vld [vmem:[%s5 + $0x80] sm:$0xf]
      %v738 = vld [vmem:[%s5 + $0x84] sm:$0xf]
      %v739 = vld [vmem:[%s5 + $0x88] sm:$0xf]
      %v740 = vld [vmem:[%s5 + $0x8c] sm:$0xf]
      %v741 = vld [vmem:[%s5 + $0x90] sm:$0xf]
      %v742 = vld [vmem:[%s5 + $0x94] sm:$0xf]
      %v743 = vld [vmem:[%s5 + $0x98] sm:$0xf]
      %v744 = vld [vmem:[%s5 + $0x9c] sm:$0xf]
      %v745 = vld [vmem:[%s5 + $0xa0] sm:$0xf]
      %v746 = vld [vmem:[%s5 + $0xa4] sm:$0xf]
      %v747 = vld [vmem:[%s5 + $0xa8] sm:$0xf]
      %v748 = vld [vmem:[%s5 + $0xac] sm:$0xf]
      %v749 = vld [vmem:[%s5 + $0xb0] sm:$0xf]
      %v750 = vld [vmem:[%s5 + $0xb4] sm:$0xf]
      %v751 = vld [vmem:[%s5 + $0xb8] sm:$0xf]
      %v752 = vld [vmem:[%s5 + $0xbc] sm:$0xf]
      %v753 = vld [vmem:[%s6] sm:$0x1]
      %v755 = vlaneseq
      %v756 = vshrl.u32 %v755, 7
      %v757 = vsub.s32 0, %v756
      %v758 = vrot.slane %v753, %v757
      %v792 = vunpack.c.l.b16 %v673
      %v793 = vunpack.c.h.b16 %v673
      %v794 = vunpack.c.l.b16 %v674
      %v795 = vunpack.c.l.b16 %v675
      %v796 = vunpack.c.h.b16 %v675
      %v797 = vunpack.c.l.b16 %v676
      %v798 = vunpack.c.l.b16 %v677
      %v799 = vunpack.c.h.b16 %v677
      %v800 = vunpack.c.l.b16 %v678
      %v801 = vunpack.c.l.b16 %v679
      %v802 = vunpack.c.h.b16 %v679
      %v803 = vunpack.c.l.b16 %v680
      %v804 = vunpack.c.l.b16 %v681
      %v805 = vunpack.c.h.b16 %v681
      %v806 = vunpack.c.l.b16 %v682
      %v807 = vunpack.c.l.b16 %v683
      %v808 = vunpack.c.h.b16 %v683
      %v809 = vunpack.c.l.b16 %v684
      %v810 = vunpack.c.l.b16 %v685
      %v811 = vunpack.c.h.b16 %v685
      %v812 = vunpack.c.l.b16 %v686
      %v813 = vunpack.c.l.b16 %v687
      %v814 = vunpack.c.h.b16 %v687
      %v815 = vunpack.c.l.b16 %v688
      %v816 = vunpack.c.l.b16 %v689
      %v817 = vunpack.c.h.b16 %v689
      %v818 = vunpack.c.l.b16 %v690
      %v819 = vunpack.c.l.b16 %v691
      %v820 = vunpack.c.h.b16 %v691
      %v821 = vunpack.c.l.b16 %v692
      %v822 = vunpack.c.l.b16 %v693
      %v823 = vunpack.c.h.b16 %v693
      %v824 = vunpack.c.l.b16 %v694
      %v825 = vunpack.c.l.b16 %v695
      %v826 = vunpack.c.h.b16 %v695
      %v827 = vunpack.c.l.b16 %v696
      %v828 = vunpack.c.l.b16 %v697
      %v829 = vunpack.c.h.b16 %v697
      %v830 = vunpack.c.l.b16 %v698
      %v831 = vunpack.c.l.b16 %v699
      %v832 = vunpack.c.h.b16 %v699
      %v833 = vunpack.c.l.b16 %v700
      %v834 = vunpack.c.l.b16 %v701
      %v835 = vunpack.c.h.b16 %v701
      %v836 = vunpack.c.l.b16 %v702
      %v837 = vunpack.c.l.b16 %v703
      %v838 = vunpack.c.h.b16 %v703
      %v839 = vunpack.c.l.b16 %v704
      %v840 = vpack.c.b16 %v795, %v792
      %v841 = vpack.c.b16 %v796, %v793
      %v842 = vpack.c.b16 %v797, %v794
      %v843 = vpack.c.b16 %v801, %v798
      %v844 = vpack.c.b16 %v802, %v799
      %v845 = vpack.c.b16 %v803, %v800
      %v846 = vpack.c.b16 %v807, %v804
      %v847 = vpack.c.b16 %v808, %v805
      %v848 = vpack.c.b16 %v809, %v806
      %v849 = vpack.c.b16 %v813, %v810
      %v850 = vpack.c.b16 %v814, %v811
      %v851 = vpack.c.b16 %v815, %v812
      %v852 = vpack.c.b16 %v819, %v816
      %v853 = vpack.c.b16 %v820, %v817
      %v854 = vpack.c.b16 %v821, %v818
      %v855 = vpack.c.b16 %v825, %v822
      %v856 = vpack.c.b16 %v826, %v823
      %v857 = vpack.c.b16 %v827, %v824
      %v858 = vpack.c.b16 %v831, %v828
      %v859 = vpack.c.b16 %v832, %v829
      %v860 = vpack.c.b16 %v833, %v830
      %v861 = vpack.c.b16 %v837, %v834
      %v862 = vpack.c.b16 %v838, %v835
      %v863 = vpack.c.b16 %v839, %v836
      %v936 = vunpack.c.l.b16 %v705
      %v937 = vunpack.c.l.b16 %v706
      %v938 = vunpack.c.l.b16 %v707
      %v939 = vunpack.c.l.b16 %v708
      %v940 = vunpack.c.l.b16 %v709
      %v941 = vunpack.c.l.b16 %v710
      %v942 = vunpack.c.l.b16 %v711
      %v943 = vunpack.c.l.b16 %v712
      %v944 = vunpack.c.l.b16 %v713
      %v945 = vunpack.c.l.b16 %v714
      %v946 = vunpack.c.l.b16 %v715
      %v947 = vunpack.c.l.b16 %v716
      %v948 = vunpack.c.l.b16 %v717
      %v949 = vunpack.c.l.b16 %v718
      %v950 = vunpack.c.l.b16 %v719
      %v951 = vunpack.c.l.b16 %v720
      %v952 = vunpack.c.l.b16 %v721
      %v953 = vunpack.c.l.b16 %v722
      %v954 = vunpack.c.l.b16 %v723
      %v955 = vunpack.c.l.b16 %v724
      %v956 = vunpack.c.l.b16 %v725
      %v957 = vunpack.c.l.b16 %v726
      %v958 = vunpack.c.l.b16 %v727
      %v959 = vunpack.c.l.b16 %v728
      %v960 = vunpack.c.l.b16 %v729
      %v961 = vunpack.c.l.b16 %v730
      %v962 = vunpack.c.l.b16 %v731
      %v963 = vunpack.c.l.b16 %v732
      %v964 = vunpack.c.l.b16 %v733
      %v965 = vunpack.c.l.b16 %v734
      %v966 = vunpack.c.l.b16 %v735
      %v967 = vunpack.c.l.b16 %v736
      %v968 = vunpack.c.l.b16 %v737
      %v969 = vunpack.c.l.b16 %v738
      %v970 = vunpack.c.l.b16 %v739
      %v971 = vunpack.c.l.b16 %v740
      %v972 = vunpack.c.l.b16 %v741
      %v973 = vunpack.c.l.b16 %v742
      %v974 = vunpack.c.l.b16 %v743
      %v975 = vunpack.c.l.b16 %v744
      %v976 = vunpack.c.l.b16 %v745
      %v977 = vunpack.c.l.b16 %v746
      %v978 = vunpack.c.l.b16 %v747
      %v979 = vunpack.c.l.b16 %v748
      %v980 = vunpack.c.l.b16 %v749
      %v981 = vunpack.c.l.b16 %v750
      %v982 = vunpack.c.l.b16 %v751
      %v983 = vunpack.c.l.b16 %v752
      %v984 = vpack.c.b16 %v937, %v936
      %v985 = vpack.c.b16 %v939, %v938
      %v986 = vpack.c.b16 %v941, %v940
      %v987 = vpack.c.b16 %v943, %v942
      %v988 = vpack.c.b16 %v945, %v944
      %v989 = vpack.c.b16 %v947, %v946
      %v990 = vpack.c.b16 %v949, %v948
      %v991 = vpack.c.b16 %v951, %v950
      %v992 = vpack.c.b16 %v953, %v952
      %v993 = vpack.c.b16 %v955, %v954
      %v994 = vpack.c.b16 %v957, %v956
      %v995 = vpack.c.b16 %v959, %v958
      %v996 = vpack.c.b16 %v961, %v960
      %v997 = vpack.c.b16 %v963, %v962
      %v998 = vpack.c.b16 %v965, %v964
      %v999 = vpack.c.b16 %v967, %v966
      %v1000 = vpack.c.b16 %v969, %v968
      %v1001 = vpack.c.b16 %v971, %v970
      %v1002 = vpack.c.b16 %v973, %v972
      %v1003 = vpack.c.b16 %v975, %v974
      %v1004 = vpack.c.b16 %v977, %v976
      %v1005 = vpack.c.b16 %v979, %v978
      %v1006 = vpack.c.b16 %v981, %v980
      %v1007 = vpack.c.b16 %v983, %v982
      %1032 = vmatprep.subr.bf16.mxu0 0
      %1033 = vmatpush1.bf16.msra.mxu0 %v991
      %1034 = vmatprep.subr.bf16.mxu0 0
      %1035 = vmatpush1.bf16.msra.mxu0 %v990
      %1036 = vmatprep.subr.bf16.mxu0 0
      %1037 = vmatpush1.bf16.msra.mxu0 %v989
      %1038 = vmatprep.subr.bf16.mxu0 0
      %1039 = vmatpush1.bf16.msra.mxu0 %v988
      %1040 = vmatprep.subr.bf16.mxu0 0
      %1041 = vmatpush1.bf16.msra.mxu0 %v987
      %1042 = vmatprep.subr.bf16.mxu0 0
      %1043 = vmatpush1.bf16.msra.mxu0 %v986
      %1044 = vmatprep.subr.bf16.mxu0 0
      %1045 = vmatpush1.bf16.msra.mxu0 %v985
      %1046 = vmatprep.subr.bf16.mxu0 0
      %1047 = vmatpush1.bf16.msra.mxu0 %v984
      %1048 = vmatprep.subr.bf16.mxu0 0
      %1049 = vmatpush2.bf16.msra.mxu0 %v999
      %1050 = vmatprep.subr.bf16.mxu0 0
      %1051 = vmatpush2.bf16.msra.mxu0 %v998
      %1052 = vmatprep.subr.bf16.mxu0 0
      %1053 = vmatpush2.bf16.msra.mxu0 %v997
      %1054 = vmatprep.subr.bf16.mxu0 0
      %1055 = vmatpush2.bf16.msra.mxu0 %v996
      %1056 = vmatprep.subr.bf16.mxu0 0
      %1057 = vmatpush2.bf16.msra.mxu0 %v995
      %1058 = vmatprep.subr.bf16.mxu0 0
      %1059 = vmatpush2.bf16.msra.mxu0 %v994
      %1060 = vmatprep.subr.bf16.mxu0 0
      %1061 = vmatpush2.bf16.msra.mxu0 %v993
      %1062 = vmatprep.subr.bf16.mxu0 0
      %1063 = vmatpush2.bf16.msra.mxu0 %v992
      %1064 = vmatprep.mubr.bf16.mxu0 %v841
      %1065 = vmatmul.mubr.bf16.gmra.mxu0 %v840
      %v1066 = vpop.f32.mrf.mxu0
      %v1067 = vadd.f32 %v758, %v1066
      %v1068 = vpop.f32.mrf.mxu0
      %v1069 = vpop.f32.mrf.mxu0
      %v1070 = vadd.f32 %v758, %v1069
      %v1071 = vpop.f32.mrf.mxu0
      %1072 = vmatprep.mubr.bf16.mxu0 %v844
      %1073 = vmatmul.mubr.bf16.gmra.mxu0 %v843
      %v1074 = vpop.f32.mrf.mxu0
      %v1075 = vadd.f32 %v758, %v1074
      %v1076 = vpop.f32.mrf.mxu0
      %v1077 = vpop.f32.mrf.mxu0
      %v1078 = vadd.f32 %v758, %v1077
      %v1079 = vpop.f32.mrf.mxu0
      %1080 = vmatprep.mubr.bf16.mxu0 %v847
      %1081 = vmatmul.mubr.bf16.gmra.mxu0 %v846
      %v1082 = vpop.f32.mrf.mxu0
      %v1083 = vadd.f32 %v758, %v1082
      %v1084 = vpop.f32.mrf.mxu0
      %v1085 = vpop.f32.mrf.mxu0
      %v1086 = vadd.f32 %v758, %v1085
      %v1087 = vpop.f32.mrf.mxu0
      %1088 = vmatprep.mubr.bf16.mxu0 %v850
      %1089 = vmatmul.mubr.bf16.gmra.mxu0 %v849
      %v1090 = vpop.f32.mrf.mxu0
      %v1091 = vadd.f32 %v758, %v1090
      %v1092 = vpop.f32.mrf.mxu0
      %v1093 = vpop.f32.mrf.mxu0
      %v1094 = vadd.f32 %v758, %v1093
      %v1095 = vpop.f32.mrf.mxu0
      %1096 = vmatprep.mubr.bf16.mxu0 %v853
      %1097 = vmatmul.mubr.bf16.gmra.mxu0 %v852
      %v1098 = vpop.f32.mrf.mxu0
      %v1099 = vadd.f32 %v758, %v1098
      %v1100 = vpop.f32.mrf.mxu0
      %v1101 = vpop.f32.mrf.mxu0
      %v1102 = vadd.f32 %v758, %v1101
      %v1103 = vpop.f32.mrf.mxu0
      %1104 = vmatprep.mubr.bf16.mxu0 %v856
      %1105 = vmatmul.mubr.bf16.gmra.mxu0 %v855
      %v1106 = vpop.f32.mrf.mxu0
      %v1107 = vadd.f32 %v758, %v1106
      %v1108 = vpop.f32.mrf.mxu0
      %v1109 = vpop.f32.mrf.mxu0
      %v1110 = vadd.f32 %v758, %v1109
      %v1111 = vpop.f32.mrf.mxu0
      %1112 = vmatprep.mubr.bf16.mxu0 %v859
      %1113 = vmatmul.mubr.bf16.gmra.mxu0 %v858
      %v1114 = vpop.f32.mrf.mxu0
      %v1115 = vadd.f32 %v758, %v1114
      %v1116 = vpop.f32.mrf.mxu0
      %v1117 = vpop.f32.mrf.mxu0
      %v1118 = vadd.f32 %v758, %v1117
      %v1119 = vpop.f32.mrf.mxu0
      %1120 = vmatprep.mubr.bf16.mxu0 %v862
      %1121 = vmatmul.mubr.bf16.gmra.mxu0 %v861
      %v1122 = vpop.f32.mrf.mxu0
      %v1123 = vadd.f32 %v758, %v1122
      %v1124 = vpop.f32.mrf.mxu0
      %v1125 = vpop.f32.mrf.mxu0
      %v1126 = vadd.f32 %v758, %v1125
      %v1127 = vpop.f32.mrf.mxu0
      %1128 = vdwg.mxu0
      %1129 = vmatprep.subr.bf16.mxu0 0
      %1130 = vmatpush1.bf16.msra.mxu0 %v1007
      %1131 = vmatprep.subr.bf16.mxu0 0
      %1132 = vmatpush1.bf16.msra.mxu0 %v1006
      %1133 = vmatprep.subr.bf16.mxu0 0
      %1134 = vmatpush1.bf16.msra.mxu0 %v1005
      %1135 = vmatprep.subr.bf16.mxu0 0
      %1136 = vmatpush1.bf16.msra.mxu0 %v1004
      %1137 = vmatprep.subr.bf16.mxu0 0
      %1138 = vmatpush1.bf16.msra.mxu0 %v1003
      %1139 = vmatprep.subr.bf16.mxu0 0
      %1140 = vmatpush1.bf16.msra.mxu0 %v1002
      %1141 = vmatprep.subr.bf16.mxu0 0
      %1142 = vmatpush1.bf16.msra.mxu0 %v1001
      %1143 = vmatprep.subr.bf16.mxu0 0
      %1144 = vmatpush1.bf16.msra.mxu0 %v1000
      %1145 = vmatprep.subr.bf16.mxu0 0
      %1146 = vmatpush2.bf16.msra.mxu0 0
      %1147 = vmatprep.subr.bf16.mxu0 0
      %1148 = vmatpush2.bf16.msra.mxu0 0
      %1149 = vmatprep.subr.bf16.mxu0 0
      %1150 = vmatpush2.bf16.msra.mxu0 0
      %1151 = vmatprep.subr.bf16.mxu0 0
      %1152 = vmatpush2.bf16.msra.mxu0 0
      %1153 = vmatprep.subr.bf16.mxu0 0
      %1154 = vmatpush2.bf16.msra.mxu0 0
      %1155 = vmatprep.subr.bf16.mxu0 0
      %1156 = vmatpush2.bf16.msra.mxu0 0
      %1157 = vmatprep.subr.bf16.mxu0 0
      %1158 = vmatpush2.bf16.msra.mxu0 0
      %1159 = vmatprep.subr.bf16.mxu0 0
      %1160 = vmatpush2.bf16.msra.mxu0 0
      %1161 = vmatprep.mubr.bf16.mxu0 0
      %1162 = vmatmul.mubr.bf16.gmra.mxu0 %v842
      %v1163 = vpop.f32.mrf.mxu0
      %v1164 = vadd.f32 %v1067, %v1163
      %v1165 = vpop.f32.mrf.mxu0
      %v1166 = vpop.f32.mrf.mxu0
      %v1167 = vadd.f32 %v1070, %v1166
      %v1168 = vpop.f32.mrf.mxu0
      %1169 = vmatprep.mubr.bf16.mxu0 0
      %1170 = vmatmul.mubr.bf16.gmra.mxu0 %v845
      %v1171 = vpop.f32.mrf.mxu0
      %v1172 = vadd.f32 %v1075, %v1171
      %v1173 = vpop.f32.mrf.mxu0
      %v1174 = vpop.f32.mrf.mxu0
      %v1175 = vadd.f32 %v1078, %v1174
      %v1176 = vpop.f32.mrf.mxu0
      %1177 = vmatprep.mubr.bf16.mxu0 0
      %1178 = vmatmul.mubr.bf16.gmra.mxu0 %v848
      %v1179 = vpop.f32.mrf.mxu0
      %v1180 = vadd.f32 %v1083, %v1179
      %v1181 = vpop.f32.mrf.mxu0
      %v1182 = vpop.f32.mrf.mxu0
      %v1183 = vadd.f32 %v1086, %v1182
      %v1184 = vpop.f32.mrf.mxu0
      %1185 = vmatprep.mubr.bf16.mxu0 0
      %1186 = vmatmul.mubr.bf16.gmra.mxu0 %v851
      %v1187 = vpop.f32.mrf.mxu0
      %v1188 = vadd.f32 %v1091, %v1187
      %v1189 = vpop.f32.mrf.mxu0
      %v1190 = vpop.f32.mrf.mxu0
      %v1191 = vadd.f32 %v1094, %v1190
      %v1192 = vpop.f32.mrf.mxu0
      %1193 = vmatprep.mubr.bf16.mxu0 0
      %1194 = vmatmul.mubr.bf16.gmra.mxu0 %v854
      %v1195 = vpop.f32.mrf.mxu0
      %v1196 = vadd.f32 %v1099, %v1195
      %v1197 = vpop.f32.mrf.mxu0
      %v1198 = vpop.f32.mrf.mxu0
      %v1199 = vadd.f32 %v1102, %v1198
      %v1200 = vpop.f32.mrf.mxu0
      %1201 = vmatprep.mubr.bf16.mxu0 0
      %1202 = vmatmul.mubr.bf16.gmra.mxu0 %v857
      %v1203 = vpop.f32.mrf.mxu0
      %v1204 = vadd.f32 %v1107, %v1203
      %v1205 = vpop.f32.mrf.mxu0
      %v1206 = vpop.f32.mrf.mxu0
      %v1207 = vadd.f32 %v1110, %v1206
      %v1208 = vpop.f32.mrf.mxu0
      %1209 = vmatprep.mubr.bf16.mxu0 0
      %1210 = vmatmul.mubr.bf16.gmra.mxu0 %v860
      %v1211 = vpop.f32.mrf.mxu0
      %v1212 = vadd.f32 %v1115, %v1211
      %v1213 = vpop.f32.mrf.mxu0
      %v1214 = vpop.f32.mrf.mxu0
      %v1215 = vadd.f32 %v1118, %v1214
      %v1216 = vpop.f32.mrf.mxu0
      %1217 = vmatprep.mubr.bf16.mxu0 0
      %1218 = vmatmul.mubr.bf16.gmra.mxu0 %v863
      %v1219 = vpop.f32.mrf.mxu0
      %v1220 = vadd.f32 %v1123, %v1219
      %v1221 = vpop.f32.mrf.mxu0
      %v1222 = vpop.f32.mrf.mxu0
      %v1223 = vadd.f32 %v1126, %v1222
      %v1224 = vpop.f32.mrf.mxu0
      %1225 = vdwg.mxu0
      %v1226 = vmax.f32 %v1164, 0.0
      %v1227 = vmax.f32 %v1167, 0.0
      %v1228 = vmax.f32 %v1172, 0.0
      %v1229 = vmax.f32 %v1175, 0.0
      %v1230 = vmax.f32 %v1180, 0.0
      %v1231 = vmax.f32 %v1183, 0.0
      %v1232 = vmax.f32 %v1188, 0.0
      %v1233 = vmax.f32 %v1191, 0.0
      %v1234 = vmax.f32 %v1196, 0.0
      %v1235 = vmax.f32 %v1199, 0.0
      %v1236 = vmax.f32 %v1204, 0.0
      %v1237 = vmax.f32 %v1207, 0.0
      %v1238 = vmax.f32 %v1212, 0.0
      %v1239 = vmax.f32 %v1215, 0.0
      %v1240 = vmax.f32 %v1220, 0.0
      %v1241 = vmax.f32 %v1223, 0.0
      %v1242 = vpack.c.bf16 %v1227, %v1226
      %v1243 = vpack.c.bf16 %v1229, %v1228
      %v1244 = vpack.c.bf16 %v1231, %v1230
      %v1245 = vpack.c.bf16 %v1233, %v1232
      %v1246 = vpack.c.bf16 %v1235, %v1234
      %v1247 = vpack.c.bf16 %v1237, %v1236
      %v1248 = vpack.c.bf16 %v1239, %v1238
      %v1249 = vpack.c.bf16 %v1241, %v1240
      %v1250 = vld [vmem:[%s7] sm:$0xf]
      %v1251 = vld [vmem:[%s7 + $0x4] sm:$0xf]
      %v1252 = vld [vmem:[%s7 + $0x8] sm:$0xf]
      %v1253 = vld [vmem:[%s7 + $0xc] sm:$0xf]
      %v1254 = vld [vmem:[%s7 + $0x10] sm:$0xf]
      %v1255 = vld [vmem:[%s7 + $0x14] sm:$0xf]
      %v1256 = vld [vmem:[%s7 + $0x18] sm:$0xf]
      %v1257 = vld [vmem:[%s7 + $0x1c] sm:$0xf]
      %v1258 = vld [vmem:[%s7 + $0x20] sm:$0xf]
      %v1259 = vld [vmem:[%s7 + $0x24] sm:$0xf]
      %v1260 = vld [vmem:[%s7 + $0x28] sm:$0xf]
      %v1261 = vld [vmem:[%s7 + $0x2c] sm:$0xf]
      %v1262 = vld [vmem:[%s7 + $0x30] sm:$0xf]
      %v1263 = vld [vmem:[%s7 + $0x34] sm:$0xf]
      %v1264 = vld [vmem:[%s7 + $0x38] sm:$0xf]
      %v1265 = vld [vmem:[%s7 + $0x3c] sm:$0xf]
      %v1282 = vunpack.c.l.b16 %v1250
      %v1283 = vunpack.c.l.b16 %v1251
      %v1284 = vunpack.c.l.b16 %v1252
      %v1285 = vunpack.c.l.b16 %v1253
      %v1286 = vunpack.c.l.b16 %v1254
      %v1287 = vunpack.c.l.b16 %v1255
      %v1288 = vunpack.c.l.b16 %v1256
      %v1289 = vunpack.c.l.b16 %v1257
      %v1290 = vunpack.c.l.b16 %v1258
      %v1291 = vunpack.c.l.b16 %v1259
      %v1292 = vunpack.c.l.b16 %v1260
      %v1293 = vunpack.c.l.b16 %v1261
      %v1294 = vunpack.c.l.b16 %v1262
      %v1295 = vunpack.c.l.b16 %v1263
      %v1296 = vunpack.c.l.b16 %v1264
      %v1297 = vunpack.c.l.b16 %v1265
      %v1298 = vpack.c.b16 %v1283, %v1282
      %v1299 = vpack.c.b16 %v1285, %v1284
      %v1300 = vpack.c.b16 %v1287, %v1286
      %v1301 = vpack.c.b16 %v1289, %v1288
      %v1302 = vpack.c.b16 %v1291, %v1290
      %v1303 = vpack.c.b16 %v1293, %v1292
      %v1304 = vpack.c.b16 %v1295, %v1294
      %v1305 = vpack.c.b16 %v1297, %v1296
      %1314 = vmatprep.subr.bf16.mxu0 0
      %1315 = vmatpush1.bf16.msra.mxu0 %v1305
      %1316 = vmatprep.subr.bf16.mxu0 0
      %1317 = vmatpush1.bf16.msra.mxu0 %v1304
      %1318 = vmatprep.subr.bf16.mxu0 0
      %1319 = vmatpush1.bf16.msra.mxu0 %v1303
      %1320 = vmatprep.subr.bf16.mxu0 0
      %1321 = vmatpush1.bf16.msra.mxu0 %v1302
      %1322 = vmatprep.subr.bf16.mxu0 0
      %1323 = vmatpush1.bf16.msra.mxu0 %v1301
      %1324 = vmatprep.subr.bf16.mxu0 0
      %1325 = vmatpush1.bf16.msra.mxu0 %v1300
      %1326 = vmatprep.subr.bf16.mxu0 0
      %1327 = vmatpush1.bf16.msra.mxu0 %v1299
      %1328 = vmatprep.subr.bf16.mxu0 0
      %1329 = vmatpush1.bf16.msra.mxu0 %v1298
      %1330 = vmatprep.subr.bf16.mxu0 0
      %1331 = vmatpush2.bf16.msra.mxu0 0
      %1332 = vmatprep.subr.bf16.mxu0 0
      %1333 = vmatpush2.bf16.msra.mxu0 0
      %1334 = vmatprep.subr.bf16.mxu0 0
      %1335 = vmatpush2.bf16.msra.mxu0 0
      %1336 = vmatprep.subr.bf16.mxu0 0
      %1337 = vmatpush2.bf16.msra.mxu0 0
      %1338 = vmatprep.subr.bf16.mxu0 0
      %1339 = vmatpush2.bf16.msra.mxu0 0
      %1340 = vmatprep.subr.bf16.mxu0 0
      %1341 = vmatpush2.bf16.msra.mxu0 0
      %1342 = vmatprep.subr.bf16.mxu0 0
      %1343 = vmatpush2.bf16.msra.mxu0 0
      %1344 = vmatprep.subr.bf16.mxu0 0
      %1345 = vmatpush2.bf16.msra.mxu0 0
      %1346 = vmatprep.mubr.bf16.mxu0 0
      %1347 = vmatmul.mubr.bf16.gmra.mxu0 %v1242
      %v1348 = vpop.f32.mrf.mxu0
      %v1349 = vadd.f32 0.0, %v1348
      %v1350 = vpop.f32.mrf.mxu0
      %v1351 = vpop.f32.mrf.mxu0
      %v1352 = vadd.f32 0.0, %v1351
      %v1353 = vpop.f32.mrf.mxu0
      %1354 = vmatprep.mubr.bf16.mxu0 0
      %1355 = vmatmul.mubr.bf16.gmra.mxu0 %v1243
      %v1356 = vpop.f32.mrf.mxu0
      %v1357 = vadd.f32 0.0, %v1356
      %v1358 = vpop.f32.mrf.mxu0
      %v1359 = vpop.f32.mrf.mxu0
      %v1360 = vadd.f32 0.0, %v1359
      %v1361 = vpop.f32.mrf.mxu0
      %1362 = vmatprep.mubr.bf16.mxu0 0
      %1363 = vmatmul.mubr.bf16.gmra.mxu0 %v1244
      %v1364 = vpop.f32.mrf.mxu0
      %v1365 = vadd.f32 0.0, %v1364
      %v1366 = vpop.f32.mrf.mxu0
      %v1367 = vpop.f32.mrf.mxu0
      %v1368 = vadd.f32 0.0, %v1367
      %v1369 = vpop.f32.mrf.mxu0
      %1370 = vmatprep.mubr.bf16.mxu0 0
      %1371 = vmatmul.mubr.bf16.gmra.mxu0 %v1245
      %v1372 = vpop.f32.mrf.mxu0
      %v1373 = vadd.f32 0.0, %v1372
      %v1374 = vpop.f32.mrf.mxu0
      %v1375 = vpop.f32.mrf.mxu0
      %v1376 = vadd.f32 0.0, %v1375
      %v1377 = vpop.f32.mrf.mxu0
      %1378 = vmatprep.mubr.bf16.mxu0 0
      %1379 = vmatmul.mubr.bf16.gmra.mxu0 %v1246
      %v1380 = vpop.f32.mrf.mxu0
      %v1381 = vadd.f32 0.0, %v1380
      %v1382 = vpop.f32.mrf.mxu0
      %v1383 = vpop.f32.mrf.mxu0
      %v1384 = vadd.f32 0.0, %v1383
      %v1385 = vpop.f32.mrf.mxu0
      %1386 = vmatprep.mubr.bf16.mxu0 0
      %1387 = vmatmul.mubr.bf16.gmra.mxu0 %v1247
      %v1388 = vpop.f32.mrf.mxu0
      %v1389 = vadd.f32 0.0, %v1388
      %v1390 = vpop.f32.mrf.mxu0
      %v1391 = vpop.f32.mrf.mxu0
      %v1392 = vadd.f32 0.0, %v1391
      %v1393 = vpop.f32.mrf.mxu0
      %1394 = vmatprep.mubr.bf16.mxu0 0
      %1395 = vmatmul.mubr.bf16.gmra.mxu0 %v1248
      %v1396 = vpop.f32.mrf.mxu0
      %v1397 = vadd.f32 0.0, %v1396
      %v1398 = vpop.f32.mrf.mxu0
      %v1399 = vpop.f32.mrf.mxu0
      %v1400 = vadd.f32 0.0, %v1399
      %v1401 = vpop.f32.mrf.mxu0
      %1402 = vmatprep.mubr.bf16.mxu0 0
      %1403 = vmatmul.mubr.bf16.gmra.mxu0 %v1249
      %v1404 = vpop.f32.mrf.mxu0
      %v1405 = vadd.f32 0.0, %v1404
      %v1406 = vpop.f32.mrf.mxu0
      %v1407 = vpop.f32.mrf.mxu0
      %v1408 = vadd.f32 0.0, %v1407
      %v1409 = vpop.f32.mrf.mxu0
      %1410 = vdwg.mxu0
      %v1411 = vadd.f32 %v337, %v1349
      %v1412 = vadd.f32 %v338, %v1352
      %v1413 = vadd.f32 %v339, %v1357
      %v1414 = vadd.f32 %v340, %v1360
      %v1415 = vadd.f32 %v341, %v1365
      %v1416 = vadd.f32 %v342, %v1368
      %v1417 = vadd.f32 %v343, %v1373
      %v1418 = vadd.f32 %v344, %v1376
      %v1419 = vadd.f32 %v345, %v1381
      %v1420 = vadd.f32 %v346, %v1384
      %v1421 = vadd.f32 %v347, %v1389
      %v1422 = vadd.f32 %v348, %v1392
      %v1423 = vadd.f32 %v349, %v1397
      %v1424 = vadd.f32 %v350, %v1400
      %v1425 = vadd.f32 %v351, %v1405
      %v1426 = vadd.f32 %v352, %v1408
      %v1427 = vld [vmem:[%s8] sm:$0x1]
      %v1429 = vlaneseq
      %v1430 = vshrl.u32 %v1429, 7
      %v1431 = vsub.s32 0, %v1430
      %v1432 = vrot.slane %v1427, %v1431
      %v1434 = vadd.f32 %v1411, %v1432
      %v1435 = vadd.f32 %v1412, %v1432
      %v1436 = vadd.f32 %v1413, %v1432
      %v1437 = vadd.f32 %v1414, %v1432
      %v1438 = vadd.f32 %v1415, %v1432
      %v1439 = vadd.f32 %v1416, %v1432
      %v1440 = vadd.f32 %v1417, %v1432
      %v1441 = vadd.f32 %v1418, %v1432
      %v1442 = vadd.f32 %v1419, %v1432
      %v1443 = vadd.f32 %v1420, %v1432
      %v1444 = vadd.f32 %v1421, %v1432
      %v1445 = vadd.f32 %v1422, %v1432
      %v1446 = vadd.f32 %v1423, %v1432
      %v1447 = vadd.f32 %v1424, %v1432
      %v1448 = vadd.f32 %v1425, %v1432
      %v1449 = vadd.f32 %v1426, %v1432
      %1450 = vst [vmem:[%s9] sm:$0xff] %v1434
      %1451 = vst [vmem:[%s9 + $0x8] sm:$0xff] %v1435
      %1452 = vst [vmem:[%s9 + $0x10] sm:$0xff] %v1436
      %1453 = vst [vmem:[%s9 + $0x18] sm:$0xff] %v1437
      %1454 = vst [vmem:[%s9 + $0x20] sm:$0xff] %v1438
      %1455 = vst [vmem:[%s9 + $0x28] sm:$0xff] %v1439
      %1456 = vst [vmem:[%s9 + $0x30] sm:$0xff] %v1440
      %1457 = vst [vmem:[%s9 + $0x38] sm:$0xff] %v1441
      %1458 = vst [vmem:[%s9 + $0x40] sm:$0xff] %v1442
      %1459 = vst [vmem:[%s9 + $0x48] sm:$0xff] %v1443
      %1460 = vst [vmem:[%s9 + $0x50] sm:$0xff] %v1444
      %1461 = vst [vmem:[%s9 + $0x58] sm:$0xff] %v1445
      %1462 = vst [vmem:[%s9 + $0x60] sm:$0xff] %v1446
      %1463 = vst [vmem:[%s9 + $0x68] sm:$0xff] %v1447
      %1464 = vst [vmem:[%s9 + $0x70] sm:$0xff] %v1448
      %1465 = vst [vmem:[%s9 + $0x78] sm:$0xff] %v1449
      %v1466 = vpack.c.bf16 %v1435, %v1434
      %v1467 = vpack.c.bf16 %v1437, %v1436
      %v1468 = vpack.c.bf16 %v1439, %v1438
      %v1469 = vpack.c.bf16 %v1441, %v1440
      %v1470 = vpack.c.bf16 %v1443, %v1442
      %v1471 = vpack.c.bf16 %v1445, %v1444
      %v1472 = vpack.c.bf16 %v1447, %v1446
      %v1473 = vpack.c.bf16 %v1449, %v1448
      %v1482 = vunpack.c.l.b16 %v1466
      %v1483 = vunpack.c.h.b16 %v1466
      %v1484 = vunpack.c.l.b16 %v1467
      %v1485 = vunpack.c.h.b16 %v1467
      %v1486 = vunpack.c.l.b16 %v1468
      %v1487 = vunpack.c.h.b16 %v1468
      %v1488 = vunpack.c.l.b16 %v1469
      %v1489 = vunpack.c.h.b16 %v1469
      %v1490 = vunpack.c.l.b16 %v1470
      %v1491 = vunpack.c.h.b16 %v1470
      %v1492 = vunpack.c.l.b16 %v1471
      %v1493 = vunpack.c.h.b16 %v1471
      %v1494 = vunpack.c.l.b16 %v1472
      %v1495 = vunpack.c.h.b16 %v1472
      %v1496 = vunpack.c.l.b16 %v1473
      %v1497 = vunpack.c.h.b16 %v1473
      %v1498 = vpack.c.b16 %v1482, %v1482
      %v1499 = vpack.c.b16 %v1483, %v1483
      %v1500 = vpack.c.b16 %v1484, %v1484
      %v1501 = vpack.c.b16 %v1485, %v1485
      %v1502 = vpack.c.b16 %v1486, %v1486
      %v1503 = vpack.c.b16 %v1487, %v1487
      %v1504 = vpack.c.b16 %v1488, %v1488
      %v1505 = vpack.c.b16 %v1489, %v1489
      %v1506 = vpack.c.b16 %v1490, %v1490
      %v1507 = vpack.c.b16 %v1491, %v1491
      %v1508 = vpack.c.b16 %v1492, %v1492
      %v1509 = vpack.c.b16 %v1493, %v1493
      %v1510 = vpack.c.b16 %v1494, %v1494
      %v1511 = vpack.c.b16 %v1495, %v1495
      %v1512 = vpack.c.b16 %v1496, %v1496
      %v1513 = vpack.c.b16 %v1497, %v1497
      %1530 = vst [vmem:[#allocation4] sm:$0xf] %v1498
      %1531 = vst [vmem:[#allocation4 + $0x4] sm:$0xf] %v1499
      %1532 = vst [vmem:[#allocation4 + $0x8] sm:$0xf] %v1500
      %1533 = vst [vmem:[#allocation4 + $0xc] sm:$0xf] %v1501
      %1534 = vst [vmem:[#allocation4 + $0x10] sm:$0xf] %v1502
      %1535 = vst [vmem:[#allocation4 + $0x14] sm:$0xf] %v1503
      %1536 = vst [vmem:[#allocation4 + $0x18] sm:$0xf] %v1504
      %1537 = vst [vmem:[#allocation4 + $0x1c] sm:$0xf] %v1505
      %1538 = vst [vmem:[#allocation4 + $0x20] sm:$0xf] %v1506
      %1539 = vst [vmem:[#allocation4 + $0x24] sm:$0xf] %v1507
      %1540 = vst [vmem:[#allocation4 + $0x28] sm:$0xf] %v1508
      %1541 = vst [vmem:[#allocation4 + $0x2c] sm:$0xf] %v1509
      %1542 = vst [vmem:[#allocation4 + $0x30] sm:$0xf] %v1510
      %1543 = vst [vmem:[#allocation4 + $0x34] sm:$0xf] %v1511
      %1544 = vst [vmem:[#allocation4 + $0x38] sm:$0xf] %v1512
      %1545 = vst [vmem:[#allocation4 + $0x3c] sm:$0xf] %v1513
    $region45: #{temporal_gnn_forward.5} parent=1 // pred_fallthru
      _
    // Predicated region
    $region46: #{temporal_gnn_forward.5} parent=1 // pred_check
      _
    $region47: #{temporal_gnn_forward.5} parent=1 // pred_check_branch
      %1547 = sbr.rel (0) target = $region49
    $region48: #{temporal_gnn_forward.5} parent=1 // pred_region
      _
    $region49: #{temporal_gnn_forward.5} parent=1 // pred_fallthru
      _
    // Predicated region
    $region50: #{temporal_gnn_forward.5} parent=1 // pred_check
      _
    $region51: #{temporal_gnn_forward.5} parent=1 // pred_check_branch
      %1549 = sbr.rel (0) target = $region53
    $region52: #{temporal_gnn_forward.5} parent=1 // pred_region
      %s1551 = ssub.s32 1024, 1024
      %1552 = vsyncadd [#allocation5], %s1551
      %s1553 = sshll.u32 [#allocation4], 4
      %s1554 = int_to_ptr.vmem [resolvable:$true] %s1553
      %1559 = dma.vmem_to_hbm [thread:$0]  %s1554, 1024, %s10, [#allocation5], 64, 64, 4
    $region53: #{temporal_gnn_forward.5} parent=1 // pred_fallthru
      _
    // Predicated region
    $region54: #{temporal_gnn_forward.5} parent=1 // pred_check
      _
    $region55: #{temporal_gnn_forward.5} parent=1 // pred_check_branch
      %1561 = sbr.rel (0) target = $region57
    $region56: #{temporal_gnn_forward.5} parent=1 // pred_region
      _
    $region57: #{temporal_gnn_forward.5} parent=1 // pred_fallthru
      _
    // Predicated region
    $region58: #{temporal_gnn_forward.5} parent=1 // pred_check
      _
    $region59: #{temporal_gnn_forward.5} parent=1 // pred_check_branch
      %1563 = sbr.rel (0) target = $region61
    $region60: #{temporal_gnn_forward.5} parent=1 // pred_region
      %1564 = dma.done [#allocation5], 1024
    $region61: #{temporal_gnn_forward.5} parent=1 // pred_fallthru
      _
    %1565 = vsyncpa [#allocation5], 1

</llo_original>
